<compile_context>
chip_gen: v7x
topology: tpu7x:2x2x1
jax: 0.10.0
libtpu: 0.0.40
codegen_flags: <defaults>
</compile_context>

<pallas_src>
import functools

import jax
import jax.numpy as jnp
from jax import lax
from jax.experimental import pallas as pl
from jax.experimental.pallas import tpu as pltpu


def _dot_wT(x, w):
    """x: (M, K); w: (N, K) in PyTorch (out, in) layout -> (M, N). MXU consumes w transposed."""
    return lax.dot_general(x, w, (((1,), (1,)), ((), ())),
                           preferred_element_type=jnp.float32)


def _input_module_kernel(ids_ref, emb_ref, pe_ref,
                         w_ih_ref, b_x_ref,
                         w_hh_f_ref, w_hh_b_ref, b_hn_f_ref, b_hn_b_ref,
                         out_ref,
                         xproj, acc_b,
                         *, seq_len, batch, tokens):
    SB, H = out_ref.shape           # SB = S * B_pad
    N = ids_ref.shape[0]            # = tokens * SB, token-major row order
    V = emb_ref.shape[0]

    # 1) Embedding lookup as one-hot @ table on the MXU (no data-dependent gather).
    # TODO(synk): for realistic vocab sizes replace with a row-gather DMA from an HBM-resident
    #             table (memory_space=pl.ANY + make_async_copy); one-hot is O(N*V) VMEM/compute.
    onehot = (ids_ref[...] ==
              lax.broadcasted_iota(jnp.int32, (N, V), 1)).astype(jnp.float32)      # (N, V)
    tok_emb = jnp.dot(onehot, emb_ref[...], preferred_element_type=jnp.float32)    # (N, H)

    # 2) Positional encoding + per-sentence token sum.  Rows are token-major (token index j is
    #    outermost), so the sum is `tokens` aligned (SB, H) multiply-accumulates against one
    #    pe row each (sublane broadcast).  No (SB, N) segment matrix, no tiled pe table.
    pe = pe_ref[...]                                                               # (T, H)
    facts = jnp.zeros((SB, H), jnp.float32)
    for j in range(tokens):
        facts = facts + tok_emb[j * SB:(j + 1) * SB, :] * pe[j:j + 1, :]
    # TODO(synk): training-mode dropout (p=0.1) would use pltpu.prng_seed/prng_random_bits;
    #             eval mode => identity.

    # 3) Input-side projections for all gates, both directions, all timesteps: ONE lane-dense
    #    (SB,H)x(H,6H) matmul.  b_x already folds the hidden-side r/z biases.
    xproj[...] = _dot_wT(facts, w_ih_ref[...]) + b_x_ref[...]                      # (SB, 6H)

    # Hoist recurrent weights / biases out of the loop (JAX will not CSE per-iteration loads).
    w_hh_f = w_hh_f_ref[...]        # (3H, H) rows [r | z | n]
    w_hh_b = w_hh_b_ref[...]
    b_hn_f = b_hn_f_ref[...]        # (1, H)
    b_hn_b = b_hn_b_ref[...]

    def cell(x, g, b_hn, h):
        # x: (B, 3H) input-side projections (r/z biases already folded); g: (B, 3H) hidden-side.
        r = jax.nn.sigmoid(x[:, 0:H] + g[:, 0:H])
        z = jax.nn.sigmoid(x[:, H:2 * H] + g[:, H:2 * H])
        n = jnp.tanh(x[:, 2 * H:3 * H] + r * (g[:, 2 * H:3 * H] + b_hn))
        return (1.0 - z) * n + z * h

    h0 = jnp.zeros((batch, H), jnp.float32)

    # 4) Interleaved fwd/bwd recurrence: one loop, two independent chains per iteration.
    def step(i, carry):
        h_f, h_b = carry
        rs_f = pl.multiple_of(i * batch, batch)                    # 8-aligned row offsets
        rs_b = pl.multiple_of((seq_len - 1 - i) * batch, batch)
        x_f = xproj[pl.ds(rs_f, batch), :]                         # (B, 6H) lane-dense load
        x_b = xproj[pl.ds(rs_b, batch), :]
        g_f = _dot_wT(h_f, w_hh_f)                                 # (B, 3H): fused r|z|n
        g_b = _dot_wT(h_b, w_hh_b)
        h_f = cell(x_f[:, 0:3 * H], g_f, b_hn_f, h_f)
        h_b = cell(x_b[:, 3 * H:6 * H], g_b, b_hn_b, h_b)
        out_ref[pl.ds(rs_f, batch), :] = h_f                       # fwd half of BiGRU output
        acc_b[pl.ds(rs_b, batch), :] = h_b                         # bwd half (summed below)
        return h_f, h_b

    unroll = True if seq_len <= 16 else 4
    lax.fori_loop(0, seq_len, step, (h0, h0), unroll=unroll)

    # Module sums the fwd and bwd halves of the BiGRU output; single full-slab store.
    out_ref[...] = out_ref[...] + acc_b[...]


def input_module_forward(token_ids, emb_table, params):
    """token_ids: (B, S, T) int; emb_table: (V, H); params: PyTorch-layout GRU tensors."""
    B, S, T = token_ids.shape
    V, H = emb_table.shape
    B_pad = ((B + 7) // 8) * 8                     # sublane-align the batch
    SB = S * B_pad
    f32 = jnp.float32

    # Positional-encoding weights l[j, d] — a single (T, H) tile, broadcast in-kernel.
    tden = float(max(T - 1, 1))                    # guard T==1 / H==1 degenerate shapes
    hden = float(max(H - 1, 1))
    j = jnp.arange(T, dtype=f32)[:, None]
    d = jnp.arange(H, dtype=f32)[None, :]
    pe = 1.0 - j / tden - (d / hden) * (1.0 - 2.0 * j / tden)                # (T, H)

    ids = token_ids.astype(jnp.int32)
    if B_pad != B:
        ids = jnp.concatenate([ids, jnp.zeros((B_pad - B, S, T), jnp.int32)], axis=0)
    # Token-major row order: row n = j*S*B_pad + s*B_pad + b.
    ids_tm = jnp.transpose(ids, (2, 1, 0)).reshape(T * SB, 1)

    w_ih_f = params["weight_ih_l0"].astype(f32)                  # (3H, H), rows [r|z|n]
    w_ih_b = params["weight_ih_l0_reverse"].astype(f32)
    w_hh_f = params["weight_hh_l0"].astype(f32)
    w_hh_b = params["weight_hh_l0_reverse"].astype(f32)
    b_ih_f = params["bias_ih_l0"].astype(f32)
    b_ih_b = params["bias_ih_l0_reverse"].astype(f32)
    b_hh_f = params["bias_hh_l0"].astype(f32)
    b_hh_b = params["bias_hh_l0_reverse"].astype(f32)

    # Stack fwd+bwd input-side weights into one (6H, H) matrix (still PyTorch (out, in) layout,
    # consumed transposed by the MXU).  Fold the hidden-side r/z biases into the precomputed
    # input projections; b_hn stays separate because it sits inside r*(.).
    w_ih_all = jnp.concatenate([w_ih_f, w_ih_b], axis=0)                     # (6H, H)
    zero_n = jnp.zeros((H,), f32)
    b_x = jnp.concatenate([
        b_ih_f + jnp.concatenate([b_hh_f[:2 * H], zero_n]),
        b_ih_b + jnp.concatenate([b_hh_b[:2 * H], zero_n]),
    ]).reshape(1, 6 * H)
    b_hn_f = b_hh_f[2 * H:].reshape(1, H)
    b_hn_b = b_hh_b[2 * H:].reshape(1, H)

    kernel = functools.partial(_input_module_kernel, seq_len=S, batch=B_pad, tokens=T)

    out_tm = pl.pallas_call(
        kernel,
        out_shape=jax.ShapeDtypeStruct((SB, H), jnp.float32),
        in_specs=[pl.BlockSpec(memory_space=pltpu.MemorySpace.VMEM)] * 9,
        out_specs=pl.BlockSpec(memory_space=pltpu.MemorySpace.VMEM),
        scratch_shapes=[pltpu.VMEM((SB, 6 * H), jnp.float32),    # fused input-side projections
                        pltpu.VMEM((SB, H), jnp.float32)],       # backward-direction outputs
    )(ids_tm, emb_table.astype(f32), pe,
      w_ih_all, b_x, w_hh_f, w_hh_b, b_hn_f, b_hn_b)

    # (S*B_pad, H) time-major -> (B, S, H); tiny output, layout plumbing only.
    return out_tm.reshape(S, B_pad, H).transpose(1, 0, 2)[:B]


def _reference_forward(token_ids, emb_table, params):
    """Pure-JAX reference matching the PyTorch module (eval mode)."""
    B, S, T = token_ids.shape
    V, H = emb_table.shape
    hp = jax.lax.Precision.HIGHEST

    emb = emb_table[token_ids]                                               # (B,S,T,H)
    j = jnp.arange(T, dtype=jnp.float32)[:, None]
    d = jnp.arange(H, dtype=jnp.float32)[None, :]
    pe = 1.0 - j / (T - 1) - (d / (H - 1)) * (1.0 - 2.0 * j / (T - 1))
    x_seq = jnp.sum(emb * pe[None, None], axis=2)                            # (B,S,H)

    def direction(wi, wh, bi, bh, reverse):
        W_ir, W_iz, W_in = wi[:H], wi[H:2 * H], wi[2 * H:]
        W_hr, W_hz, W_hn = wh[:H], wh[H:2 * H], wh[2 * H:]
        b_ir, b_iz, b_in = bi[:H], bi[H:2 * H], bi[2 * H:]
        b_hr, b_hz, b_hn = bh[:H], bh[H:2 * H], bh[2 * H:]
        h = jnp.zeros((B, H), jnp.float32)
        outs = [None] * S
        order = range(S - 1, -1, -1) if reverse else range(S)
        for t in order:
            x = x_seq[:, t, :]
            r = jax.nn.sigmoid(jnp.dot(x, W_ir.T, precision=hp) + b_ir +
                               jnp.dot(h, W_hr.T, precision=hp) + b_hr)
            z = jax.nn.sigmoid(jnp.dot(x, W_iz.T, precision=hp) + b_iz +
                               jnp.dot(h, W_hz.T, precision=hp) + b_hz)
            n = jnp.tanh(jnp.dot(x, W_in.T, precision=hp) + b_in +
                         r * (jnp.dot(h, W_hn.T, precision=hp) + b_hn))
            h = (1.0 - z) * n + z * h
            outs[t] = h
        return jnp.stack(outs, axis=1)

    f = direction(params["weight_ih_l0"], params["weight_hh_l0"],
                  params["bias_ih_l0"], params["bias_hh_l0"], False)
    b = direction(params["weight_ih_l0_reverse"], params["weight_hh_l0_reverse"],
                  params["bias_ih_l0_reverse"], params["bias_hh_l0_reverse"], True)
    return f + b


if __name__ == "__main__":
    # batch=2, sentences=6, tokens/sentence=8, hidden=embedding=32, vocab=64.
    B, S, T, H, V = 2, 6, 8, 32, 64

    key = jax.random.PRNGKey(0)
    k_ids, k_emb, *k_w = jax.random.split(key, 10)

    token_ids = jax.random.randint(k_ids, (B, S, T), 0, V, dtype=jnp.int32)
    emb_table = 0.5 * jax.random.normal(k_emb, (V, H), dtype=jnp.float32)

    def xavier(k, shape):
        fan_out, fan_in = shape
        std = (2.0 / (fan_in + fan_out)) ** 0.5
        return std * jax.random.normal(k, shape, dtype=jnp.float32)

    bound = 1.0 / (H ** 0.5)
    params = {
        "weight_ih_l0": xavier(k_w[0], (3 * H, H)),
        "weight_hh_l0": xavier(k_w[1], (3 * H, H)),
        "bias_ih_l0": jax.random.uniform(k_w[2], (3 * H,), minval=-bound, maxval=bound),
        "bias_hh_l0": jax.random.uniform(k_w[3], (3 * H,), minval=-bound, maxval=bound),
        "weight_ih_l0_reverse": xavier(k_w[4], (3 * H, H)),
        "weight_hh_l0_reverse": xavier(k_w[5], (3 * H, H)),
        "bias_ih_l0_reverse": jax.random.uniform(k_w[6], (3 * H,), minval=-bound, maxval=bound),
        "bias_hh_l0_reverse": jax.random.uniform(k_w[7], (3 * H,), minval=-bound, maxval=bound),
    }

    out = input_module_forward(token_ids, emb_table, params)
    out = jax.block_until_ready(out)

    ref = _reference_forward(token_ids, emb_table, params)
    assert out.shape == (B, S, H), out.shape
    assert jnp.allclose(out, ref, atol=2e-4, rtol=2e-3), float(jnp.max(jnp.abs(out - ref)))

    print("KERNEL_OK")
</pallas_src>

<mosaic_0001>
module attributes {stable_mosaic.version = 11 : i64} {
  func.func @_input_module_kernel(%arg0: memref<384x1xi32, #tpu.memory_space<vmem>>, %arg1: memref<64x32xf32, #tpu.memory_space<vmem>>, %arg2: memref<8x32xf32, #tpu.memory_space<vmem>>, %arg3: memref<192x32xf32, #tpu.memory_space<vmem>>, %arg4: memref<1x192xf32, #tpu.memory_space<vmem>>, %arg5: memref<96x32xf32, #tpu.memory_space<vmem>>, %arg6: memref<96x32xf32, #tpu.memory_space<vmem>>, %arg7: memref<1x32xf32, #tpu.memory_space<vmem>>, %arg8: memref<1x32xf32, #tpu.memory_space<vmem>>, %arg9: memref<48x32xf32, #tpu.memory_space<vmem>>, %arg10: memref<48x192xf32, #tpu.memory_space<vmem>>, %arg11: memref<48x32xf32, #tpu.memory_space<vmem>>) attributes {dimension_semantics = [], scalar_prefetch = 0 : i64, scratch_operands = 2 : i64, tpu.core_type = #tpu.core_type<tc>} {
    %c0 = arith.constant 0 : index
    %c0_0 = arith.constant 0 : index
    %0 = vector.load %arg0[%c0, %c0_0] : memref<384x1xi32, #tpu.memory_space<vmem>>, vector<384x1xi32>
    %1 = tpu.iota {dimensions = array<i32: 1>} : vector<384x64xi32>
    %2 = vector.broadcast %0 : vector<384x1xi32> to vector<384x64xi32>
    %3 = arith.cmpi eq, %2, %1 : vector<384x64xi32>
    %4 = arith.extui %3 : vector<384x64xi1> to vector<384x64xi32>
    %5 = arith.sitofp %4 : vector<384x64xi32> to vector<384x64xf32>
    %c0_1 = arith.constant 0 : index
    %c0_2 = arith.constant 0 : index
    %6 = vector.load %arg1[%c0_1, %c0_2] : memref<64x32xf32, #tpu.memory_space<vmem>>, vector<64x32xf32>
    %cst = arith.constant dense<0.000000e+00> : vector<384x32xf32>
    %7 = tpu.matmul %5, %6, %cst {dimension_numbers = #tpu.dot_dimension_numbers<[1], [0], [0], [1], [0, 0, 1, 1], [], []>} : vector<384x64xf32>, vector<64x32xf32>, vector<384x32xf32> -> vector<384x32xf32>
    %c0_3 = arith.constant 0 : index
    %c0_4 = arith.constant 0 : index
    %8 = vector.load %arg2[%c0_3, %c0_4] : memref<8x32xf32, #tpu.memory_space<vmem>>, vector<8x32xf32>
    %cst_5 = arith.constant 0.000000e+00 : f32
    %9 = vector.broadcast %cst_5 : f32 to vector<48x32xf32>
    %10 = vector.extract_strided_slice %7 {offsets = [0, 0], sizes = [48, 32], strides = [1, 1]} : vector<384x32xf32> to vector<48x32xf32>
    %11 = vector.extract_strided_slice %8 {offsets = [0, 0], sizes = [1, 32], strides = [1, 1]} : vector<8x32xf32> to vector<1x32xf32>
    %12 = vector.broadcast %11 : vector<1x32xf32> to vector<48x32xf32>
    %13 = arith.mulf %10, %12 : vector<48x32xf32>
    %14 = arith.addf %9, %13 : vector<48x32xf32>
    %15 = vector.extract_strided_slice %7 {offsets = [48, 0], sizes = [48, 32], strides = [1, 1]} : vector<384x32xf32> to vector<48x32xf32>
    %16 = vector.extract_strided_slice %8 {offsets = [1, 0], sizes = [1, 32], strides = [1, 1]} : vector<8x32xf32> to vector<1x32xf32>
    %17 = vector.broadcast %16 : vector<1x32xf32> to vector<48x32xf32>
    %18 = arith.mulf %15, %17 : vector<48x32xf32>
    %19 = arith.addf %14, %18 : vector<48x32xf32>
    %20 = vector.extract_strided_slice %7 {offsets = [96, 0], sizes = [48, 32], strides = [1, 1]} : vector<384x32xf32> to vector<48x32xf32>
    %21 = vector.extract_strided_slice %8 {offsets = [2, 0], sizes = [1, 32], strides = [1, 1]} : vector<8x32xf32> to vector<1x32xf32>
    %22 = vector.broadcast %21 : vector<1x32xf32> to vector<48x32xf32>
    %23 = arith.mulf %20, %22 : vector<48x32xf32>
    %24 = arith.addf %19, %23 : vector<48x32xf32>
    %25 = vector.extract_strided_slice %7 {offsets = [144, 0], sizes = [48, 32], strides = [1, 1]} : vector<384x32xf32> to vector<48x32xf32>
    %26 = vector.extract_strided_slice %8 {offsets = [3, 0], sizes = [1, 32], strides = [1, 1]} : vector<8x32xf32> to vector<1x32xf32>
    %27 = vector.broadcast %26 : vector<1x32xf32> to vector<48x32xf32>
    %28 = arith.mulf %25, %27 : vector<48x32xf32>
    %29 = arith.addf %24, %28 : vector<48x32xf32>
    %30 = vector.extract_strided_slice %7 {offsets = [192, 0], sizes = [48, 32], strides = [1, 1]} : vector<384x32xf32> to vector<48x32xf32>
    %31 = vector.extract_strided_slice %8 {offsets = [4, 0], sizes = [1, 32], strides = [1, 1]} : vector<8x32xf32> to vector<1x32xf32>
    %32 = vector.broadcast %31 : vector<1x32xf32> to vector<48x32xf32>
    %33 = arith.mulf %30, %32 : vector<48x32xf32>
    %34 = arith.addf %29, %33 : vector<48x32xf32>
    %35 = vector.extract_strided_slice %7 {offsets = [240, 0], sizes = [48, 32], strides = [1, 1]} : vector<384x32xf32> to vector<48x32xf32>
    %36 = vector.extract_strided_slice %8 {offsets = [5, 0], sizes = [1, 32], strides = [1, 1]} : vector<8x32xf32> to vector<1x32xf32>
    %37 = vector.broadcast %36 : vector<1x32xf32> to vector<48x32xf32>
    %38 = arith.mulf %35, %37 : vector<48x32xf32>
    %39 = arith.addf %34, %38 : vector<48x32xf32>
    %40 = vector.extract_strided_slice %7 {offsets = [288, 0], sizes = [48, 32], strides = [1, 1]} : vector<384x32xf32> to vector<48x32xf32>
    %41 = vector.extract_strided_slice %8 {offsets = [6, 0], sizes = [1, 32], strides = [1, 1]} : vector<8x32xf32> to vector<1x32xf32>
    %42 = vector.broadcast %41 : vector<1x32xf32> to vector<48x32xf32>
    %43 = arith.mulf %40, %42 : vector<48x32xf32>
    %44 = arith.addf %39, %43 : vector<48x32xf32>
    %45 = vector.extract_strided_slice %7 {offsets = [336, 0], sizes = [48, 32], strides = [1, 1]} : vector<384x32xf32> to vector<48x32xf32>
    %46 = vector.extract_strided_slice %8 {offsets = [7, 0], sizes = [1, 32], strides = [1, 1]} : vector<8x32xf32> to vector<1x32xf32>
    %47 = vector.broadcast %46 : vector<1x32xf32> to vector<48x32xf32>
    %48 = arith.mulf %45, %47 : vector<48x32xf32>
    %49 = arith.addf %44, %48 : vector<48x32xf32>
    %c0_6 = arith.constant 0 : index
    %c0_7 = arith.constant 0 : index
    %50 = vector.load %arg3[%c0_6, %c0_7] : memref<192x32xf32, #tpu.memory_space<vmem>>, vector<192x32xf32>
    %cst_8 = arith.constant dense<0.000000e+00> : vector<48x192xf32>
    %51 = tpu.matmul %49, %50, %cst_8 {dimension_numbers = #tpu.dot_dimension_numbers<[1], [1], [0], [0], [0, 0, 1, 0], [], []>} : vector<48x32xf32>, vector<192x32xf32>, vector<48x192xf32> -> vector<48x192xf32>
    %c0_9 = arith.constant 0 : index
    %c0_10 = arith.constant 0 : index
    %52 = vector.load %arg4[%c0_9, %c0_10] : memref<1x192xf32, #tpu.memory_space<vmem>>, vector<1x192xf32>
    %53 = vector.broadcast %52 : vector<1x192xf32> to vector<48x192xf32>
    %54 = arith.addf %51, %53 : vector<48x192xf32>
    %c0_11 = arith.constant 0 : index
    %c0_12 = arith.constant 0 : index
    %55 = vector.load %arg10[%c0_11, %c0_12] : memref<48x192xf32, #tpu.memory_space<vmem>>, vector<48x192xf32>
    tpu.vector_store %arg10[%c0_11, %c0_12], %54 {strides = array<i32>} : memref<48x192xf32, #tpu.memory_space<vmem>>, vector<48x192xf32>,
    %c0_13 = arith.constant 0 : index
    %c0_14 = arith.constant 0 : index
    %56 = vector.load %arg5[%c0_13, %c0_14] : memref<96x32xf32, #tpu.memory_space<vmem>>, vector<96x32xf32>
    %c0_15 = arith.constant 0 : index
    %c0_16 = arith.constant 0 : index
    %57 = vector.load %arg6[%c0_15, %c0_16] : memref<96x32xf32, #tpu.memory_space<vmem>>, vector<96x32xf32>
    %c0_17 = arith.constant 0 : index
    %c0_18 = arith.constant 0 : index
    %58 = vector.load %arg7[%c0_17, %c0_18] : memref<1x32xf32, #tpu.memory_space<vmem>>, vector<1x32xf32>
    %c0_19 = arith.constant 0 : index
    %c0_20 = arith.constant 0 : index
    %59 = vector.load %arg8[%c0_19, %c0_20] : memref<1x32xf32, #tpu.memory_space<vmem>>, vector<1x32xf32>
    %cst_21 = arith.constant 0.000000e+00 : f32
    %60 = vector.broadcast %cst_21 : f32 to vector<8x32xf32>
    %c0_i32 = arith.constant 0 : i32
    %c8_i32 = arith.constant 8 : i32
    %61 = arith.muli %c0_i32, %c8_i32 : i32
    %62 = tpu.assume_multiple %61, 8 : i32
    %c5_i32 = arith.constant 5 : i32
    %63 = arith.subi %c5_i32, %c0_i32 : i32
    %c8_i32_22 = arith.constant 8 : i32
    %64 = arith.muli %63, %c8_i32_22 : i32
    %65 = tpu.assume_multiple %64, 8 : i32
    %66 = arith.index_cast %62 : i32 to index
    %c0_23 = arith.constant 0 : index
    %67 = vector.load %arg10[%66, %c0_23] : memref<48x192xf32, #tpu.memory_space<vmem>>, vector<8x192xf32>
    %68 = arith.index_cast %65 : i32 to index
    %c0_24 = arith.constant 0 : index
    %69 = vector.load %arg10[%68, %c0_24] : memref<48x192xf32, #tpu.memory_space<vmem>>, vector<8x192xf32>
    %cst_25 = arith.constant dense<0.000000e+00> : vector<8x96xf32>
    %70 = tpu.matmul %60, %56, %cst_25 {dimension_numbers = #tpu.dot_dimension_numbers<[1], [1], [0], [0], [0, 0, 1, 0], [], []>} : vector<8x32xf32>, vector<96x32xf32>, vector<8x96xf32> -> vector<8x96xf32>
    %cst_26 = arith.constant dense<0.000000e+00> : vector<8x96xf32>
    %71 = tpu.matmul %60, %57, %cst_26 {dimension_numbers = #tpu.dot_dimension_numbers<[1], [1], [0], [0], [0, 0, 1, 0], [], []>} : vector<8x32xf32>, vector<96x32xf32>, vector<8x96xf32> -> vector<8x96xf32>
    %72 = vector.extract_strided_slice %67 {offsets = [0, 0], sizes = [8, 96], strides = [1, 1]} : vector<8x192xf32> to vector<8x96xf32>
    %73 = vector.extract_strided_slice %72 {offsets = [0, 0], sizes = [8, 32], strides = [1, 1]} : vector<8x96xf32> to vector<8x32xf32>
    %74 = vector.extract_strided_slice %70 {offsets = [0, 0], sizes = [8, 32], strides = [1, 1]} : vector<8x96xf32> to vector<8x32xf32>
    %75 = arith.addf %73, %74 : vector<8x32xf32>
    %76 = arith.negf %75 : vector<8x32xf32>
    %77 = math.exp %76 : vector<8x32xf32>
    %cst_27 = arith.constant 1.000000e+00 : f32
    %78 = vector.broadcast %cst_27 : f32 to vector<8x32xf32>
    %79 = arith.addf %78, %77 : vector<8x32xf32>
    %80 = arith.divf %78, %79 : vector<8x32xf32>
    %81 = vector.extract_strided_slice %72 {offsets = [0, 32], sizes = [8, 32], strides = [1, 1]} : vector<8x96xf32> to vector<8x32xf32>
    %82 = vector.extract_strided_slice %70 {offsets = [0, 32], sizes = [8, 32], strides = [1, 1]} : vector<8x96xf32> to vector<8x32xf32>
    %83 = arith.addf %81, %82 : vector<8x32xf32>
    %84 = arith.negf %83 : vector<8x32xf32>
    %85 = math.exp %84 : vector<8x32xf32>
    %cst_28 = arith.constant 1.000000e+00 : f32
    %86 = vector.broadcast %cst_28 : f32 to vector<8x32xf32>
    %87 = arith.addf %86, %85 : vector<8x32xf32>
    %88 = arith.divf %86, %87 : vector<8x32xf32>
    %89 = vector.extract_strided_slice %72 {offsets = [0, 64], sizes = [8, 32], strides = [1, 1]} : vector<8x96xf32> to vector<8x32xf32>
    %90 = vector.extract_strided_slice %70 {offsets = [0, 64], sizes = [8, 32], strides = [1, 1]} : vector<8x96xf32> to vector<8x32xf32>
    %91 = vector.broadcast %58 : vector<1x32xf32> to vector<8x32xf32>
    %92 = arith.addf %90, %91 : vector<8x32xf32>
    %93 = arith.mulf %80, %92 : vector<8x32xf32>
    %94 = arith.addf %89, %93 : vector<8x32xf32>
    %95 = math.tanh %94 : vector<8x32xf32>
    %cst_29 = arith.constant 1.000000e+00 : f32
    %96 = vector.broadcast %cst_29 : f32 to vector<8x32xf32>
    %97 = arith.subf %96, %88 : vector<8x32xf32>
    %98 = arith.mulf %97, %95 : vector<8x32xf32>
    %99 = arith.mulf %88, %60 : vector<8x32xf32>
    %100 = arith.addf %98, %99 : vector<8x32xf32>
    %101 = vector.extract_strided_slice %69 {offsets = [0, 96], sizes = [8, 96], strides = [1, 1]} : vector<8x192xf32> to vector<8x96xf32>
    %102 = vector.extract_strided_slice %101 {offsets = [0, 0], sizes = [8, 32], strides = [1, 1]} : vector<8x96xf32> to vector<8x32xf32>
    %103 = vector.extract_strided_slice %71 {offsets = [0, 0], sizes = [8, 32], strides = [1, 1]} : vector<8x96xf32> to vector<8x32xf32>
    %104 = arith.addf %102, %103 : vector<8x32xf32>
    %105 = arith.negf %104 : vector<8x32xf32>
    %106 = math.exp %105 : vector<8x32xf32>
    %cst_30 = arith.constant 1.000000e+00 : f32
    %107 = vector.broadcast %cst_30 : f32 to vector<8x32xf32>
    %108 = arith.addf %107, %106 : vector<8x32xf32>
    %109 = arith.divf %107, %108 : vector<8x32xf32>
    %110 = vector.extract_strided_slice %101 {offsets = [0, 32], sizes = [8, 32], strides = [1, 1]} : vector<8x96xf32> to vector<8x32xf32>
    %111 = vector.extract_strided_slice %71 {offsets = [0, 32], sizes = [8, 32], strides = [1, 1]} : vector<8x96xf32> to vector<8x32xf32>
    %112 = arith.addf %110, %111 : vector<8x32xf32>
    %113 = arith.negf %112 : vector<8x32xf32>
    %114 = math.exp %113 : vector<8x32xf32>
    %cst_31 = arith.constant 1.000000e+00 : f32
    %115 = vector.broadcast %cst_31 : f32 to vector<8x32xf32>
    %116 = arith.addf %115, %114 : vector<8x32xf32>
    %117 = arith.divf %115, %116 : vector<8x32xf32>
    %118 = vector.extract_strided_slice %101 {offsets = [0, 64], sizes = [8, 32], strides = [1, 1]} : vector<8x96xf32> to vector<8x32xf32>
    %119 = vector.extract_strided_slice %71 {offsets = [0, 64], sizes = [8, 32], strides = [1, 1]} : vector<8x96xf32> to vector<8x32xf32>
    %120 = vector.broadcast %59 : vector<1x32xf32> to vector<8x32xf32>
    %121 = arith.addf %119, %120 : vector<8x32xf32>
    %122 = arith.mulf %109, %121 : vector<8x32xf32>
    %123 = arith.addf %118, %122 : vector<8x32xf32>
    %124 = math.tanh %123 : vector<8x32xf32>
    %cst_32 = arith.constant 1.000000e+00 : f32
    %125 = vector.broadcast %cst_32 : f32 to vector<8x32xf32>
    %126 = arith.subf %125, %117 : vector<8x32xf32>
    %127 = arith.mulf %126, %124 : vector<8x32xf32>
    %128 = arith.mulf %117, %60 : vector<8x32xf32>
    %129 = arith.addf %127, %128 : vector<8x32xf32>
    %130 = arith.index_cast %62 : i32 to index
    %c0_33 = arith.constant 0 : index
    %131 = vector.load %arg9[%130, %c0_33] : memref<48x32xf32, #tpu.memory_space<vmem>>, vector<8x32xf32>
    tpu.vector_store %arg9[%130, %c0_33], %100 {strides = array<i32>} : memref<48x32xf32, #tpu.memory_space<vmem>>, vector<8x32xf32>,
    %132 = arith.index_cast %65 : i32 to index
    %c0_34 = arith.constant 0 : index
    %133 = vector.load %arg11[%132, %c0_34] : memref<48x32xf32, #tpu.memory_space<vmem>>, vector<8x32xf32>
    tpu.vector_store %arg11[%132, %c0_34], %129 {strides = array<i32>} : memref<48x32xf32, #tpu.memory_space<vmem>>, vector<8x32xf32>,
    %c1_i32 = arith.constant 1 : i32
    %c8_i32_35 = arith.constant 8 : i32
    %134 = arith.muli %c1_i32, %c8_i32_35 : i32
    %135 = tpu.assume_multiple %134, 8 : i32
    %c5_i32_36 = arith.constant 5 : i32
    %136 = arith.subi %c5_i32_36, %c1_i32 : i32
    %c8_i32_37 = arith.constant 8 : i32
    %137 = arith.muli %136, %c8_i32_37 : i32
    %138 = tpu.assume_multiple %137, 8 : i32
    %139 = arith.index_cast %135 : i32 to index
    %c0_38 = arith.constant 0 : index
    %140 = vector.load %arg10[%139, %c0_38] : memref<48x192xf32, #tpu.memory_space<vmem>>, vector<8x192xf32>
    %141 = arith.index_cast %138 : i32 to index
    %c0_39 = arith.constant 0 : index
    %142 = vector.load %arg10[%141, %c0_39] : memref<48x192xf32, #tpu.memory_space<vmem>>, vector<8x192xf32>
    %cst_40 = arith.constant dense<0.000000e+00> : vector<8x96xf32>
    %143 = tpu.matmul %100, %56, %cst_40 {dimension_numbers = #tpu.dot_dimension_numbers<[1], [1], [0], [0], [0, 0, 1, 0], [], []>} : vector<8x32xf32>, vector<96x32xf32>, vector<8x96xf32> -> vector<8x96xf32>
    %cst_41 = arith.constant dense<0.000000e+00> : vector<8x96xf32>
    %144 = tpu.matmul %129, %57, %cst_41 {dimension_numbers = #tpu.dot_dimension_numbers<[1], [1], [0], [0], [0, 0, 1, 0], [], []>} : vector<8x32xf32>, vector<96x32xf32>, vector<8x96xf32> -> vector<8x96xf32>
    %145 = vector.extract_strided_slice %140 {offsets = [0, 0], sizes = [8, 96], strides = [1, 1]} : vector<8x192xf32> to vector<8x96xf32>
    %146 = vector.extract_strided_slice %145 {offsets = [0, 0], sizes = [8, 32], strides = [1, 1]} : vector<8x96xf32> to vector<8x32xf32>
    %147 = vector.extract_strided_slice %143 {offsets = [0, 0], sizes = [8, 32], strides = [1, 1]} : vector<8x96xf32> to vector<8x32xf32>
    %148 = arith.addf %146, %147 : vector<8x32xf32>
    %149 = arith.negf %148 : vector<8x32xf32>
    %150 = math.exp %149 : vector<8x32xf32>
    %cst_42 = arith.constant 1.000000e+00 : f32
    %151 = vector.broadcast %cst_42 : f32 to vector<8x32xf32>
    %152 = arith.addf %151, %150 : vector<8x32xf32>
    %153 = arith.divf %151, %152 : vector<8x32xf32>
    %154 = vector.extract_strided_slice %145 {offsets = [0, 32], sizes = [8, 32], strides = [1, 1]} : vector<8x96xf32> to vector<8x32xf32>
    %155 = vector.extract_strided_slice %143 {offsets = [0, 32], sizes = [8, 32], strides = [1, 1]} : vector<8x96xf32> to vector<8x32xf32>
    %156 = arith.addf %154, %155 : vector<8x32xf32>
    %157 = arith.negf %156 : vector<8x32xf32>
    %158 = math.exp %157 : vector<8x32xf32>
    %cst_43 = arith.constant 1.000000e+00 : f32
    %159 = vector.broadcast %cst_43 : f32 to vector<8x32xf32>
    %160 = arith.addf %159, %158 : vector<8x32xf32>
    %161 = arith.divf %159, %160 : vector<8x32xf32>
    %162 = vector.extract_strided_slice %145 {offsets = [0, 64], sizes = [8, 32], strides = [1, 1]} : vector<8x96xf32> to vector<8x32xf32>
    %163 = vector.extract_strided_slice %143 {offsets = [0, 64], sizes = [8, 32], strides = [1, 1]} : vector<8x96xf32> to vector<8x32xf32>
    %164 = vector.broadcast %58 : vector<1x32xf32> to vector<8x32xf32>
    %165 = arith.addf %163, %164 : vector<8x32xf32>
    %166 = arith.mulf %153, %165 : vector<8x32xf32>
    %167 = arith.addf %162, %166 : vector<8x32xf32>
    %168 = math.tanh %167 : vector<8x32xf32>
    %cst_44 = arith.constant 1.000000e+00 : f32
    %169 = vector.broadcast %cst_44 : f32 to vector<8x32xf32>
    %170 = arith.subf %169, %161 : vector<8x32xf32>
    %171 = arith.mulf %170, %168 : vector<8x32xf32>
    %172 = arith.mulf %161, %100 : vector<8x32xf32>
    %173 = arith.addf %171, %172 : vector<8x32xf32>
    %174 = vector.extract_strided_slice %142 {offsets = [0, 96], sizes = [8, 96], strides = [1, 1]} : vector<8x192xf32> to vector<8x96xf32>
    %175 = vector.extract_strided_slice %174 {offsets = [0, 0], sizes = [8, 32], strides = [1, 1]} : vector<8x96xf32> to vector<8x32xf32>
    %176 = vector.extract_strided_slice %144 {offsets = [0, 0], sizes = [8, 32], strides = [1, 1]} : vector<8x96xf32> to vector<8x32xf32>
    %177 = arith.addf %175, %176 : vector<8x32xf32>
    %178 = arith.negf %177 : vector<8x32xf32>
    %179 = math.exp %178 : vector<8x32xf32>
    %cst_45 = arith.constant 1.000000e+00 : f32
    %180 = vector.broadcast %cst_45 : f32 to vector<8x32xf32>
    %181 = arith.addf %180, %179 : vector<8x32xf32>
    %182 = arith.divf %180, %181 : vector<8x32xf32>
    %183 = vector.extract_strided_slice %174 {offsets = [0, 32], sizes = [8, 32], strides = [1, 1]} : vector<8x96xf32> to vector<8x32xf32>
    %184 = vector.extract_strided_slice %144 {offsets = [0, 32], sizes = [8, 32], strides = [1, 1]} : vector<8x96xf32> to vector<8x32xf32>
    %185 = arith.addf %183, %184 : vector<8x32xf32>
    %186 = arith.negf %185 : vector<8x32xf32>
    %187 = math.exp %186 : vector<8x32xf32>
    %cst_46 = arith.constant 1.000000e+00 : f32
    %188 = vector.broadcast %cst_46 : f32 to vector<8x32xf32>
    %189 = arith.addf %188, %187 : vector<8x32xf32>
    %190 = arith.divf %188, %189 : vector<8x32xf32>
    %191 = vector.extract_strided_slice %174 {offsets = [0, 64], sizes = [8, 32], strides = [1, 1]} : vector<8x96xf32> to vector<8x32xf32>
    %192 = vector.extract_strided_slice %144 {offsets = [0, 64], sizes = [8, 32], strides = [1, 1]} : vector<8x96xf32> to vector<8x32xf32>
    %193 = vector.broadcast %59 : vector<1x32xf32> to vector<8x32xf32>
    %194 = arith.addf %192, %193 : vector<8x32xf32>
    %195 = arith.mulf %182, %194 : vector<8x32xf32>
    %196 = arith.addf %191, %195 : vector<8x32xf32>
    %197 = math.tanh %196 : vector<8x32xf32>
    %cst_47 = arith.constant 1.000000e+00 : f32
    %198 = vector.broadcast %cst_47 : f32 to vector<8x32xf32>
    %199 = arith.subf %198, %190 : vector<8x32xf32>
    %200 = arith.mulf %199, %197 : vector<8x32xf32>
    %201 = arith.mulf %190, %129 : vector<8x32xf32>
    %202 = arith.addf %200, %201 : vector<8x32xf32>
    %203 = arith.index_cast %135 : i32 to index
    %c0_48 = arith.constant 0 : index
    %204 = vector.load %arg9[%203, %c0_48] : memref<48x32xf32, #tpu.memory_space<vmem>>, vector<8x32xf32>
    tpu.vector_store %arg9[%203, %c0_48], %173 {strides = array<i32>} : memref<48x32xf32, #tpu.memory_space<vmem>>, vector<8x32xf32>,
    %205 = arith.index_cast %138 : i32 to index
    %c0_49 = arith.constant 0 : index
    %206 = vector.load %arg11[%205, %c0_49] : memref<48x32xf32, #tpu.memory_space<vmem>>, vector<8x32xf32>
    tpu.vector_store %arg11[%205, %c0_49], %202 {strides = array<i32>} : memref<48x32xf32, #tpu.memory_space<vmem>>, vector<8x32xf32>,
    %c2_i32 = arith.constant 2 : i32
    %c8_i32_50 = arith.constant 8 : i32
    %207 = arith.muli %c2_i32, %c8_i32_50 : i32
    %208 = tpu.assume_multiple %207, 8 : i32
    %c5_i32_51 = arith.constant 5 : i32
    %209 = arith.subi %c5_i32_51, %c2_i32 : i32
    %c8_i32_52 = arith.constant 8 : i32
    %210 = arith.muli %209, %c8_i32_52 : i32
    %211 = tpu.assume_multiple %210, 8 : i32
    %212 = arith.index_cast %208 : i32 to index
    %c0_53 = arith.constant 0 : index
    %213 = vector.load %arg10[%212, %c0_53] : memref<48x192xf32, #tpu.memory_space<vmem>>, vector<8x192xf32>
    %214 = arith.index_cast %211 : i32 to index
    %c0_54 = arith.constant 0 : index
    %215 = vector.load %arg10[%214, %c0_54] : memref<48x192xf32, #tpu.memory_space<vmem>>, vector<8x192xf32>
    %cst_55 = arith.constant dense<0.000000e+00> : vector<8x96xf32>
    %216 = tpu.matmul %173, %56, %cst_55 {dimension_numbers = #tpu.dot_dimension_numbers<[1], [1], [0], [0], [0, 0, 1, 0], [], []>} : vector<8x32xf32>, vector<96x32xf32>, vector<8x96xf32> -> vector<8x96xf32>
    %cst_56 = arith.constant dense<0.000000e+00> : vector<8x96xf32>
    %217 = tpu.matmul %202, %57, %cst_56 {dimension_numbers = #tpu.dot_dimension_numbers<[1], [1], [0], [0], [0, 0, 1, 0], [], []>} : vector<8x32xf32>, vector<96x32xf32>, vector<8x96xf32> -> vector<8x96xf32>
    %218 = vector.extract_strided_slice %213 {offsets = [0, 0], sizes = [8, 96], strides = [1, 1]} : vector<8x192xf32> to vector<8x96xf32>
    %219 = vector.extract_strided_slice %218 {offsets = [0, 0], sizes = [8, 32], strides = [1, 1]} : vector<8x96xf32> to vector<8x32xf32>
    %220 = vector.extract_strided_slice %216 {offsets = [0, 0], sizes = [8, 32], strides = [1, 1]} : vector<8x96xf32> to vector<8x32xf32>
    %221 = arith.addf %219, %220 : vector<8x32xf32>
    %222 = arith.negf %221 : vector<8x32xf32>
    %223 = math.exp %222 : vector<8x32xf32>
    %cst_57 = arith.constant 1.000000e+00 : f32
    %224 = vector.broadcast %cst_57 : f32 to vector<8x32xf32>
    %225 = arith.addf %224, %223 : vector<8x32xf32>
    %226 = arith.divf %224, %225 : vector<8x32xf32>
    %227 = vector.extract_strided_slice %218 {offsets = [0, 32], sizes = [8, 32], strides = [1, 1]} : vector<8x96xf32> to vector<8x32xf32>
    %228 = vector.extract_strided_slice %216 {offsets = [0, 32], sizes = [8, 32], strides = [1, 1]} : vector<8x96xf32> to vector<8x32xf32>
    %229 = arith.addf %227, %228 : vector<8x32xf32>
    %230 = arith.negf %229 : vector<8x32xf32>
    %231 = math.exp %230 : vector<8x32xf32>
    %cst_58 = arith.constant 1.000000e+00 : f32
    %232 = vector.broadcast %cst_58 : f32 to vector<8x32xf32>
    %233 = arith.addf %232, %231 : vector<8x32xf32>
    %234 = arith.divf %232, %233 : vector<8x32xf32>
    %235 = vector.extract_strided_slice %218 {offsets = [0, 64], sizes = [8, 32], strides = [1, 1]} : vector<8x96xf32> to vector<8x32xf32>
    %236 = vector.extract_strided_slice %216 {offsets = [0, 64], sizes = [8, 32], strides = [1, 1]} : vector<8x96xf32> to vector<8x32xf32>
    %237 = vector.broadcast %58 : vector<1x32xf32> to vector<8x32xf32>
    %238 = arith.addf %236, %237 : vector<8x32xf32>
    %239 = arith.mulf %226, %238 : vector<8x32xf32>
    %240 = arith.addf %235, %239 : vector<8x32xf32>
    %241 = math.tanh %240 : vector<8x32xf32>
    %cst_59 = arith.constant 1.000000e+00 : f32
    %242 = vector.broadcast %cst_59 : f32 to vector<8x32xf32>
    %243 = arith.subf %242, %234 : vector<8x32xf32>
    %244 = arith.mulf %243, %241 : vector<8x32xf32>
    %245 = arith.mulf %234, %173 : vector<8x32xf32>
    %246 = arith.addf %244, %245 : vector<8x32xf32>
    %247 = vector.extract_strided_slice %215 {offsets = [0, 96], sizes = [8, 96], strides = [1, 1]} : vector<8x192xf32> to vector<8x96xf32>
    %248 = vector.extract_strided_slice %247 {offsets = [0, 0], sizes = [8, 32], strides = [1, 1]} : vector<8x96xf32> to vector<8x32xf32>
    %249 = vector.extract_strided_slice %217 {offsets = [0, 0], sizes = [8, 32], strides = [1, 1]} : vector<8x96xf32> to vector<8x32xf32>
    %250 = arith.addf %248, %249 : vector<8x32xf32>
    %251 = arith.negf %250 : vector<8x32xf32>
    %252 = math.exp %251 : vector<8x32xf32>
    %cst_60 = arith.constant 1.000000e+00 : f32
    %253 = vector.broadcast %cst_60 : f32 to vector<8x32xf32>
    %254 = arith.addf %253, %252 : vector<8x32xf32>
    %255 = arith.divf %253, %254 : vector<8x32xf32>
    %256 = vector.extract_strided_slice %247 {offsets = [0, 32], sizes = [8, 32], strides = [1, 1]} : vector<8x96xf32> to vector<8x32xf32>
    %257 = vector.extract_strided_slice %217 {offsets = [0, 32], sizes = [8, 32], strides = [1, 1]} : vector<8x96xf32> to vector<8x32xf32>
    %258 = arith.addf %256, %257 : vector<8x32xf32>
    %259 = arith.negf %258 : vector<8x32xf32>
    %260 = math.exp %259 : vector<8x32xf32>
    %cst_61 = arith.constant 1.000000e+00 : f32
    %261 = vector.broadcast %cst_61 : f32 to vector<8x32xf32>
    %262 = arith.addf %261, %260 : vector<8x32xf32>
    %263 = arith.divf %261, %262 : vector<8x32xf32>
    %264 = vector.extract_strided_slice %247 {offsets = [0, 64], sizes = [8, 32], strides = [1, 1]} : vector<8x96xf32> to vector<8x32xf32>
    %265 = vector.extract_strided_slice %217 {offsets = [0, 64], sizes = [8, 32], strides = [1, 1]} : vector<8x96xf32> to vector<8x32xf32>
    %266 = vector.broadcast %59 : vector<1x32xf32> to vector<8x32xf32>
    %267 = arith.addf %265, %266 : vector<8x32xf32>
    %268 = arith.mulf %255, %267 : vector<8x32xf32>
    %269 = arith.addf %264, %268 : vector<8x32xf32>
    %270 = math.tanh %269 : vector<8x32xf32>
    %cst_62 = arith.constant 1.000000e+00 : f32
    %271 = vector.broadcast %cst_62 : f32 to vector<8x32xf32>
    %272 = arith.subf %271, %263 : vector<8x32xf32>
    %273 = arith.mulf %272, %270 : vector<8x32xf32>
    %274 = arith.mulf %263, %202 : vector<8x32xf32>
    %275 = arith.addf %273, %274 : vector<8x32xf32>
    %276 = arith.index_cast %208 : i32 to index
    %c0_63 = arith.constant 0 : index
    %277 = vector.load %arg9[%276, %c0_63] : memref<48x32xf32, #tpu.memory_space<vmem>>, vector<8x32xf32>
    tpu.vector_store %arg9[%276, %c0_63], %246 {strides = array<i32>} : memref<48x32xf32, #tpu.memory_space<vmem>>, vector<8x32xf32>,
    %278 = arith.index_cast %211 : i32 to index
    %c0_64 = arith.constant 0 : index
    %279 = vector.load %arg11[%278, %c0_64] : memref<48x32xf32, #tpu.memory_space<vmem>>, vector<8x32xf32>
    tpu.vector_store %arg11[%278, %c0_64], %275 {strides = array<i32>} : memref<48x32xf32, #tpu.memory_space<vmem>>, vector<8x32xf32>,
    %c3_i32 = arith.constant 3 : i32
    %c8_i32_65 = arith.constant 8 : i32
    %280 = arith.muli %c3_i32, %c8_i32_65 : i32
    %281 = tpu.assume_multiple %280, 8 : i32
    %c5_i32_66 = arith.constant 5 : i32
    %282 = arith.subi %c5_i32_66, %c3_i32 : i32
    %c8_i32_67 = arith.constant 8 : i32
    %283 = arith.muli %282, %c8_i32_67 : i32
    %284 = tpu.assume_multiple %283, 8 : i32
    %285 = arith.index_cast %281 : i32 to index
    %c0_68 = arith.constant 0 : index
    %286 = vector.load %arg10[%285, %c0_68] : memref<48x192xf32, #tpu.memory_space<vmem>>, vector<8x192xf32>
    %287 = arith.index_cast %284 : i32 to index
    %c0_69 = arith.constant 0 : index
    %288 = vector.load %arg10[%287, %c0_69] : memref<48x192xf32, #tpu.memory_space<vmem>>, vector<8x192xf32>
    %cst_70 = arith.constant dense<0.000000e+00> : vector<8x96xf32>
    %289 = tpu.matmul %246, %56, %cst_70 {dimension_numbers = #tpu.dot_dimension_numbers<[1], [1], [0], [0], [0, 0, 1, 0], [], []>} : vector<8x32xf32>, vector<96x32xf32>, vector<8x96xf32> -> vector<8x96xf32>
    %cst_71 = arith.constant dense<0.000000e+00> : vector<8x96xf32>
    %290 = tpu.matmul %275, %57, %cst_71 {dimension_numbers = #tpu.dot_dimension_numbers<[1], [1], [0], [0], [0, 0, 1, 0], [], []>} : vector<8x32xf32>, vector<96x32xf32>, vector<8x96xf32> -> vector<8x96xf32>
    %291 = vector.extract_strided_slice %286 {offsets = [0, 0], sizes = [8, 96], strides = [1, 1]} : vector<8x192xf32> to vector<8x96xf32>
    %292 = vector.extract_strided_slice %291 {offsets = [0, 0], sizes = [8, 32], strides = [1, 1]} : vector<8x96xf32> to vector<8x32xf32>
    %293 = vector.extract_strided_slice %289 {offsets = [0, 0], sizes = [8, 32], strides = [1, 1]} : vector<8x96xf32> to vector<8x32xf32>
    %294 = arith.addf %292, %293 : vector<8x32xf32>
    %295 = arith.negf %294 : vector<8x32xf32>
    %296 = math.exp %295 : vector<8x32xf32>
    %cst_72 = arith.constant 1.000000e+00 : f32
    %297 = vector.broadcast %cst_72 : f32 to vector<8x32xf32>
    %298 = arith.addf %297, %296 : vector<8x32xf32>
    %299 = arith.divf %297, %298 : vector<8x32xf32>
    %300 = vector.extract_strided_slice %291 {offsets = [0, 32], sizes = [8, 32], strides = [1, 1]} : vector<8x96xf32> to vector<8x32xf32>
    %301 = vector.extract_strided_slice %289 {offsets = [0, 32], sizes = [8, 32], strides = [1, 1]} : vector<8x96xf32> to vector<8x32xf32>
    %302 = arith.addf %300, %301 : vector<8x32xf32>
    %303 = arith.negf %302 : vector<8x32xf32>
    %304 = math.exp %303 : vector<8x32xf32>
    %cst_73 = arith.constant 1.000000e+00 : f32
    %305 = vector.broadcast %cst_73 : f32 to vector<8x32xf32>
    %306 = arith.addf %305, %304 : vector<8x32xf32>
    %307 = arith.divf %305, %306 : vector<8x32xf32>
    %308 = vector.extract_strided_slice %291 {offsets = [0, 64], sizes = [8, 32], strides = [1, 1]} : vector<8x96xf32> to vector<8x32xf32>
    %309 = vector.extract_strided_slice %289 {offsets = [0, 64], sizes = [8, 32], strides = [1, 1]} : vector<8x96xf32> to vector<8x32xf32>
    %310 = vector.broadcast %58 : vector<1x32xf32> to vector<8x32xf32>
    %311 = arith.addf %309, %310 : vector<8x32xf32>
    %312 = arith.mulf %299, %311 : vector<8x32xf32>
    %313 = arith.addf %308, %312 : vector<8x32xf32>
    %314 = math.tanh %313 : vector<8x32xf32>
    %cst_74 = arith.constant 1.000000e+00 : f32
    %315 = vector.broadcast %cst_74 : f32 to vector<8x32xf32>
    %316 = arith.subf %315, %307 : vector<8x32xf32>
    %317 = arith.mulf %316, %314 : vector<8x32xf32>
    %318 = arith.mulf %307, %246 : vector<8x32xf32>
    %319 = arith.addf %317, %318 : vector<8x32xf32>
    %320 = vector.extract_strided_slice %288 {offsets = [0, 96], sizes = [8, 96], strides = [1, 1]} : vector<8x192xf32> to vector<8x96xf32>
    %321 = vector.extract_strided_slice %320 {offsets = [0, 0], sizes = [8, 32], strides = [1, 1]} : vector<8x96xf32> to vector<8x32xf32>
    %322 = vector.extract_strided_slice %290 {offsets = [0, 0], sizes = [8, 32], strides = [1, 1]} : vector<8x96xf32> to vector<8x32xf32>
    %323 = arith.addf %321, %322 : vector<8x32xf32>
    %324 = arith.negf %323 : vector<8x32xf32>
    %325 = math.exp %324 : vector<8x32xf32>
    %cst_75 = arith.constant 1.000000e+00 : f32
    %326 = vector.broadcast %cst_75 : f32 to vector<8x32xf32>
    %327 = arith.addf %326, %325 : vector<8x32xf32>
    %328 = arith.divf %326, %327 : vector<8x32xf32>
    %329 = vector.extract_strided_slice %320 {offsets = [0, 32], sizes = [8, 32], strides = [1, 1]} : vector<8x96xf32> to vector<8x32xf32>
    %330 = vector.extract_strided_slice %290 {offsets = [0, 32], sizes = [8, 32], strides = [1, 1]} : vector<8x96xf32> to vector<8x32xf32>
    %331 = arith.addf %329, %330 : vector<8x32xf32>
    %332 = arith.negf %331 : vector<8x32xf32>
    %333 = math.exp %332 : vector<8x32xf32>
    %cst_76 = arith.constant 1.000000e+00 : f32
    %334 = vector.broadcast %cst_76 : f32 to vector<8x32xf32>
    %335 = arith.addf %334, %333 : vector<8x32xf32>
    %336 = arith.divf %334, %335 : vector<8x32xf32>
    %337 = vector.extract_strided_slice %320 {offsets = [0, 64], sizes = [8, 32], strides = [1, 1]} : vector<8x96xf32> to vector<8x32xf32>
    %338 = vector.extract_strided_slice %290 {offsets = [0, 64], sizes = [8, 32], strides = [1, 1]} : vector<8x96xf32> to vector<8x32xf32>
    %339 = vector.broadcast %59 : vector<1x32xf32> to vector<8x32xf32>
    %340 = arith.addf %338, %339 : vector<8x32xf32>
    %341 = arith.mulf %328, %340 : vector<8x32xf32>
    %342 = arith.addf %337, %341 : vector<8x32xf32>
    %343 = math.tanh %342 : vector<8x32xf32>
    %cst_77 = arith.constant 1.000000e+00 : f32
    %344 = vector.broadcast %cst_77 : f32 to vector<8x32xf32>
    %345 = arith.subf %344, %336 : vector<8x32xf32>
    %346 = arith.mulf %345, %343 : vector<8x32xf32>
    %347 = arith.mulf %336, %275 : vector<8x32xf32>
    %348 = arith.addf %346, %347 : vector<8x32xf32>
    %349 = arith.index_cast %281 : i32 to index
    %c0_78 = arith.constant 0 : index
    %350 = vector.load %arg9[%349, %c0_78] : memref<48x32xf32, #tpu.memory_space<vmem>>, vector<8x32xf32>
    tpu.vector_store %arg9[%349, %c0_78], %319 {strides = array<i32>} : memref<48x32xf32, #tpu.memory_space<vmem>>, vector<8x32xf32>,
    %351 = arith.index_cast %284 : i32 to index
    %c0_79 = arith.constant 0 : index
    %352 = vector.load %arg11[%351, %c0_79] : memref<48x32xf32, #tpu.memory_space<vmem>>, vector<8x32xf32>
    tpu.vector_store %arg11[%351, %c0_79], %348 {strides = array<i32>} : memref<48x32xf32, #tpu.memory_space<vmem>>, vector<8x32xf32>,
    %c4_i32 = arith.constant 4 : i32
    %c8_i32_80 = arith.constant 8 : i32
    %353 = arith.muli %c4_i32, %c8_i32_80 : i32
    %354 = tpu.assume_multiple %353, 8 : i32
    %c5_i32_81 = arith.constant 5 : i32
    %355 = arith.subi %c5_i32_81, %c4_i32 : i32
    %c8_i32_82 = arith.constant 8 : i32
    %356 = arith.muli %355, %c8_i32_82 : i32
    %357 = tpu.assume_multiple %356, 8 : i32
    %358 = arith.index_cast %354 : i32 to index
    %c0_83 = arith.constant 0 : index
    %359 = vector.load %arg10[%358, %c0_83] : memref<48x192xf32, #tpu.memory_space<vmem>>, vector<8x192xf32>
    %360 = arith.index_cast %357 : i32 to index
    %c0_84 = arith.constant 0 : index
    %361 = vector.load %arg10[%360, %c0_84] : memref<48x192xf32, #tpu.memory_space<vmem>>, vector<8x192xf32>
    %cst_85 = arith.constant dense<0.000000e+00> : vector<8x96xf32>
    %362 = tpu.matmul %319, %56, %cst_85 {dimension_numbers = #tpu.dot_dimension_numbers<[1], [1], [0], [0], [0, 0, 1, 0], [], []>} : vector<8x32xf32>, vector<96x32xf32>, vector<8x96xf32> -> vector<8x96xf32>
    %cst_86 = arith.constant dense<0.000000e+00> : vector<8x96xf32>
    %363 = tpu.matmul %348, %57, %cst_86 {dimension_numbers = #tpu.dot_dimension_numbers<[1], [1], [0], [0], [0, 0, 1, 0], [], []>} : vector<8x32xf32>, vector<96x32xf32>, vector<8x96xf32> -> vector<8x96xf32>
    %364 = vector.extract_strided_slice %359 {offsets = [0, 0], sizes = [8, 96], strides = [1, 1]} : vector<8x192xf32> to vector<8x96xf32>
    %365 = vector.extract_strided_slice %364 {offsets = [0, 0], sizes = [8, 32], strides = [1, 1]} : vector<8x96xf32> to vector<8x32xf32>
    %366 = vector.extract_strided_slice %362 {offsets = [0, 0], sizes = [8, 32], strides = [1, 1]} : vector<8x96xf32> to vector<8x32xf32>
    %367 = arith.addf %365, %366 : vector<8x32xf32>
    %368 = arith.negf %367 : vector<8x32xf32>
    %369 = math.exp %368 : vector<8x32xf32>
    %cst_87 = arith.constant 1.000000e+00 : f32
    %370 = vector.broadcast %cst_87 : f32 to vector<8x32xf32>
    %371 = arith.addf %370, %369 : vector<8x32xf32>
    %372 = arith.divf %370, %371 : vector<8x32xf32>
    %373 = vector.extract_strided_slice %364 {offsets = [0, 32], sizes = [8, 32], strides = [1, 1]} : vector<8x96xf32> to vector<8x32xf32>
    %374 = vector.extract_strided_slice %362 {offsets = [0, 32], sizes = [8, 32], strides = [1, 1]} : vector<8x96xf32> to vector<8x32xf32>
    %375 = arith.addf %373, %374 : vector<8x32xf32>
    %376 = arith.negf %375 : vector<8x32xf32>
    %377 = math.exp %376 : vector<8x32xf32>
    %cst_88 = arith.constant 1.000000e+00 : f32
    %378 = vector.broadcast %cst_88 : f32 to vector<8x32xf32>
    %379 = arith.addf %378, %377 : vector<8x32xf32>
    %380 = arith.divf %378, %379 : vector<8x32xf32>
    %381 = vector.extract_strided_slice %364 {offsets = [0, 64], sizes = [8, 32], strides = [1, 1]} : vector<8x96xf32> to vector<8x32xf32>
    %382 = vector.extract_strided_slice %362 {offsets = [0, 64], sizes = [8, 32], strides = [1, 1]} : vector<8x96xf32> to vector<8x32xf32>
    %383 = vector.broadcast %58 : vector<1x32xf32> to vector<8x32xf32>
    %384 = arith.addf %382, %383 : vector<8x32xf32>
    %385 = arith.mulf %372, %384 : vector<8x32xf32>
    %386 = arith.addf %381, %385 : vector<8x32xf32>
    %387 = math.tanh %386 : vector<8x32xf32>
    %cst_89 = arith.constant 1.000000e+00 : f32
    %388 = vector.broadcast %cst_89 : f32 to vector<8x32xf32>
    %389 = arith.subf %388, %380 : vector<8x32xf32>
    %390 = arith.mulf %389, %387 : vector<8x32xf32>
    %391 = arith.mulf %380, %319 : vector<8x32xf32>
    %392 = arith.addf %390, %391 : vector<8x32xf32>
    %393 = vector.extract_strided_slice %361 {offsets = [0, 96], sizes = [8, 96], strides = [1, 1]} : vector<8x192xf32> to vector<8x96xf32>
    %394 = vector.extract_strided_slice %393 {offsets = [0, 0], sizes = [8, 32], strides = [1, 1]} : vector<8x96xf32> to vector<8x32xf32>
    %395 = vector.extract_strided_slice %363 {offsets = [0, 0], sizes = [8, 32], strides = [1, 1]} : vector<8x96xf32> to vector<8x32xf32>
    %396 = arith.addf %394, %395 : vector<8x32xf32>
    %397 = arith.negf %396 : vector<8x32xf32>
    %398 = math.exp %397 : vector<8x32xf32>
    %cst_90 = arith.constant 1.000000e+00 : f32
    %399 = vector.broadcast %cst_90 : f32 to vector<8x32xf32>
    %400 = arith.addf %399, %398 : vector<8x32xf32>
    %401 = arith.divf %399, %400 : vector<8x32xf32>
    %402 = vector.extract_strided_slice %393 {offsets = [0, 32], sizes = [8, 32], strides = [1, 1]} : vector<8x96xf32> to vector<8x32xf32>
    %403 = vector.extract_strided_slice %363 {offsets = [0, 32], sizes = [8, 32], strides = [1, 1]} : vector<8x96xf32> to vector<8x32xf32>
    %404 = arith.addf %402, %403 : vector<8x32xf32>
    %405 = arith.negf %404 : vector<8x32xf32>
    %406 = math.exp %405 : vector<8x32xf32>
    %cst_91 = arith.constant 1.000000e+00 : f32
    %407 = vector.broadcast %cst_91 : f32 to vector<8x32xf32>
    %408 = arith.addf %407, %406 : vector<8x32xf32>
    %409 = arith.divf %407, %408 : vector<8x32xf32>
    %410 = vector.extract_strided_slice %393 {offsets = [0, 64], sizes = [8, 32], strides = [1, 1]} : vector<8x96xf32> to vector<8x32xf32>
    %411 = vector.extract_strided_slice %363 {offsets = [0, 64], sizes = [8, 32], strides = [1, 1]} : vector<8x96xf32> to vector<8x32xf32>
    %412 = vector.broadcast %59 : vector<1x32xf32> to vector<8x32xf32>
    %413 = arith.addf %411, %412 : vector<8x32xf32>
    %414 = arith.mulf %401, %413 : vector<8x32xf32>
    %415 = arith.addf %410, %414 : vector<8x32xf32>
    %416 = math.tanh %415 : vector<8x32xf32>
    %cst_92 = arith.constant 1.000000e+00 : f32
    %417 = vector.broadcast %cst_92 : f32 to vector<8x32xf32>
    %418 = arith.subf %417, %409 : vector<8x32xf32>
    %419 = arith.mulf %418, %416 : vector<8x32xf32>
    %420 = arith.mulf %409, %348 : vector<8x32xf32>
    %421 = arith.addf %419, %420 : vector<8x32xf32>
    %422 = arith.index_cast %354 : i32 to index
    %c0_93 = arith.constant 0 : index
    %423 = vector.load %arg9[%422, %c0_93] : memref<48x32xf32, #tpu.memory_space<vmem>>, vector<8x32xf32>
    tpu.vector_store %arg9[%422, %c0_93], %392 {strides = array<i32>} : memref<48x32xf32, #tpu.memory_space<vmem>>, vector<8x32xf32>,
    %424 = arith.index_cast %357 : i32 to index
    %c0_94 = arith.constant 0 : index
    %425 = vector.load %arg11[%424, %c0_94] : memref<48x32xf32, #tpu.memory_space<vmem>>, vector<8x32xf32>
    tpu.vector_store %arg11[%424, %c0_94], %421 {strides = array<i32>} : memref<48x32xf32, #tpu.memory_space<vmem>>, vector<8x32xf32>,
    %c5_i32_95 = arith.constant 5 : i32
    %c8_i32_96 = arith.constant 8 : i32
    %426 = arith.muli %c5_i32_95, %c8_i32_96 : i32
    %427 = tpu.assume_multiple %426, 8 : i32
    %c5_i32_97 = arith.constant 5 : i32
    %428 = arith.subi %c5_i32_97, %c5_i32_95 : i32
    %c8_i32_98 = arith.constant 8 : i32
    %429 = arith.muli %428, %c8_i32_98 : i32
    %430 = tpu.assume_multiple %429, 8 : i32
    %431 = arith.index_cast %427 : i32 to index
    %c0_99 = arith.constant 0 : index
    %432 = vector.load %arg10[%431, %c0_99] : memref<48x192xf32, #tpu.memory_space<vmem>>, vector<8x192xf32>
    %433 = arith.index_cast %430 : i32 to index
    %c0_100 = arith.constant 0 : index
    %434 = vector.load %arg10[%433, %c0_100] : memref<48x192xf32, #tpu.memory_space<vmem>>, vector<8x192xf32>
    %cst_101 = arith.constant dense<0.000000e+00> : vector<8x96xf32>
    %435 = tpu.matmul %392, %56, %cst_101 {dimension_numbers = #tpu.dot_dimension_numbers<[1], [1], [0], [0], [0, 0, 1, 0], [], []>} : vector<8x32xf32>, vector<96x32xf32>, vector<8x96xf32> -> vector<8x96xf32>
    %cst_102 = arith.constant dense<0.000000e+00> : vector<8x96xf32>
    %436 = tpu.matmul %421, %57, %cst_102 {dimension_numbers = #tpu.dot_dimension_numbers<[1], [1], [0], [0], [0, 0, 1, 0], [], []>} : vector<8x32xf32>, vector<96x32xf32>, vector<8x96xf32> -> vector<8x96xf32>
    %437 = vector.extract_strided_slice %432 {offsets = [0, 0], sizes = [8, 96], strides = [1, 1]} : vector<8x192xf32> to vector<8x96xf32>
    %438 = vector.extract_strided_slice %437 {offsets = [0, 0], sizes = [8, 32], strides = [1, 1]} : vector<8x96xf32> to vector<8x32xf32>
    %439 = vector.extract_strided_slice %435 {offsets = [0, 0], sizes = [8, 32], strides = [1, 1]} : vector<8x96xf32> to vector<8x32xf32>
    %440 = arith.addf %438, %439 : vector<8x32xf32>
    %441 = arith.negf %440 : vector<8x32xf32>
    %442 = math.exp %441 : vector<8x32xf32>
    %cst_103 = arith.constant 1.000000e+00 : f32
    %443 = vector.broadcast %cst_103 : f32 to vector<8x32xf32>
    %444 = arith.addf %443, %442 : vector<8x32xf32>
    %445 = arith.divf %443, %444 : vector<8x32xf32>
    %446 = vector.extract_strided_slice %437 {offsets = [0, 32], sizes = [8, 32], strides = [1, 1]} : vector<8x96xf32> to vector<8x32xf32>
    %447 = vector.extract_strided_slice %435 {offsets = [0, 32], sizes = [8, 32], strides = [1, 1]} : vector<8x96xf32> to vector<8x32xf32>
    %448 = arith.addf %446, %447 : vector<8x32xf32>
    %449 = arith.negf %448 : vector<8x32xf32>
    %450 = math.exp %449 : vector<8x32xf32>
    %cst_104 = arith.constant 1.000000e+00 : f32
    %451 = vector.broadcast %cst_104 : f32 to vector<8x32xf32>
    %452 = arith.addf %451, %450 : vector<8x32xf32>
    %453 = arith.divf %451, %452 : vector<8x32xf32>
    %454 = vector.extract_strided_slice %437 {offsets = [0, 64], sizes = [8, 32], strides = [1, 1]} : vector<8x96xf32> to vector<8x32xf32>
    %455 = vector.extract_strided_slice %435 {offsets = [0, 64], sizes = [8, 32], strides = [1, 1]} : vector<8x96xf32> to vector<8x32xf32>
    %456 = vector.broadcast %58 : vector<1x32xf32> to vector<8x32xf32>
    %457 = arith.addf %455, %456 : vector<8x32xf32>
    %458 = arith.mulf %445, %457 : vector<8x32xf32>
    %459 = arith.addf %454, %458 : vector<8x32xf32>
    %460 = math.tanh %459 : vector<8x32xf32>
    %cst_105 = arith.constant 1.000000e+00 : f32
    %461 = vector.broadcast %cst_105 : f32 to vector<8x32xf32>
    %462 = arith.subf %461, %453 : vector<8x32xf32>
    %463 = arith.mulf %462, %460 : vector<8x32xf32>
    %464 = arith.mulf %453, %392 : vector<8x32xf32>
    %465 = arith.addf %463, %464 : vector<8x32xf32>
    %466 = vector.extract_strided_slice %434 {offsets = [0, 96], sizes = [8, 96], strides = [1, 1]} : vector<8x192xf32> to vector<8x96xf32>
    %467 = vector.extract_strided_slice %466 {offsets = [0, 0], sizes = [8, 32], strides = [1, 1]} : vector<8x96xf32> to vector<8x32xf32>
    %468 = vector.extract_strided_slice %436 {offsets = [0, 0], sizes = [8, 32], strides = [1, 1]} : vector<8x96xf32> to vector<8x32xf32>
    %469 = arith.addf %467, %468 : vector<8x32xf32>
    %470 = arith.negf %469 : vector<8x32xf32>
    %471 = math.exp %470 : vector<8x32xf32>
    %cst_106 = arith.constant 1.000000e+00 : f32
    %472 = vector.broadcast %cst_106 : f32 to vector<8x32xf32>
    %473 = arith.addf %472, %471 : vector<8x32xf32>
    %474 = arith.divf %472, %473 : vector<8x32xf32>
    %475 = vector.extract_strided_slice %466 {offsets = [0, 32], sizes = [8, 32], strides = [1, 1]} : vector<8x96xf32> to vector<8x32xf32>
    %476 = vector.extract_strided_slice %436 {offsets = [0, 32], sizes = [8, 32], strides = [1, 1]} : vector<8x96xf32> to vector<8x32xf32>
    %477 = arith.addf %475, %476 : vector<8x32xf32>
    %478 = arith.negf %477 : vector<8x32xf32>
    %479 = math.exp %478 : vector<8x32xf32>
    %cst_107 = arith.constant 1.000000e+00 : f32
    %480 = vector.broadcast %cst_107 : f32 to vector<8x32xf32>
    %481 = arith.addf %480, %479 : vector<8x32xf32>
    %482 = arith.divf %480, %481 : vector<8x32xf32>
    %483 = vector.extract_strided_slice %466 {offsets = [0, 64], sizes = [8, 32], strides = [1, 1]} : vector<8x96xf32> to vector<8x32xf32>
    %484 = vector.extract_strided_slice %436 {offsets = [0, 64], sizes = [8, 32], strides = [1, 1]} : vector<8x96xf32> to vector<8x32xf32>
    %485 = vector.broadcast %59 : vector<1x32xf32> to vector<8x32xf32>
    %486 = arith.addf %484, %485 : vector<8x32xf32>
    %487 = arith.mulf %474, %486 : vector<8x32xf32>
    %488 = arith.addf %483, %487 : vector<8x32xf32>
    %489 = math.tanh %488 : vector<8x32xf32>
    %cst_108 = arith.constant 1.000000e+00 : f32
    %490 = vector.broadcast %cst_108 : f32 to vector<8x32xf32>
    %491 = arith.subf %490, %482 : vector<8x32xf32>
    %492 = arith.mulf %491, %489 : vector<8x32xf32>
    %493 = arith.mulf %482, %421 : vector<8x32xf32>
    %494 = arith.addf %492, %493 : vector<8x32xf32>
    %495 = arith.index_cast %427 : i32 to index
    %c0_109 = arith.constant 0 : index
    %496 = vector.load %arg9[%495, %c0_109] : memref<48x32xf32, #tpu.memory_space<vmem>>, vector<8x32xf32>
    tpu.vector_store %arg9[%495, %c0_109], %465 {strides = array<i32>} : memref<48x32xf32, #tpu.memory_space<vmem>>, vector<8x32xf32>,
    %497 = arith.index_cast %430 : i32 to index
    %c0_110 = arith.constant 0 : index
    %498 = vector.load %arg11[%497, %c0_110] : memref<48x32xf32, #tpu.memory_space<vmem>>, vector<8x32xf32>
    tpu.vector_store %arg11[%497, %c0_110], %494 {strides = array<i32>} : memref<48x32xf32, #tpu.memory_space<vmem>>, vector<8x32xf32>,
    %c6_i32 = arith.constant 6 : i32
    %c0_111 = arith.constant 0 : index
    %c0_112 = arith.constant 0 : index
    %499 = vector.load %arg9[%c0_111, %c0_112] : memref<48x32xf32, #tpu.memory_space<vmem>>, vector<48x32xf32>
    %c0_113 = arith.constant 0 : index
    %c0_114 = arith.constant 0 : index
    %500 = vector.load %arg11[%c0_113, %c0_114] : memref<48x32xf32, #tpu.memory_space<vmem>>, vector<48x32xf32>
    %501 = arith.addf %499, %500 : vector<48x32xf32>
    %c0_115 = arith.constant 0 : index
    %c0_116 = arith.constant 0 : index
    %502 = vector.load %arg9[%c0_115, %c0_116] : memref<48x32xf32, #tpu.memory_space<vmem>>, vector<48x32xf32>
    tpu.vector_store %arg9[%c0_115, %c0_116], %501 {strides = array<i32>} : memref<48x32xf32, #tpu.memory_space<vmem>>, vector<48x32xf32>,
    return
  }
}

</mosaic_0001>

<llo_original>
// kernel: tpu_custom_call.1
$region0: #{tpu_custom_call.1}
  #allocation0 [shape = 'u32[]', space=smem, size = 0x4, offset = 0x4, fixed_abs, tag = 'smem constant byte address 0x4 - core index']
  #allocation1 [shape = 'u32[144,128]{1,0:T(1,128)}', space=vmem, size = 0x12000, scoped, tag = 'internal scratch']
  #allocation2 [shape = 'f32[48,192]{1,0:T(8,128)}', space=vmem, size = 0xc000, scoped, tag = 'scratch operand']
  #allocation3 [shape = 'f32[48,32]{1,0:T(8,128)}', space=vmem, size = 0x6000, scoped, tag = 'scratch operand']
  %s0 = inlined_call_operand.vmem [shape: s32[384,1], index: 0, kind: input, shape index: {}]
  %s1 = inlined_call_operand.vmem [shape: f32[64,32], index: 1, kind: input, shape index: {}]
  %s2 = inlined_call_operand.vmem [shape: f32[8,32], index: 2, kind: input, shape index: {}]
  %s3 = inlined_call_operand.vmem [shape: f32[192,32], index: 3, kind: input, shape index: {}]
  %s4 = inlined_call_operand.vmem [shape: f32[1,192], index: 4, kind: input, shape index: {}]
  %s5 = inlined_call_operand.vmem [shape: f32[96,32], index: 5, kind: input, shape index: {}]
  %s6 = inlined_call_operand.vmem [shape: f32[96,32], index: 6, kind: input, shape index: {}]
  %s7 = inlined_call_operand.vmem [shape: f32[1,32], index: 7, kind: input, shape index: {}]
  %s8 = inlined_call_operand.vmem [shape: f32[1,32], index: 8, kind: input, shape index: {}]
  %s9 = inlined_call_operand.vmem [shape: f32[48,32], index: 9, kind: output, shape index: {}]
  %s10 = sld [smem:[#allocation0]]
  $region46: #{tpu_custom_call.1} parent=0
    _
  %s12 = ssub.s32 1, %s10
  %s13 = scalar_select 0, %s12, %s10
  // Predicated region
  $region2: #{tpu_custom_call.1} parent=0 // pred_check
    _
  $region3: #{tpu_custom_call.1} parent=0 // pred_check_branch
    %15 = sbr.rel (0) target = $region5
  $region4: #{tpu_custom_call.1} parent=0 // pred_region
    _
  $region5: #{tpu_custom_call.1} parent=0 // pred_fallthru
    _
  // Predicated region
  $region6: #{tpu_custom_call.1} parent=0 // pred_check
    _
  $region7: #{tpu_custom_call.1} parent=0 // pred_check_branch
    %17 = sbr.rel (0) target = $region9
  $region8: #{tpu_custom_call.1} parent=0 // pred_region
    _
  $region9: #{tpu_custom_call.1} parent=0 // pred_fallthru
    _
  // Predicated region
  $region10: #{tpu_custom_call.1} parent=0 // pred_check
    _
  $region11: #{tpu_custom_call.1} parent=0 // pred_check_branch
    %19 = sbr.rel (0) target = $region13
  $region12: #{tpu_custom_call.1} parent=0 // pred_region
    _
  $region13: #{tpu_custom_call.1} parent=0 // pred_fallthru
    _
  // Predicated region
  $region14: #{tpu_custom_call.1} parent=0 // pred_check
    _
  $region15: #{tpu_custom_call.1} parent=0 // pred_check_branch
    %21 = sbr.rel (0) target = $region17
  $region16: #{tpu_custom_call.1} parent=0 // pred_region
    _
  $region17: #{tpu_custom_call.1} parent=0 // pred_fallthru
    _
  // Predicated region
  $region18: #{tpu_custom_call.1} parent=0 // pred_check
    _
  $region19: #{tpu_custom_call.1} parent=0 // pred_check_branch
    %23 = sbr.rel (0) target = $region21
  $region20: #{tpu_custom_call.1} parent=0 // pred_region
    _
  $region21: #{tpu_custom_call.1} parent=0 // pred_fallthru
    _
  // Predicated region
  $region22: #{tpu_custom_call.1} parent=0 // pred_check
    _
  $region23: #{tpu_custom_call.1} parent=0 // pred_check_branch
    %25 = sbr.rel (0) target = $region25
  $region24: #{tpu_custom_call.1} parent=0 // pred_region
    _
  $region25: #{tpu_custom_call.1} parent=0 // pred_fallthru
    _
  // Predicated region
  $region26: #{tpu_custom_call.1} parent=0 // pred_check
    _
  $region27: #{tpu_custom_call.1} parent=0 // pred_check_branch
    %27 = sbr.rel (0) target = $region29
  $region28: #{tpu_custom_call.1} parent=0 // pred_region
    _
  $region29: #{tpu_custom_call.1} parent=0 // pred_fallthru
    _
  // Predicated region
  $region30: #{tpu_custom_call.1} parent=0 // pred_check
    _
  $region31: #{tpu_custom_call.1} parent=0 // pred_check_branch
    %29 = sbr.rel (0) target = $region33
  $region32: #{tpu_custom_call.1} parent=0 // pred_region
    _
  $region33: #{tpu_custom_call.1} parent=0 // pred_fallthru
    _
  // Predicated region
  $region34: #{tpu_custom_call.1} parent=0 // pred_check
    _
  $region35: #{tpu_custom_call.1} parent=0 // pred_check_branch
    %31 = sbr.rel (0) target = $region37
  $region36: #{tpu_custom_call.1} parent=0 // pred_region
    _
  $region37: #{tpu_custom_call.1} parent=0 // pred_fallthru
    _
  %v32 = vld [vmem:[%s0] sm:$0xff]
  %v33 = vld [vmem:[%s0 + $0x8] sm:$0xff]
  %v34 = vld [vmem:[%s0 + $0x10] sm:$0xff]
  %v35 = vld [vmem:[%s0 + $0x18] sm:$0xff]
  %v36 = vld [vmem:[%s0 + $0x20] sm:$0xff]
  %v37 = vld [vmem:[%s0 + $0x28] sm:$0xff]
  %v38 = vld [vmem:[%s0 + $0x30] sm:$0xff]
  %v39 = vld [vmem:[%s0 + $0x38] sm:$0xff]
  %v40 = vld [vmem:[%s0 + $0x40] sm:$0xff]
  %v41 = vld [vmem:[%s0 + $0x48] sm:$0xff]
  %v42 = vld [vmem:[%s0 + $0x50] sm:$0xff]
  %v43 = vld [vmem:[%s0 + $0x58] sm:$0xff]
  %v44 = vld [vmem:[%s0 + $0x60] sm:$0xff]
  %v45 = vld [vmem:[%s0 + $0x68] sm:$0xff]
  %v46 = vld [vmem:[%s0 + $0x70] sm:$0xff]
  %v47 = vld [vmem:[%s0 + $0x78] sm:$0xff]
  %v48 = vld [vmem:[%s0 + $0x80] sm:$0xff]
  %v49 = vld [vmem:[%s0 + $0x88] sm:$0xff]
  %v50 = vld [vmem:[%s0 + $0x90] sm:$0xff]
  %v51 = vld [vmem:[%s0 + $0x98] sm:$0xff]
  %v52 = vld [vmem:[%s0 + $0xa0] sm:$0xff]
  %v53 = vld [vmem:[%s0 + $0xa8] sm:$0xff]
  %v54 = vld [vmem:[%s0 + $0xb0] sm:$0xff]
  %v55 = vld [vmem:[%s0 + $0xb8] sm:$0xff]
  %v56 = vld [vmem:[%s0 + $0xc0] sm:$0xff]
  %v57 = vld [vmem:[%s0 + $0xc8] sm:$0xff]
  %v58 = vld [vmem:[%s0 + $0xd0] sm:$0xff]
  %v59 = vld [vmem:[%s0 + $0xd8] sm:$0xff]
  %v60 = vld [vmem:[%s0 + $0xe0] sm:$0xff]
  %v61 = vld [vmem:[%s0 + $0xe8] sm:$0xff]
  %v62 = vld [vmem:[%s0 + $0xf0] sm:$0xff]
  %v63 = vld [vmem:[%s0 + $0xf8] sm:$0xff]
  %v64 = vld [vmem:[%s0 + $0x100] sm:$0xff]
  %v65 = vld [vmem:[%s0 + $0x108] sm:$0xff]
  %v66 = vld [vmem:[%s0 + $0x110] sm:$0xff]
  %v67 = vld [vmem:[%s0 + $0x118] sm:$0xff]
  %v68 = vld [vmem:[%s0 + $0x120] sm:$0xff]
  %v69 = vld [vmem:[%s0 + $0x128] sm:$0xff]
  %v70 = vld [vmem:[%s0 + $0x130] sm:$0xff]
  %v71 = vld [vmem:[%s0 + $0x138] sm:$0xff]
  %v72 = vld [vmem:[%s0 + $0x140] sm:$0xff]
  %v73 = vld [vmem:[%s0 + $0x148] sm:$0xff]
  %v74 = vld [vmem:[%s0 + $0x150] sm:$0xff]
  %v75 = vld [vmem:[%s0 + $0x158] sm:$0xff]
  %v76 = vld [vmem:[%s0 + $0x160] sm:$0xff]
  %v77 = vld [vmem:[%s0 + $0x168] sm:$0xff]
  %v78 = vld [vmem:[%s0 + $0x170] sm:$0xff]
  %v79 = vld [vmem:[%s0 + $0x178] sm:$0xff]
  %v80 = vlaneseq
  %v81 = vand.u32 %v80, 127
  %82 = vset.pattern.permute.xlu0 0
  %83 = vperm.xlu0 %82, %v32
  %v84 = vpop.permute.xlu0 %83
  %85 = vset.pattern.permute.xlu0 0
  %86 = vperm.xlu0 %85, %v33
  %v87 = vpop.permute.xlu0 %86
  %88 = vset.pattern.permute.xlu0 0
  %89 = vperm.xlu0 %88, %v34
  %v90 = vpop.permute.xlu0 %89
  %91 = vset.pattern.permute.xlu0 0
  %92 = vperm.xlu0 %91, %v35
  %v93 = vpop.permute.xlu0 %92
  %94 = vset.pattern.permute.xlu0 0
  %95 = vperm.xlu0 %94, %v36
  %v96 = vpop.permute.xlu0 %95
  %97 = vset.pattern.permute.xlu0 0
  %98 = vperm.xlu0 %97, %v37
  %v99 = vpop.permute.xlu0 %98
  %100 = vset.pattern.permute.xlu0 0
  %101 = vperm.xlu0 %100, %v38
  %v102 = vpop.permute.xlu0 %101
  %103 = vset.pattern.permute.xlu0 0
  %104 = vperm.xlu0 %103, %v39
  %v105 = vpop.permute.xlu0 %104
  %106 = vset.pattern.permute.xlu0 0
  %107 = vperm.xlu0 %106, %v40
  %v108 = vpop.permute.xlu0 %107
  %109 = vset.pattern.permute.xlu0 0
  %110 = vperm.xlu0 %109, %v41
  %v111 = vpop.permute.xlu0 %110
  %112 = vset.pattern.permute.xlu0 0
  %113 = vperm.xlu0 %112, %v42
  %v114 = vpop.permute.xlu0 %113
  %115 = vset.pattern.permute.xlu0 0
  %116 = vperm.xlu0 %115, %v43
  %v117 = vpop.permute.xlu0 %116
  %118 = vset.pattern.permute.xlu0 0
  %119 = vperm.xlu0 %118, %v44
  %v120 = vpop.permute.xlu0 %119
  %121 = vset.pattern.permute.xlu0 0
  %122 = vperm.xlu0 %121, %v45
  %v123 = vpop.permute.xlu0 %122
  %124 = vset.pattern.permute.xlu0 0
  %125 = vperm.xlu0 %124, %v46
  %v126 = vpop.permute.xlu0 %125
  %127 = vset.pattern.permute.xlu0 0
  %128 = vperm.xlu0 %127, %v47
  %v129 = vpop.permute.xlu0 %128
  %130 = vset.pattern.permute.xlu0 0
  %131 = vperm.xlu0 %130, %v48
  %v132 = vpop.permute.xlu0 %131
  %133 = vset.pattern.permute.xlu0 0
  %134 = vperm.xlu0 %133, %v49
  %v135 = vpop.permute.xlu0 %134
  %136 = vset.pattern.permute.xlu0 0
  %137 = vperm.xlu0 %136, %v50
  %v138 = vpop.permute.xlu0 %137
  %139 = vset.pattern.permute.xlu0 0
  %140 = vperm.xlu0 %139, %v51
  %v141 = vpop.permute.xlu0 %140
  %142 = vset.pattern.permute.xlu0 0
  %143 = vperm.xlu0 %142, %v52
  %v144 = vpop.permute.xlu0 %143
  %145 = vset.pattern.permute.xlu0 0
  %146 = vperm.xlu0 %145, %v53
  %v147 = vpop.permute.xlu0 %146
  %148 = vset.pattern.permute.xlu0 0
  %149 = vperm.xlu0 %148, %v54
  %v150 = vpop.permute.xlu0 %149
  %151 = vset.pattern.permute.xlu0 0
  %152 = vperm.xlu0 %151, %v55
  %v153 = vpop.permute.xlu0 %152
  %154 = vset.pattern.permute.xlu0 0
  %155 = vperm.xlu0 %154, %v56
  %v156 = vpop.permute.xlu0 %155
  %157 = vset.pattern.permute.xlu0 0
  %158 = vperm.xlu0 %157, %v57
  %v159 = vpop.permute.xlu0 %158
  %160 = vset.pattern.permute.xlu0 0
  %161 = vperm.xlu0 %160, %v58
  %v162 = vpop.permute.xlu0 %161
  %163 = vset.pattern.permute.xlu0 0
  %164 = vperm.xlu0 %163, %v59
  %v165 = vpop.permute.xlu0 %164
  %166 = vset.pattern.permute.xlu0 0
  %167 = vperm.xlu0 %166, %v60
  %v168 = vpop.permute.xlu0 %167
  %169 = vset.pattern.permute.xlu0 0
  %170 = vperm.xlu0 %169, %v61
  %v171 = vpop.permute.xlu0 %170
  %172 = vset.pattern.permute.xlu0 0
  %173 = vperm.xlu0 %172, %v62
  %v174 = vpop.permute.xlu0 %173
  %175 = vset.pattern.permute.xlu0 0
  %176 = vperm.xlu0 %175, %v63
  %v177 = vpop.permute.xlu0 %176
  %178 = vset.pattern.permute.xlu0 0
  %179 = vperm.xlu0 %178, %v64
  %v180 = vpop.permute.xlu0 %179
  %181 = vset.pattern.permute.xlu0 0
  %182 = vperm.xlu0 %181, %v65
  %v183 = vpop.permute.xlu0 %182
  %184 = vset.pattern.permute.xlu0 0
  %185 = vperm.xlu0 %184, %v66
  %v186 = vpop.permute.xlu0 %185
  %187 = vset.pattern.permute.xlu0 0
  %188 = vperm.xlu0 %187, %v67
  %v189 = vpop.permute.xlu0 %188
  %190 = vset.pattern.permute.xlu0 0
  %191 = vperm.xlu0 %190, %v68
  %v192 = vpop.permute.xlu0 %191
  %193 = vset.pattern.permute.xlu0 0
  %194 = vperm.xlu0 %193, %v69
  %v195 = vpop.permute.xlu0 %194
  %196 = vset.pattern.permute.xlu0 0
  %197 = vperm.xlu0 %196, %v70
  %v198 = vpop.permute.xlu0 %197
  %199 = vset.pattern.permute.xlu0 0
  %200 = vperm.xlu0 %199, %v71
  %v201 = vpop.permute.xlu0 %200
  %202 = vset.pattern.permute.xlu0 0
  %203 = vperm.xlu0 %202, %v72
  %v204 = vpop.permute.xlu0 %203
  %205 = vset.pattern.permute.xlu0 0
  %206 = vperm.xlu0 %205, %v73
  %v207 = vpop.permute.xlu0 %206
  %208 = vset.pattern.permute.xlu0 0
  %209 = vperm.xlu0 %208, %v74
  %v210 = vpop.permute.xlu0 %209
  %211 = vset.pattern.permute.xlu0 0
  %212 = vperm.xlu0 %211, %v75
  %v213 = vpop.permute.xlu0 %212
  %214 = vset.pattern.permute.xlu0 0
  %215 = vperm.xlu0 %214, %v76
  %v216 = vpop.permute.xlu0 %215
  %217 = vset.pattern.permute.xlu0 0
  %218 = vperm.xlu0 %217, %v77
  %v219 = vpop.permute.xlu0 %218
  %220 = vset.pattern.permute.xlu0 0
  %221 = vperm.xlu0 %220, %v78
  %v222 = vpop.permute.xlu0 %221
  %223 = vset.pattern.permute.xlu0 0
  %224 = vperm.xlu0 %223, %v79
  %v225 = vpop.permute.xlu0 %224
  %vm226 = vcmp.eq.s32.totalorder %v84, %v81
  %vm227 = vcmp.eq.s32.totalorder %v87, %v81
  %vm228 = vcmp.eq.s32.totalorder %v90, %v81
  %vm229 = vcmp.eq.s32.totalorder %v93, %v81
  %vm230 = vcmp.eq.s32.totalorder %v96, %v81
  %vm231 = vcmp.eq.s32.totalorder %v99, %v81
  %vm232 = vcmp.eq.s32.totalorder %v102, %v81
  %vm233 = vcmp.eq.s32.totalorder %v105, %v81
  %vm234 = vcmp.eq.s32.totalorder %v108, %v81
  %vm235 = vcmp.eq.s32.totalorder %v111, %v81
  %vm236 = vcmp.eq.s32.totalorder %v114, %v81
  %vm237 = vcmp.eq.s32.totalorder %v117, %v81
  %vm238 = vcmp.eq.s32.totalorder %v120, %v81
  %vm239 = vcmp.eq.s32.totalorder %v123, %v81
  %vm240 = vcmp.eq.s32.totalorder %v126, %v81
  %vm241 = vcmp.eq.s32.totalorder %v129, %v81
  %vm242 = vcmp.eq.s32.totalorder %v132, %v81
  %vm243 = vcmp.eq.s32.totalorder %v135, %v81
  %vm244 = vcmp.eq.s32.totalorder %v138, %v81
  %vm245 = vcmp.eq.s32.totalorder %v141, %v81
  %vm246 = vcmp.eq.s32.totalorder %v144, %v81
  %vm247 = vcmp.eq.s32.totalorder %v147, %v81
  %vm248 = vcmp.eq.s32.totalorder %v150, %v81
  %vm249 = vcmp.eq.s32.totalorder %v153, %v81
  %vm250 = vcmp.eq.s32.totalorder %v156, %v81
  %vm251 = vcmp.eq.s32.totalorder %v159, %v81
  %vm252 = vcmp.eq.s32.totalorder %v162, %v81
  %vm253 = vcmp.eq.s32.totalorder %v165, %v81
  %vm254 = vcmp.eq.s32.totalorder %v168, %v81
  %vm255 = vcmp.eq.s32.totalorder %v171, %v81
  %vm256 = vcmp.eq.s32.totalorder %v174, %v81
  %vm257 = vcmp.eq.s32.totalorder %v177, %v81
  %vm258 = vcmp.eq.s32.totalorder %v180, %v81
  %vm259 = vcmp.eq.s32.totalorder %v183, %v81
  %vm260 = vcmp.eq.s32.totalorder %v186, %v81
  %vm261 = vcmp.eq.s32.totalorder %v189, %v81
  %vm262 = vcmp.eq.s32.totalorder %v192, %v81
  %vm263 = vcmp.eq.s32.totalorder %v195, %v81
  %vm264 = vcmp.eq.s32.totalorder %v198, %v81
  %vm265 = vcmp.eq.s32.totalorder %v201, %v81
  %vm266 = vcmp.eq.s32.totalorder %v204, %v81
  %vm267 = vcmp.eq.s32.totalorder %v207, %v81
  %vm268 = vcmp.eq.s32.totalorder %v210, %v81
  %vm269 = vcmp.eq.s32.totalorder %v213, %v81
  %vm270 = vcmp.eq.s32.totalorder %v216, %v81
  %vm271 = vcmp.eq.s32.totalorder %v219, %v81
  %vm272 = vcmp.eq.s32.totalorder %v222, %v81
  %vm273 = vcmp.eq.s32.totalorder %v225, %v81
  %v274 = vsel %vm226, 1, 0
  %v275 = vsel %vm227, 1, 0
  %v276 = vsel %vm228, 1, 0
  %v277 = vsel %vm229, 1, 0
  %v278 = vsel %vm230, 1, 0
  %v279 = vsel %vm231, 1, 0
  %v280 = vsel %vm232, 1, 0
  %v281 = vsel %vm233, 1, 0
  %v282 = vsel %vm234, 1, 0
  %v283 = vsel %vm235, 1, 0
  %v284 = vsel %vm236, 1, 0
  %v285 = vsel %vm237, 1, 0
  %v286 = vsel %vm238, 1, 0
  %v287 = vsel %vm239, 1, 0
  %v288 = vsel %vm240, 1, 0
  %v289 = vsel %vm241, 1, 0
  %v290 = vsel %vm242, 1, 0
  %v291 = vsel %vm243, 1, 0
  %v292 = vsel %vm244, 1, 0
  %v293 = vsel %vm245, 1, 0
  %v294 = vsel %vm246, 1, 0
  %v295 = vsel %vm247, 1, 0
  %v296 = vsel %vm248, 1, 0
  %v297 = vsel %vm249, 1, 0
  %v298 = vsel %vm250, 1, 0
  %v299 = vsel %vm251, 1, 0
  %v300 = vsel %vm252, 1, 0
  %v301 = vsel %vm253, 1, 0
  %v302 = vsel %vm254, 1, 0
  %v303 = vsel %vm255, 1, 0
  %v304 = vsel %vm256, 1, 0
  %v305 = vsel %vm257, 1, 0
  %v306 = vsel %vm258, 1, 0
  %v307 = vsel %vm259, 1, 0
  %v308 = vsel %vm260, 1, 0
  %v309 = vsel %vm261, 1, 0
  %v310 = vsel %vm262, 1, 0
  %v311 = vsel %vm263, 1, 0
  %v312 = vsel %vm264, 1, 0
  %v313 = vsel %vm265, 1, 0
  %v314 = vsel %vm266, 1, 0
  %v315 = vsel %vm267, 1, 0
  %v316 = vsel %vm268, 1, 0
  %v317 = vsel %vm269, 1, 0
  %v318 = vsel %vm270, 1, 0
  %v319 = vsel %vm271, 1, 0
  %v320 = vsel %vm272, 1, 0
  %v321 = vsel %vm273, 1, 0
  %v322 = vcvt.s32.f32 %v274
  %v323 = vcvt.s32.f32 %v275
  %v324 = vcvt.s32.f32 %v276
  %v325 = vcvt.s32.f32 %v277
  %v326 = vcvt.s32.f32 %v278
  %v327 = vcvt.s32.f32 %v279
  %v328 = vcvt.s32.f32 %v280
  %v329 = vcvt.s32.f32 %v281
  %v330 = vcvt.s32.f32 %v282
  %v331 = vcvt.s32.f32 %v283
  %v332 = vcvt.s32.f32 %v284
  %v333 = vcvt.s32.f32 %v285
  %v334 = vcvt.s32.f32 %v286
  %v335 = vcvt.s32.f32 %v287
  %v336 = vcvt.s32.f32 %v288
  %v337 = vcvt.s32.f32 %v289
  %v338 = vcvt.s32.f32 %v290
  %v339 = vcvt.s32.f32 %v291
  %v340 = vcvt.s32.f32 %v292
  %v341 = vcvt.s32.f32 %v293
  %v342 = vcvt.s32.f32 %v294
  %v343 = vcvt.s32.f32 %v295
  %v344 = vcvt.s32.f32 %v296
  %v345 = vcvt.s32.f32 %v297
  %v346 = vcvt.s32.f32 %v298
  %v347 = vcvt.s32.f32 %v299
  %v348 = vcvt.s32.f32 %v300
  %v349 = vcvt.s32.f32 %v301
  %v350 = vcvt.s32.f32 %v302
  %v351 = vcvt.s32.f32 %v303
  %v352 = vcvt.s32.f32 %v304
  %v353 = vcvt.s32.f32 %v305
  %v354 = vcvt.s32.f32 %v306
  %v355 = vcvt.s32.f32 %v307
  %v356 = vcvt.s32.f32 %v308
  %v357 = vcvt.s32.f32 %v309
  %v358 = vcvt.s32.f32 %v310
  %v359 = vcvt.s32.f32 %v311
  %v360 = vcvt.s32.f32 %v312
  %v361 = vcvt.s32.f32 %v313
  %v362 = vcvt.s32.f32 %v314
  %v363 = vcvt.s32.f32 %v315
  %v364 = vcvt.s32.f32 %v316
  %v365 = vcvt.s32.f32 %v317
  %v366 = vcvt.s32.f32 %v318
  %v367 = vcvt.s32.f32 %v319
  %v368 = vcvt.s32.f32 %v320
  %v369 = vcvt.s32.f32 %v321
  %v370 = vld [vmem:[%s1] sm:$0xff]
  %v371 = vld [vmem:[%s1 + $0x8] sm:$0xff]
  %v372 = vld [vmem:[%s1 + $0x10] sm:$0xff]
  %v373 = vld [vmem:[%s1 + $0x18] sm:$0xff]
  %v374 = vld [vmem:[%s1 + $0x20] sm:$0xff]
  %v375 = vld [vmem:[%s1 + $0x28] sm:$0xff]
  %v376 = vld [vmem:[%s1 + $0x30] sm:$0xff]
  %v377 = vld [vmem:[%s1 + $0x38] sm:$0xff]
  %vm378 = vcmask 523264
  %v380 = vsel %vm378, %v322, 0
  %v383 = vsel %vm378, %v323, 0
  %v386 = vsel %vm378, %v324, 0
  %v389 = vsel %vm378, %v325, 0
  %v392 = vsel %vm378, %v326, 0
  %v395 = vsel %vm378, %v327, 0
  %v398 = vsel %vm378, %v328, 0
  %v401 = vsel %vm378, %v329, 0
  %v404 = vsel %vm378, %v330, 0
  %v407 = vsel %vm378, %v331, 0
  %v410 = vsel %vm378, %v332, 0
  %v413 = vsel %vm378, %v333, 0
  %v416 = vsel %vm378, %v334, 0
  %v419 = vsel %vm378, %v335, 0
  %v422 = vsel %vm378, %v336, 0
  %v425 = vsel %vm378, %v337, 0
  %v428 = vsel %vm378, %v338, 0
  %v431 = vsel %vm378, %v339, 0
  %v434 = vsel %vm378, %v340, 0
  %v437 = vsel %vm378, %v341, 0
  %v440 = vsel %vm378, %v342, 0
  %v443 = vsel %vm378, %v343, 0
  %v446 = vsel %vm378, %v344, 0
  %v449 = vsel %vm378, %v345, 0
  %v452 = vsel %vm378, %v346, 0
  %v455 = vsel %vm378, %v347, 0
  %v458 = vsel %vm378, %v348, 0
  %v461 = vsel %vm378, %v349, 0
  %v464 = vsel %vm378, %v350, 0
  %v467 = vsel %vm378, %v351, 0
  %v470 = vsel %vm378, %v352, 0
  %v473 = vsel %vm378, %v353, 0
  %v476 = vsel %vm378, %v354, 0
  %v479 = vsel %vm378, %v355, 0
  %v482 = vsel %vm378, %v356, 0
  %v485 = vsel %vm378, %v357, 0
  %v488 = vsel %vm378, %v358, 0
  %v491 = vsel %vm378, %v359, 0
  %v494 = vsel %vm378, %v360, 0
  %v497 = vsel %vm378, %v361, 0
  %v500 = vsel %vm378, %v362, 0
  %v503 = vsel %vm378, %v363, 0
  %v506 = vsel %vm378, %v364, 0
  %v509 = vsel %vm378, %v365, 0
  %v512 = vsel %vm378, %v366, 0
  %v515 = vsel %vm378, %v367, 0
  %v518 = vsel %vm378, %v368, 0
  %v521 = vsel %vm378, %v369, 0
  %523 = vmatprep.subr.mxu0 0.0
  %524 = vmatpush1.msra.mxu0 %v370
  %525 = vmatprep.subr.mxu0 0.0
  %526 = vmatpush1.msra.mxu0 %v371
  %527 = vmatprep.subr.mxu0 0.0
  %528 = vmatpush1.msra.mxu0 %v372
  %529 = vmatprep.subr.mxu0 0.0
  %530 = vmatpush1.msra.mxu0 %v373
  %531 = vmatprep.subr.mxu0 0.0
  %532 = vmatpush1.msra.mxu0 %v374
  %533 = vmatprep.subr.mxu0 0.0
  %534 = vmatpush1.msra.mxu0 %v375
  %535 = vmatprep.subr.mxu0 0.0
  %536 = vmatpush1.msra.mxu0 %v376
  %537 = vmatprep.subr.mxu0 0.0
  %538 = vmatpush1.msra.mxu0 %v377
  %539 = vmatprep.subr.mxu0 0.0
  %540 = vmatpush1.msra.mxu0 0.0
  %541 = vmatprep.subr.mxu0 0.0
  %542 = vmatpush1.msra.mxu0 0.0
  %543 = vmatprep.subr.mxu0 0.0
  %544 = vmatpush1.msra.mxu0 0.0
  %545 = vmatprep.subr.mxu0 0.0
  %546 = vmatpush1.msra.mxu0 0.0
  %547 = vmatprep.subr.mxu0 0.0
  %548 = vmatpush1.msra.mxu0 0.0
  %549 = vmatprep.subr.mxu0 0.0
  %550 = vmatpush1.msra.mxu0 0.0
  %551 = vmatprep.subr.mxu0 0.0
  %552 = vmatpush1.msra.mxu0 0.0
  %553 = vmatprep.subr.mxu0 0.0
  %554 = vmatpush1.msra.mxu0 0.0
  %555 = vmatprep.subr.mxu0 0.0
  %556 = vmatpush1.msra.mxu0 0.0
  %557 = vmatprep.subr.mxu0 0.0
  %558 = vmatpush1.msra.mxu0 0.0
  %559 = vmatprep.subr.mxu0 0.0
  %560 = vmatpush1.msra.mxu0 0.0
  %561 = vmatprep.subr.mxu0 0.0
  %562 = vmatpush1.msra.mxu0 0.0
  %563 = vmatprep.subr.mxu0 0.0
  %564 = vmatpush1.msra.mxu0 0.0
  %565 = vmatprep.subr.mxu0 0.0
  %566 = vmatpush1.msra.mxu0 0.0
  %567 = vmatprep.subr.mxu0 0.0
  %568 = vmatpush1.msra.mxu0 0.0
  %569 = vmatprep.subr.mxu0 0.0
  %570 = vmatpush1.msra.mxu0 0.0
  %571 = vmatprep.subr.mxu0 0.0
  %572 = vmatpush1.msra.mxu0 0.0
  %573 = vmatprep.subr.mxu0 0.0
  %574 = vmatpush1.msra.mxu0 0.0
  %575 = vmatprep.subr.mxu0 0.0
  %576 = vmatpush1.msra.mxu0 0.0
  %577 = vmatprep.subr.mxu0 0.0
  %578 = vmatpush1.msra.mxu0 0.0
  %579 = vmatprep.subr.mxu0 0.0
  %580 = vmatpush1.msra.mxu0 0.0
  %581 = vmatprep.subr.mxu0 0.0
  %582 = vmatpush1.msra.mxu0 0.0
  %583 = vmatprep.subr.mxu0 0.0
  %584 = vmatpush1.msra.mxu0 0.0
  %585 = vmatprep.subr.mxu0 0.0
  %586 = vmatpush1.msra.mxu0 0.0
  %587 = vmatprep.mubr.f32.mxu0 0.0
  %588 = vmatmul.mubr.f32.gmra.mrb[0].mxu0 %v380
  %v589 = vpop.f32.mrb[0].mxu0
  %v590 = vadd.f32 0.0, %v589
  %v591 = vpop.f32.mrb[0].mxu0
  %592 = vmatprep.mubr.f32.mxu0 0.0
  %593 = vmatmul.mubr.f32.gmra.mrb[0].mxu0 %v383
  %v594 = vpop.f32.mrb[0].mxu0
  %v595 = vadd.f32 0.0, %v594
  %v596 = vpop.f32.mrb[0].mxu0
  %597 = vmatprep.mubr.f32.mxu0 0.0
  %598 = vmatmul.mubr.f32.gmra.mrb[0].mxu0 %v386
  %v599 = vpop.f32.mrb[0].mxu0
  %v600 = vadd.f32 0.0, %v599
  %v601 = vpop.f32.mrb[0].mxu0
  %602 = vmatprep.mubr.f32.mxu0 0.0
  %603 = vmatmul.mubr.f32.gmra.mrb[0].mxu0 %v389
  %v604 = vpop.f32.mrb[0].mxu0
  %v605 = vadd.f32 0.0, %v604
  %v606 = vpop.f32.mrb[0].mxu0
  %607 = vmatprep.mubr.f32.mxu0 0.0
  %608 = vmatmul.mubr.f32.gmra.mrb[0].mxu0 %v392
  %v609 = vpop.f32.mrb[0].mxu0
  %v610 = vadd.f32 0.0, %v609
  %v611 = vpop.f32.mrb[0].mxu0
  %612 = vmatprep.mubr.f32.mxu0 0.0
  %613 = vmatmul.mubr.f32.gmra.mrb[0].mxu0 %v395
  %v614 = vpop.f32.mrb[0].mxu0
  %v615 = vadd.f32 0.0, %v614
  %v616 = vpop.f32.mrb[0].mxu0
  %617 = vmatprep.mubr.f32.mxu0 0.0
  %618 = vmatmul.mubr.f32.gmra.mrb[0].mxu0 %v398
  %v619 = vpop.f32.mrb[0].mxu0
  %v620 = vadd.f32 0.0, %v619
  %v621 = vpop.f32.mrb[0].mxu0
  %622 = vmatprep.mubr.f32.mxu0 0.0
  %623 = vmatmul.mubr.f32.gmra.mrb[0].mxu0 %v401
  %v624 = vpop.f32.mrb[0].mxu0
  %v625 = vadd.f32 0.0, %v624
  %v626 = vpop.f32.mrb[0].mxu0
  %627 = vmatprep.mubr.f32.mxu0 0.0
  %628 = vmatmul.mubr.f32.gmra.mrb[0].mxu0 %v404
  %v629 = vpop.f32.mrb[0].mxu0
  %v630 = vadd.f32 0.0, %v629
  %v631 = vpop.f32.mrb[0].mxu0
  %632 = vmatprep.mubr.f32.mxu0 0.0
  %633 = vmatmul.mubr.f32.gmra.mrb[0].mxu0 %v407
  %v634 = vpop.f32.mrb[0].mxu0
  %v635 = vadd.f32 0.0, %v634
  %v636 = vpop.f32.mrb[0].mxu0
  %637 = vmatprep.mubr.f32.mxu0 0.0
  %638 = vmatmul.mubr.f32.gmra.mrb[0].mxu0 %v410
  %v639 = vpop.f32.mrb[0].mxu0
  %v640 = vadd.f32 0.0, %v639
  %v641 = vpop.f32.mrb[0].mxu0
  %642 = vmatprep.mubr.f32.mxu0 0.0
  %643 = vmatmul.mubr.f32.gmra.mrb[0].mxu0 %v413
  %v644 = vpop.f32.mrb[0].mxu0
  %v645 = vadd.f32 0.0, %v644
  %v646 = vpop.f32.mrb[0].mxu0
  %647 = vmatprep.mubr.f32.mxu0 0.0
  %648 = vmatmul.mubr.f32.gmra.mrb[0].mxu0 %v416
  %v649 = vpop.f32.mrb[0].mxu0
  %v650 = vadd.f32 0.0, %v649
  %v651 = vpop.f32.mrb[0].mxu0
  %652 = vmatprep.mubr.f32.mxu0 0.0
  %653 = vmatmul.mubr.f32.gmra.mrb[0].mxu0 %v419
  %v654 = vpop.f32.mrb[0].mxu0
  %v655 = vadd.f32 0.0, %v654
  %v656 = vpop.f32.mrb[0].mxu0
  %657 = vmatprep.mubr.f32.mxu0 0.0
  %658 = vmatmul.mubr.f32.gmra.mrb[0].mxu0 %v422
  %v659 = vpop.f32.mrb[0].mxu0
  %v660 = vadd.f32 0.0, %v659
  %v661 = vpop.f32.mrb[0].mxu0
  %662 = vmatprep.mubr.f32.mxu0 0.0
  %663 = vmatmul.mubr.f32.gmra.mrb[0].mxu0 %v425
  %v664 = vpop.f32.mrb[0].mxu0
  %v665 = vadd.f32 0.0, %v664
  %v666 = vpop.f32.mrb[0].mxu0
  %667 = vmatprep.mubr.f32.mxu0 0.0
  %668 = vmatmul.mubr.f32.gmra.mrb[0].mxu0 %v428
  %v669 = vpop.f32.mrb[0].mxu0
  %v670 = vadd.f32 0.0, %v669
  %v671 = vpop.f32.mrb[0].mxu0
  %672 = vmatprep.mubr.f32.mxu0 0.0
  %673 = vmatmul.mubr.f32.gmra.mrb[0].mxu0 %v431
  %v674 = vpop.f32.mrb[0].mxu0
  %v675 = vadd.f32 0.0, %v674
  %v676 = vpop.f32.mrb[0].mxu0
  %677 = vmatprep.mubr.f32.mxu0 0.0
  %678 = vmatmul.mubr.f32.gmra.mrb[0].mxu0 %v434
  %v679 = vpop.f32.mrb[0].mxu0
  %v680 = vadd.f32 0.0, %v679
  %v681 = vpop.f32.mrb[0].mxu0
  %682 = vmatprep.mubr.f32.mxu0 0.0
  %683 = vmatmul.mubr.f32.gmra.mrb[0].mxu0 %v437
  %v684 = vpop.f32.mrb[0].mxu0
  %v685 = vadd.f32 0.0, %v684
  %v686 = vpop.f32.mrb[0].mxu0
  %687 = vmatprep.mubr.f32.mxu0 0.0
  %688 = vmatmul.mubr.f32.gmra.mrb[0].mxu0 %v440
  %v689 = vpop.f32.mrb[0].mxu0
  %v690 = vadd.f32 0.0, %v689
  %v691 = vpop.f32.mrb[0].mxu0
  %692 = vmatprep.mubr.f32.mxu0 0.0
  %693 = vmatmul.mubr.f32.gmra.mrb[0].mxu0 %v443
  %v694 = vpop.f32.mrb[0].mxu0
  %v695 = vadd.f32 0.0, %v694
  %v696 = vpop.f32.mrb[0].mxu0
  %697 = vmatprep.mubr.f32.mxu0 0.0
  %698 = vmatmul.mubr.f32.gmra.mrb[0].mxu0 %v446
  %v699 = vpop.f32.mrb[0].mxu0
  %v700 = vadd.f32 0.0, %v699
  %v701 = vpop.f32.mrb[0].mxu0
  %702 = vmatprep.mubr.f32.mxu0 0.0
  %703 = vmatmul.mubr.f32.gmra.mrb[0].mxu0 %v449
  %v704 = vpop.f32.mrb[0].mxu0
  %v705 = vadd.f32 0.0, %v704
  %v706 = vpop.f32.mrb[0].mxu0
  %707 = vmatprep.mubr.f32.mxu0 0.0
  %708 = vmatmul.mubr.f32.gmra.mrb[0].mxu0 %v452
  %v709 = vpop.f32.mrb[0].mxu0
  %v710 = vadd.f32 0.0, %v709
  %v711 = vpop.f32.mrb[0].mxu0
  %712 = vmatprep.mubr.f32.mxu0 0.0
  %713 = vmatmul.mubr.f32.gmra.mrb[0].mxu0 %v455
  %v714 = vpop.f32.mrb[0].mxu0
  %v715 = vadd.f32 0.0, %v714
  %v716 = vpop.f32.mrb[0].mxu0
  %717 = vmatprep.mubr.f32.mxu0 0.0
  %718 = vmatmul.mubr.f32.gmra.mrb[0].mxu0 %v458
  %v719 = vpop.f32.mrb[0].mxu0
  %v720 = vadd.f32 0.0, %v719
  %v721 = vpop.f32.mrb[0].mxu0
  %722 = vmatprep.mubr.f32.mxu0 0.0
  %723 = vmatmul.mubr.f32.gmra.mrb[0].mxu0 %v461
  %v724 = vpop.f32.mrb[0].mxu0
  %v725 = vadd.f32 0.0, %v724
  %v726 = vpop.f32.mrb[0].mxu0
  %727 = vmatprep.mubr.f32.mxu0 0.0
  %728 = vmatmul.mubr.f32.gmra.mrb[0].mxu0 %v464
  %v729 = vpop.f32.mrb[0].mxu0
  %v730 = vadd.f32 0.0, %v729
  %v731 = vpop.f32.mrb[0].mxu0
  %732 = vmatprep.mubr.f32.mxu0 0.0
  %733 = vmatmul.mubr.f32.gmra.mrb[0].mxu0 %v467
  %v734 = vpop.f32.mrb[0].mxu0
  %v735 = vadd.f32 0.0, %v734
  %v736 = vpop.f32.mrb[0].mxu0
  %737 = vmatprep.mubr.f32.mxu0 0.0
  %738 = vmatmul.mubr.f32.gmra.mrb[0].mxu0 %v470
  %v739 = vpop.f32.mrb[0].mxu0
  %v740 = vadd.f32 0.0, %v739
  %v741 = vpop.f32.mrb[0].mxu0
  %742 = vmatprep.mubr.f32.mxu0 0.0
  %743 = vmatmul.mubr.f32.gmra.mrb[0].mxu0 %v473
  %v744 = vpop.f32.mrb[0].mxu0
  %v745 = vadd.f32 0.0, %v744
  %v746 = vpop.f32.mrb[0].mxu0
  %747 = vmatprep.mubr.f32.mxu0 0.0
  %748 = vmatmul.mubr.f32.gmra.mrb[0].mxu0 %v476
  %v749 = vpop.f32.mrb[0].mxu0
  %v750 = vadd.f32 0.0, %v749
  %v751 = vpop.f32.mrb[0].mxu0
  %752 = vmatprep.mubr.f32.mxu0 0.0
  %753 = vmatmul.mubr.f32.gmra.mrb[0].mxu0 %v479
  %v754 = vpop.f32.mrb[0].mxu0
  %v755 = vadd.f32 0.0, %v754
  %v756 = vpop.f32.mrb[0].mxu0
  %757 = vmatprep.mubr.f32.mxu0 0.0
  %758 = vmatmul.mubr.f32.gmra.mrb[0].mxu0 %v482
  %v759 = vpop.f32.mrb[0].mxu0
  %v760 = vadd.f32 0.0, %v759
  %v761 = vpop.f32.mrb[0].mxu0
  %762 = vmatprep.mubr.f32.mxu0 0.0
  %763 = vmatmul.mubr.f32.gmra.mrb[0].mxu0 %v485
  %v764 = vpop.f32.mrb[0].mxu0
  %v765 = vadd.f32 0.0, %v764
  %v766 = vpop.f32.mrb[0].mxu0
  %767 = vmatprep.mubr.f32.mxu0 0.0
  %768 = vmatmul.mubr.f32.gmra.mrb[0].mxu0 %v488
  %v769 = vpop.f32.mrb[0].mxu0
  %v770 = vadd.f32 0.0, %v769
  %v771 = vpop.f32.mrb[0].mxu0
  %772 = vmatprep.mubr.f32.mxu0 0.0
  %773 = vmatmul.mubr.f32.gmra.mrb[0].mxu0 %v491
  %v774 = vpop.f32.mrb[0].mxu0
  %v775 = vadd.f32 0.0, %v774
  %v776 = vpop.f32.mrb[0].mxu0
  %777 = vmatprep.mubr.f32.mxu0 0.0
  %778 = vmatmul.mubr.f32.gmra.mrb[0].mxu0 %v494
  %v779 = vpop.f32.mrb[0].mxu0
  %v780 = vadd.f32 0.0, %v779
  %v781 = vpop.f32.mrb[0].mxu0
  %782 = vmatprep.mubr.f32.mxu0 0.0
  %783 = vmatmul.mubr.f32.gmra.mrb[0].mxu0 %v497
  %v784 = vpop.f32.mrb[0].mxu0
  %v785 = vadd.f32 0.0, %v784
  %v786 = vpop.f32.mrb[0].mxu0
  %787 = vmatprep.mubr.f32.mxu0 0.0
  %788 = vmatmul.mubr.f32.gmra.mrb[0].mxu0 %v500
  %v789 = vpop.f32.mrb[0].mxu0
  %v790 = vadd.f32 0.0, %v789
  %v791 = vpop.f32.mrb[0].mxu0
  %792 = vmatprep.mubr.f32.mxu0 0.0
  %793 = vmatmul.mubr.f32.gmra.mrb[0].mxu0 %v503
  %v794 = vpop.f32.mrb[0].mxu0
  %v795 = vadd.f32 0.0, %v794
  %v796 = vpop.f32.mrb[0].mxu0
  %797 = vmatprep.mubr.f32.mxu0 0.0
  %798 = vmatmul.mubr.f32.gmra.mrb[0].mxu0 %v506
  %v799 = vpop.f32.mrb[0].mxu0
  %v800 = vadd.f32 0.0, %v799
  %v801 = vpop.f32.mrb[0].mxu0
  %802 = vmatprep.mubr.f32.mxu0 0.0
  %803 = vmatmul.mubr.f32.gmra.mrb[0].mxu0 %v509
  %v804 = vpop.f32.mrb[0].mxu0
  %v805 = vadd.f32 0.0, %v804
  %v806 = vpop.f32.mrb[0].mxu0
  %807 = vmatprep.mubr.f32.mxu0 0.0
  %808 = vmatmul.mubr.f32.gmra.mrb[0].mxu0 %v512
  %v809 = vpop.f32.mrb[0].mxu0
  %v810 = vadd.f32 0.0, %v809
  %v811 = vpop.f32.mrb[0].mxu0
  %812 = vmatprep.mubr.f32.mxu0 0.0
  %813 = vmatmul.mubr.f32.gmra.mrb[0].mxu0 %v515
  %v814 = vpop.f32.mrb[0].mxu0
  %v815 = vadd.f32 0.0, %v814
  %v816 = vpop.f32.mrb[0].mxu0
  %817 = vmatprep.mubr.f32.mxu0 0.0
  %818 = vmatmul.mubr.f32.gmra.mrb[0].mxu0 %v518
  %v819 = vpop.f32.mrb[0].mxu0
  %v820 = vadd.f32 0.0, %v819
  %v821 = vpop.f32.mrb[0].mxu0
  %822 = vmatprep.mubr.f32.mxu0 0.0
  %823 = vmatmul.mubr.f32.gmra.mrb[0].mxu0 %v521
  %v824 = vpop.f32.mrb[0].mxu0
  %v825 = vadd.f32 0.0, %v824
  %v826 = vpop.f32.mrb[0].mxu0
  %827 = vdwg.mxu0
  %v828 = vld [vmem:[%s2] sm:$0xff]
  %v829 = vlaneseq
  %v830 = vshrl.u32 %v829, 7
  %v831 = vsub.s32 0, %v830
  %v832 = vrot.slane %v828, %v831
  %v833 = vmul.f32 %v590, %v832
  %v834 = vmul.f32 %v595, %v832
  %v835 = vmul.f32 %v600, %v832
  %v836 = vmul.f32 %v605, %v832
  %v837 = vmul.f32 %v610, %v832
  %v838 = vmul.f32 %v615, %v832
  %v839 = vadd.f32 %v833, 0.0
  %v840 = vadd.f32 %v834, 0.0
  %v841 = vadd.f32 %v835, 0.0
  %v842 = vadd.f32 %v836, 0.0
  %v843 = vadd.f32 %v837, 0.0
  %v844 = vadd.f32 %v838, 0.0
  %v845 = vlaneseq
  %v846 = vshrl.u32 %v845, 7
  %v847 = vsub.s32 1, %v846
  %v848 = vrot.slane %v828, %v847
  %v849 = vmul.f32 %v620, %v848
  %v850 = vmul.f32 %v625, %v848
  %v851 = vmul.f32 %v630, %v848
  %v852 = vmul.f32 %v635, %v848
  %v853 = vmul.f32 %v640, %v848
  %v854 = vmul.f32 %v645, %v848
  %v855 = vadd.f32 %v839, %v849
  %v856 = vadd.f32 %v840, %v850
  %v857 = vadd.f32 %v841, %v851
  %v858 = vadd.f32 %v842, %v852
  %v859 = vadd.f32 %v843, %v853
  %v860 = vadd.f32 %v844, %v854
  %v861 = vlaneseq
  %v862 = vshrl.u32 %v861, 7
  %v863 = vsub.s32 2, %v862
  %v864 = vrot.slane %v828, %v863
  %v865 = vmul.f32 %v650, %v864
  %v866 = vmul.f32 %v655, %v864
  %v867 = vmul.f32 %v660, %v864
  %v868 = vmul.f32 %v665, %v864
  %v869 = vmul.f32 %v670, %v864
  %v870 = vmul.f32 %v675, %v864
  %v871 = vadd.f32 %v855, %v865
  %v872 = vadd.f32 %v856, %v866
  %v873 = vadd.f32 %v857, %v867
  %v874 = vadd.f32 %v858, %v868
  %v875 = vadd.f32 %v859, %v869
  %v876 = vadd.f32 %v860, %v870
  %v877 = vlaneseq
  %v878 = vshrl.u32 %v877, 7
  %v879 = vsub.s32 3, %v878
  %v880 = vrot.slane %v828, %v879
  %v881 = vmul.f32 %v680, %v880
  %v882 = vmul.f32 %v685, %v880
  %v883 = vmul.f32 %v690, %v880
  %v884 = vmul.f32 %v695, %v880
  %v885 = vmul.f32 %v700, %v880
  %v886 = vmul.f32 %v705, %v880
  %v887 = vadd.f32 %v871, %v881
  %v888 = vadd.f32 %v872, %v882
  %v889 = vadd.f32 %v873, %v883
  %v890 = vadd.f32 %v874, %v884
  %v891 = vadd.f32 %v875, %v885
  %v892 = vadd.f32 %v876, %v886
  %v893 = vlaneseq
  %v894 = vshrl.u32 %v893, 7
  %v895 = vsub.s32 4, %v894
  %v896 = vrot.slane %v828, %v895
  %v897 = vmul.f32 %v710, %v896
  %v898 = vmul.f32 %v715, %v896
  %v899 = vmul.f32 %v720, %v896
  %v900 = vmul.f32 %v725, %v896
  %v901 = vmul.f32 %v730, %v896
  %v902 = vmul.f32 %v735, %v896
  %v903 = vadd.f32 %v887, %v897
  %v904 = vadd.f32 %v888, %v898
  %v905 = vadd.f32 %v889, %v899
  %v906 = vadd.f32 %v890, %v900
  %v907 = vadd.f32 %v891, %v901
  %v908 = vadd.f32 %v892, %v902
  %v909 = vlaneseq
  %v910 = vshrl.u32 %v909, 7
  %v911 = vsub.s32 5, %v910
  %v912 = vrot.slane %v828, %v911
  %v913 = vmul.f32 %v740, %v912
  %v914 = vmul.f32 %v745, %v912
  %v915 = vmul.f32 %v750, %v912
  %v916 = vmul.f32 %v755, %v912
  %v917 = vmul.f32 %v760, %v912
  %v918 = vmul.f32 %v765, %v912
  %v919 = vadd.f32 %v903, %v913
  %v920 = vadd.f32 %v904, %v914
  %v921 = vadd.f32 %v905, %v915
  %v922 = vadd.f32 %v906, %v916
  %v923 = vadd.f32 %v907, %v917
  %v924 = vadd.f32 %v908, %v918
  %v925 = vlaneseq
  %v926 = vshrl.u32 %v925, 7
  %v927 = vsub.s32 6, %v926
  %v928 = vrot.slane %v828, %v927
  %v929 = vmul.f32 %v770, %v928
  %v930 = vmul.f32 %v775, %v928
  %v931 = vmul.f32 %v780, %v928
  %v932 = vmul.f32 %v785, %v928
  %v933 = vmul.f32 %v790, %v928
  %v934 = vmul.f32 %v795, %v928
  %v935 = vadd.f32 %v919, %v929
  %v936 = vadd.f32 %v920, %v930
  %v937 = vadd.f32 %v921, %v931
  %v938 = vadd.f32 %v922, %v932
  %v939 = vadd.f32 %v923, %v933
  %v940 = vadd.f32 %v924, %v934
  %v941 = vlaneseq
  %v942 = vshrl.u32 %v941, 7
  %v943 = vsub.s32 7, %v942
  %v944 = vrot.slane %v828, %v943
  %v945 = vmul.f32 %v800, %v944
  %v946 = vmul.f32 %v805, %v944
  %v947 = vmul.f32 %v810, %v944
  %v948 = vmul.f32 %v815, %v944
  %v949 = vmul.f32 %v820, %v944
  %v950 = vmul.f32 %v825, %v944
  %v951 = vadd.f32 %v935, %v945
  %v952 = vadd.f32 %v936, %v946
  %v953 = vadd.f32 %v937, %v947
  %v954 = vadd.f32 %v938, %v948
  %v955 = vadd.f32 %v939, %v949
  %v956 = vadd.f32 %v940, %v950
  %v957 = vld [vmem:[%s3] sm:$0xff]
  %v958 = vld [vmem:[%s3 + $0x8] sm:$0xff]
  %v959 = vld [vmem:[%s3 + $0x10] sm:$0xff]
  %v960 = vld [vmem:[%s3 + $0x18] sm:$0xff]
  %v961 = vld [vmem:[%s3 + $0x20] sm:$0xff]
  %v962 = vld [vmem:[%s3 + $0x28] sm:$0xff]
  %v963 = vld [vmem:[%s3 + $0x30] sm:$0xff]
  %v964 = vld [vmem:[%s3 + $0x38] sm:$0xff]
  %v965 = vld [vmem:[%s3 + $0x40] sm:$0xff]
  %v966 = vld [vmem:[%s3 + $0x48] sm:$0xff]
  %v967 = vld [vmem:[%s3 + $0x50] sm:$0xff]
  %v968 = vld [vmem:[%s3 + $0x58] sm:$0xff]
  %v969 = vld [vmem:[%s3 + $0x60] sm:$0xff]
  %v970 = vld [vmem:[%s3 + $0x68] sm:$0xff]
  %v971 = vld [vmem:[%s3 + $0x70] sm:$0xff]
  %v972 = vld [vmem:[%s3 + $0x78] sm:$0xff]
  %v973 = vld [vmem:[%s3 + $0x80] sm:$0xff]
  %v974 = vld [vmem:[%s3 + $0x88] sm:$0xff]
  %v975 = vld [vmem:[%s3 + $0x90] sm:$0xff]
  %v976 = vld [vmem:[%s3 + $0x98] sm:$0xff]
  %v977 = vld [vmem:[%s3 + $0xa0] sm:$0xff]
  %v978 = vld [vmem:[%s3 + $0xa8] sm:$0xff]
  %v979 = vld [vmem:[%s3 + $0xb0] sm:$0xff]
  %v980 = vld [vmem:[%s3 + $0xb8] sm:$0xff]
  %v981 = vld [vmem:[%s4] sm:$0x3]
  %v983 = vlaneseq
  %v984 = vshrl.u32 %v983, 7
  %v985 = vsub.s32 0, %v984
  %v986 = vrot.slane %v981, %v985
  %v987 = vlaneseq
  %v988 = vshrl.u32 %v987, 7
  %v989 = vsub.s32 1, %v988
  %v990 = vrot.slane %v981, %v989
  %vm993 = vcmask 261120
  %v995 = vsel %vm993, %v951, 0
  %v998 = vsel %vm993, %v952, 0
  %v1001 = vsel %vm993, %v953, 0
  %v1004 = vsel %vm993, %v954, 0
  %v1007 = vsel %vm993, %v955, 0
  %v1010 = vsel %vm993, %v956, 0
  %v1013 = vsel %vm993, %v957, 0
  %v1016 = vsel %vm993, %v958, 0
  %v1019 = vsel %vm993, %v959, 0
  %v1022 = vsel %vm993, %v960, 0
  %v1025 = vsel %vm993, %v961, 0
  %v1028 = vsel %vm993, %v962, 0
  %v1031 = vsel %vm993, %v963, 0
  %v1034 = vsel %vm993, %v964, 0
  %v1037 = vsel %vm993, %v965, 0
  %v1040 = vsel %vm993, %v966, 0
  %v1043 = vsel %vm993, %v967, 0
  %v1046 = vsel %vm993, %v968, 0
  %v1049 = vsel %vm993, %v969, 0
  %v1052 = vsel %vm993, %v970, 0
  %v1055 = vsel %vm993, %v971, 0
  %v1058 = vsel %vm993, %v972, 0
  %v1061 = vsel %vm993, %v973, 0
  %v1064 = vsel %vm993, %v974, 0
  %v1067 = vsel %vm993, %v975, 0
  %v1070 = vsel %vm993, %v976, 0
  %v1073 = vsel %vm993, %v977, 0
  %v1076 = vsel %vm993, %v978, 0
  %v1079 = vsel %vm993, %v979, 0
  %v1082 = vsel %vm993, %v980, 0
  %1084 = vmatprep.subr.mxu0 0.0
  %1085 = vmatpush1.xpose.msra.mxu0 %v1013
  %1086 = vmatprep.subr.mxu0 0.0
  %1087 = vmatpush1.xpose.msra.mxu0 %v1016
  %1088 = vmatprep.subr.mxu0 0.0
  %1089 = vmatpush1.xpose.msra.mxu0 %v1019
  %1090 = vmatprep.subr.mxu0 0.0
  %1091 = vmatpush1.xpose.msra.mxu0 %v1022
  %1092 = vmatprep.subr.mxu0 0.0
  %1093 = vmatpush1.xpose.msra.mxu0 %v1025
  %1094 = vmatprep.subr.mxu0 0.0
  %1095 = vmatpush1.xpose.msra.mxu0 %v1028
  %1096 = vmatprep.subr.mxu0 0.0
  %1097 = vmatpush1.xpose.msra.mxu0 %v1031
  %1098 = vmatprep.subr.mxu0 0.0
  %1099 = vmatpush1.xpose.msra.mxu0 %v1034
  %1100 = vmatprep.subr.mxu0 0.0
  %1101 = vmatpush1.xpose.msra.mxu0 %v1037
  %1102 = vmatprep.subr.mxu0 0.0
  %1103 = vmatpush1.xpose.msra.mxu0 %v1040
  %1104 = vmatprep.subr.mxu0 0.0
  %1105 = vmatpush1.xpose.msra.mxu0 %v1043
  %1106 = vmatprep.subr.mxu0 0.0
  %1107 = vmatpush1.xpose.msra.mxu0 %v1046
  %1108 = vmatprep.subr.mxu0 0.0
  %1109 = vmatpush1.xpose.msra.mxu0 %v1049
  %1110 = vmatprep.subr.mxu0 0.0
  %1111 = vmatpush1.xpose.msra.mxu0 %v1052
  %1112 = vmatprep.subr.mxu0 0.0
  %1113 = vmatpush1.xpose.msra.mxu0 %v1055
  %1114 = vmatprep.subr.mxu0 0.0
  %1115 = vmatpush1.xpose.msra.mxu0 %v1058
  %1116 = vmatprep.subr.mxu0 0.0
  %1117 = vmatpush1.xpose.msra.mxu0 %v1061
  %1118 = vmatprep.subr.mxu0 0.0
  %1119 = vmatpush1.xpose.msra.mxu0 %v1064
  %1120 = vmatprep.subr.mxu0 0.0
  %1121 = vmatpush1.xpose.msra.mxu0 %v1067
  %1122 = vmatprep.subr.mxu0 0.0
  %1123 = vmatpush1.xpose.msra.mxu0 %v1070
  %1124 = vmatprep.subr.mxu0 0.0
  %1125 = vmatpush1.xpose.msra.mxu0 %v1073
  %1126 = vmatprep.subr.mxu0 0.0
  %1127 = vmatpush1.xpose.msra.mxu0 %v1076
  %1128 = vmatprep.subr.mxu0 0.0
  %1129 = vmatpush1.xpose.msra.mxu0 %v1079
  %1130 = vmatprep.subr.mxu0 0.0
  %1131 = vmatpush1.xpose.msra.mxu0 %v1082
  %1132 = vmatprep.subr.mxu0 0.0
  %1133 = vmatpush1.xpose.msra.mxu0 0.0
  %1134 = vmatprep.subr.mxu0 0.0
  %1135 = vmatpush1.xpose.msra.mxu0 0.0
  %1136 = vmatprep.subr.mxu0 0.0
  %1137 = vmatpush1.xpose.msra.mxu0 0.0
  %1138 = vmatprep.subr.mxu0 0.0
  %1139 = vmatpush1.xpose.msra.mxu0 0.0
  %1140 = vmatprep.subr.mxu0 0.0
  %1141 = vmatpush1.xpose.msra.mxu0 0.0
  %1142 = vmatprep.subr.mxu0 0.0
  %1143 = vmatpush1.xpose.msra.mxu0 0.0
  %1144 = vmatprep.subr.mxu0 0.0
  %1145 = vmatpush1.xpose.msra.mxu0 0.0
  %1146 = vmatprep.subr.mxu0 0.0
  %1147 = vmatpush1.xpose.msra.mxu0 0.0
  %1148 = vmatprep.mubr.f32.mxu0 0.0
  %1149 = vmatmul.mubr.f32.gmra.mrb[0].mxu0 %v995
  %v1150 = vpop.f32.mrb[0].mxu0
  %v1151 = vadd.f32 %v986, %v1150
  %v1152 = vpop.f32.mrb[0].mxu0
  %v1153 = vadd.f32 %v990, %v1152
  %1154 = vmatprep.mubr.f32.mxu0 0.0
  %1155 = vmatmul.mubr.f32.gmra.mrb[0].mxu0 %v998
  %v1156 = vpop.f32.mrb[0].mxu0
  %v1157 = vadd.f32 %v986, %v1156
  %v1158 = vpop.f32.mrb[0].mxu0
  %v1159 = vadd.f32 %v990, %v1158
  %1160 = vmatprep.mubr.f32.mxu0 0.0
  %1161 = vmatmul.mubr.f32.gmra.mrb[0].mxu0 %v1001
  %v1162 = vpop.f32.mrb[0].mxu0
  %v1163 = vadd.f32 %v986, %v1162
  %v1164 = vpop.f32.mrb[0].mxu0
  %v1165 = vadd.f32 %v990, %v1164
  %1166 = vmatprep.mubr.f32.mxu0 0.0
  %1167 = vmatmul.mubr.f32.gmra.mrb[0].mxu0 %v1004
  %v1168 = vpop.f32.mrb[0].mxu0
  %v1169 = vadd.f32 %v986, %v1168
  %v1170 = vpop.f32.mrb[0].mxu0
  %v1171 = vadd.f32 %v990, %v1170
  %1172 = vmatprep.mubr.f32.mxu0 0.0
  %1173 = vmatmul.mubr.f32.gmra.mrb[0].mxu0 %v1007
  %v1174 = vpop.f32.mrb[0].mxu0
  %v1175 = vadd.f32 %v986, %v1174
  %v1176 = vpop.f32.mrb[0].mxu0
  %v1177 = vadd.f32 %v990, %v1176
  %1178 = vmatprep.mubr.f32.mxu0 0.0
  %1179 = vmatmul.mubr.f32.gmra.mrb[0].mxu0 %v1010
  %v1180 = vpop.f32.mrb[0].mxu0
  %v1181 = vadd.f32 %v986, %v1180
  %v1182 = vpop.f32.mrb[0].mxu0
  %v1183 = vadd.f32 %v990, %v1182
  %1184 = vdwg.mxu0
  %1185 = vst [vmem:[#allocation2] sm:$0xff] %v1151
  %1186 = vst.msk [vmem:[#allocation2 + $0x8] sm:$0xff] %vm378, %v1153
  %1187 = vst [vmem:[#allocation2 + $0x10] sm:$0xff] %v1157
  %1188 = vst.msk [vmem:[#allocation2 + $0x18] sm:$0xff] %vm378, %v1159
  %1189 = vst [vmem:[#allocation2 + $0x20] sm:$0xff] %v1163
  %1190 = vst.msk [vmem:[#allocation2 + $0x28] sm:$0xff] %vm378, %v1165
  %1191 = vst [vmem:[#allocation2 + $0x30] sm:$0xff] %v1169
  %1192 = vst.msk [vmem:[#allocation2 + $0x38] sm:$0xff] %vm378, %v1171
  %1193 = vst [vmem:[#allocation2 + $0x40] sm:$0xff] %v1175
  %1194 = vst.msk [vmem:[#allocation2 + $0x48] sm:$0xff] %vm378, %v1177
  %1195 = vst [vmem:[#allocation2 + $0x50] sm:$0xff] %v1181
  %1196 = vst.msk [vmem:[#allocation2 + $0x58] sm:$0xff] %vm378, %v1183
  %v1197 = vld [vmem:[%s5] sm:$0xff]
  %v1198 = vld [vmem:[%s5 + $0x8] sm:$0xff]
  %v1199 = vld [vmem:[%s5 + $0x10] sm:$0xff]
  %v1200 = vld [vmem:[%s5 + $0x18] sm:$0xff]
  %v1201 = vld [vmem:[%s5 + $0x20] sm:$0xff]
  %v1202 = vld [vmem:[%s5 + $0x28] sm:$0xff]
  %v1203 = vld [vmem:[%s5 + $0x30] sm:$0xff]
  %v1204 = vld [vmem:[%s5 + $0x38] sm:$0xff]
  %v1205 = vld [vmem:[%s5 + $0x40] sm:$0xff]
  %v1206 = vld [vmem:[%s5 + $0x48] sm:$0xff]
  %v1207 = vld [vmem:[%s5 + $0x50] sm:$0xff]
  %v1208 = vld [vmem:[%s5 + $0x58] sm:$0xff]
  %v1209 = vld [vmem:[%s6] sm:$0xff]
  %v1210 = vld [vmem:[%s6 + $0x8] sm:$0xff]
  %v1211 = vld [vmem:[%s6 + $0x10] sm:$0xff]
  %v1212 = vld [vmem:[%s6 + $0x18] sm:$0xff]
  %v1213 = vld [vmem:[%s6 + $0x20] sm:$0xff]
  %v1214 = vld [vmem:[%s6 + $0x28] sm:$0xff]
  %v1215 = vld [vmem:[%s6 + $0x30] sm:$0xff]
  %v1216 = vld [vmem:[%s6 + $0x38] sm:$0xff]
  %v1217 = vld [vmem:[%s6 + $0x40] sm:$0xff]
  %v1218 = vld [vmem:[%s6 + $0x48] sm:$0xff]
  %v1219 = vld [vmem:[%s6 + $0x50] sm:$0xff]
  %v1220 = vld [vmem:[%s6 + $0x58] sm:$0xff]
  %v1221 = vld [vmem:[%s7] sm:$0x1]
  %v1222 = vld [vmem:[%s8] sm:$0x1]
  %s1223 = smul.u32 0, 2
  %s1224 = smul.addr %s1223, 8
  %s1225 = scalar_lea.vmem [#allocation2], %s1224
  %v1226 = vld [vmem:[%s1225] sm:$0xff]
  %s1227 = smul.u32 5, 2
  %s1228 = smul.addr %s1227, 8
  %s1229 = scalar_lea.vmem [#allocation2], %s1228
  %v1230 = vld [vmem:[%s1229] sm:$0xff]
  %v1231 = vld [vmem:[%s1229 + $0x8] sm:$0xff]
  %v1233 = vsel %vm993, 0.0, 0
  %v1236 = vsel %vm993, %v1197, 0
  %v1239 = vsel %vm993, %v1198, 0
  %v1242 = vsel %vm993, %v1199, 0
  %v1245 = vsel %vm993, %v1200, 0
  %v1248 = vsel %vm993, %v1201, 0
  %v1251 = vsel %vm993, %v1202, 0
  %v1254 = vsel %vm993, %v1203, 0
  %v1257 = vsel %vm993, %v1204, 0
  %v1260 = vsel %vm993, %v1205, 0
  %v1263 = vsel %vm993, %v1206, 0
  %v1266 = vsel %vm993, %v1207, 0
  %v1269 = vsel %vm993, %v1208, 0
  %1271 = vmatprep.subr.mxu0 0.0
  %1272 = vmatpush1.xpose.msra.mxu0 %v1236
  %1273 = vmatprep.subr.mxu0 0.0
  %1274 = vmatpush1.xpose.msra.mxu0 %v1239
  %1275 = vmatprep.subr.mxu0 0.0
  %1276 = vmatpush1.xpose.msra.mxu0 %v1242
  %1277 = vmatprep.subr.mxu0 0.0
  %1278 = vmatpush1.xpose.msra.mxu0 %v1245
  %1279 = vmatprep.subr.mxu0 0.0
  %1280 = vmatpush1.xpose.msra.mxu0 %v1248
  %1281 = vmatprep.subr.mxu0 0.0
  %1282 = vmatpush1.xpose.msra.mxu0 %v1251
  %1283 = vmatprep.subr.mxu0 0.0
  %1284 = vmatpush1.xpose.msra.mxu0 %v1254
  %1285 = vmatprep.subr.mxu0 0.0
  %1286 = vmatpush1.xpose.msra.mxu0 %v1257
  %1287 = vmatprep.subr.mxu0 0.0
  %1288 = vmatpush1.xpose.msra.mxu0 %v1260
  %1289 = vmatprep.subr.mxu0 0.0
  %1290 = vmatpush1.xpose.msra.mxu0 %v1263
  %1291 = vmatprep.subr.mxu0 0.0
  %1292 = vmatpush1.xpose.msra.mxu0 %v1266
  %1293 = vmatprep.subr.mxu0 0.0
  %1294 = vmatpush1.xpose.msra.mxu0 %v1269
  %1295 = vmatprep.subr.mxu0 0.0
  %1296 = vmatpush1.xpose.msra.mxu0 0.0
  %1297 = vmatprep.subr.mxu0 0.0
  %1298 = vmatpush1.xpose.msra.mxu0 0.0
  %1299 = vmatprep.subr.mxu0 0.0
  %1300 = vmatpush1.xpose.msra.mxu0 0.0
  %1301 = vmatprep.subr.mxu0 0.0
  %1302 = vmatpush1.xpose.msra.mxu0 0.0
  %1303 = vmatprep.subr.mxu0 0.0
  %1304 = vmatpush1.xpose.msra.mxu0 0.0
  %1305 = vmatprep.subr.mxu0 0.0
  %1306 = vmatpush1.xpose.msra.mxu0 0.0
  %1307 = vmatprep.subr.mxu0 0.0
  %1308 = vmatpush1.xpose.msra.mxu0 0.0
  %1309 = vmatprep.subr.mxu0 0.0
  %1310 = vmatpush1.xpose.msra.mxu0 0.0
  %1311 = vmatprep.subr.mxu0 0.0
  %1312 = vmatpush1.xpose.msra.mxu0 0.0
  %1313 = vmatprep.subr.mxu0 0.0
  %1314 = vmatpush1.xpose.msra.mxu0 0.0
  %1315 = vmatprep.subr.mxu0 0.0
  %1316 = vmatpush1.xpose.msra.mxu0 0.0
  %1317 = vmatprep.subr.mxu0 0.0
  %1318 = vmatpush1.xpose.msra.mxu0 0.0
  %1319 = vmatprep.subr.mxu0 0.0
  %1320 = vmatpush1.xpose.msra.mxu0 0.0
  %1321 = vmatprep.subr.mxu0 0.0
  %1322 = vmatpush1.xpose.msra.mxu0 0.0
  %1323 = vmatprep.subr.mxu0 0.0
  %1324 = vmatpush1.xpose.msra.mxu0 0.0
  %1325 = vmatprep.subr.mxu0 0.0
  %1326 = vmatpush1.xpose.msra.mxu0 0.0
  %1327 = vmatprep.subr.mxu0 0.0
  %1328 = vmatpush1.xpose.msra.mxu0 0.0
  %1329 = vmatprep.subr.mxu0 0.0
  %1330 = vmatpush1.xpose.msra.mxu0 0.0
  %1331 = vmatprep.subr.mxu0 0.0
  %1332 = vmatpush1.xpose.msra.mxu0 0.0
  %1333 = vmatprep.subr.mxu0 0.0
  %1334 = vmatpush1.xpose.msra.mxu0 0.0
  %1335 = vmatprep.mubr.f32.mxu0 0.0
  %1336 = vmatmul.mubr.f32.gmra.mrb[0].mxu0 %v1233
  %v1337 = vpop.f32.mrb[0].mxu0
  %v1338 = vadd.f32 0.0, %v1337
  %v1339 = vpop.f32.mrb[0].mxu0
  %1340 = vdwg.mxu0
  %v1342 = vsel %vm993, %v1209, 0
  %v1345 = vsel %vm993, %v1210, 0
  %v1348 = vsel %vm993, %v1211, 0
  %v1351 = vsel %vm993, %v1212, 0
  %v1354 = vsel %vm993, %v1213, 0
  %v1357 = vsel %vm993, %v1214, 0
  %v1360 = vsel %vm993, %v1215, 0
  %v1363 = vsel %vm993, %v1216, 0
  %v1366 = vsel %vm993, %v1217, 0
  %v1369 = vsel %vm993, %v1218, 0
  %v1372 = vsel %vm993, %v1219, 0
  %v1375 = vsel %vm993, %v1220, 0
  %1377 = vmatprep.subr.mxu0 0.0
  %1378 = vmatpush1.xpose.msra.mxu0 %v1342
  %1379 = vmatprep.subr.mxu0 0.0
  %1380 = vmatpush1.xpose.msra.mxu0 %v1345
  %1381 = vmatprep.subr.mxu0 0.0
  %1382 = vmatpush1.xpose.msra.mxu0 %v1348
  %1383 = vmatprep.subr.mxu0 0.0
  %1384 = vmatpush1.xpose.msra.mxu0 %v1351
  %1385 = vmatprep.subr.mxu0 0.0
  %1386 = vmatpush1.xpose.msra.mxu0 %v1354
  %1387 = vmatprep.subr.mxu0 0.0
  %1388 = vmatpush1.xpose.msra.mxu0 %v1357
  %1389 = vmatprep.subr.mxu0 0.0
  %1390 = vmatpush1.xpose.msra.mxu0 %v1360
  %1391 = vmatprep.subr.mxu0 0.0
  %1392 = vmatpush1.xpose.msra.mxu0 %v1363
  %1393 = vmatprep.subr.mxu0 0.0
  %1394 = vmatpush1.xpose.msra.mxu0 %v1366
  %1395 = vmatprep.subr.mxu0 0.0
  %1396 = vmatpush1.xpose.msra.mxu0 %v1369
  %1397 = vmatprep.subr.mxu0 0.0
  %1398 = vmatpush1.xpose.msra.mxu0 %v1372
  %1399 = vmatprep.subr.mxu0 0.0
  %1400 = vmatpush1.xpose.msra.mxu0 %v1375
  %1401 = vmatprep.subr.mxu0 0.0
  %1402 = vmatpush1.xpose.msra.mxu0 0.0
  %1403 = vmatprep.subr.mxu0 0.0
  %1404 = vmatpush1.xpose.msra.mxu0 0.0
  %1405 = vmatprep.subr.mxu0 0.0
  %1406 = vmatpush1.xpose.msra.mxu0 0.0
  %1407 = vmatprep.subr.mxu0 0.0
  %1408 = vmatpush1.xpose.msra.mxu0 0.0
  %1409 = vmatprep.subr.mxu0 0.0
  %1410 = vmatpush1.xpose.msra.mxu0 0.0
  %1411 = vmatprep.subr.mxu0 0.0
  %1412 = vmatpush1.xpose.msra.mxu0 0.0
  %1413 = vmatprep.subr.mxu0 0.0
  %1414 = vmatpush1.xpose.msra.mxu0 0.0
  %1415 = vmatprep.subr.mxu0 0.0
  %1416 = vmatpush1.xpose.msra.mxu0 0.0
  %1417 = vmatprep.subr.mxu0 0.0
  %1418 = vmatpush1.xpose.msra.mxu0 0.0
  %1419 = vmatprep.subr.mxu0 0.0
  %1420 = vmatpush1.xpose.msra.mxu0 0.0
  %1421 = vmatprep.subr.mxu0 0.0
  %1422 = vmatpush1.xpose.msra.mxu0 0.0
  %1423 = vmatprep.subr.mxu0 0.0
  %1424 = vmatpush1.xpose.msra.mxu0 0.0
  %1425 = vmatprep.subr.mxu0 0.0
  %1426 = vmatpush1.xpose.msra.mxu0 0.0
  %1427 = vmatprep.subr.mxu0 0.0
  %1428 = vmatpush1.xpose.msra.mxu0 0.0
  %1429 = vmatprep.subr.mxu0 0.0
  %1430 = vmatpush1.xpose.msra.mxu0 0.0
  %1431 = vmatprep.subr.mxu0 0.0
  %1432 = vmatpush1.xpose.msra.mxu0 0.0
  %1433 = vmatprep.subr.mxu0 0.0
  %1434 = vmatpush1.xpose.msra.mxu0 0.0
  %1435 = vmatprep.subr.mxu0 0.0
  %1436 = vmatpush1.xpose.msra.mxu0 0.0
  %1437 = vmatprep.subr.mxu0 0.0
  %1438 = vmatpush1.xpose.msra.mxu0 0.0
  %1439 = vmatprep.subr.mxu0 0.0
  %1440 = vmatpush1.xpose.msra.mxu0 0.0
  %1441 = vmatprep.mubr.f32.mxu0 0.0
  %1442 = vmatmul.mubr.f32.gmra.mrb[0].mxu0 %v1233
  %v1443 = vpop.f32.mrb[0].mxu0
  %v1444 = vadd.f32 0.0, %v1443
  %v1445 = vpop.f32.mrb[0].mxu0
  %1446 = vdwg.mxu0
  %v1447 = vadd.f32 %v1226, %v1338
  %v1448 = vxor.u32 %v1447, 2147483648
  %v1449 = vmul.f32 %v1448, 1.442695
  %v1450 = vpow.pop %v1449
  %v1451 = vadd.f32 %v1450, 1.0
  %v1452 = vrcp.pop %v1451
  %v1453 = vmul.f32 1.0, %v1452
  %v1455 = vlaneseq
  %v1456 = vshrl.u32 %v1455, 7
  %v1457 = vsub.s32 0, %v1456
  %v1458 = vrot.slane %v1221, %v1457
  %1459 = vrot.lane.b32.xlu0 %v1458, 64
  %v1460 = vpop.permute.xlu0 %1459
  %v1462 = vadd.f32 %v1338, %v1460
  %1464 = vrot.lane.b32.xlu0 %v1462, 64
  %v1465 = vpop.permute.xlu0 %1464
  %v1467 = vmul.f32 %v1453, %v1465
  %1469 = vrot.lane.b32.xlu0 %v1467, 64
  %v1470 = vpop.permute.xlu0 %1469
  %v1472 = vadd.f32 %v1226, %v1470
  %v1473 = vtanh.pop %v1472
  %v1474 = vsub.f32 1.0, %v1453
  %1476 = vrot.lane.b32.xlu0 %v1473, 96
  %v1477 = vpop.permute.xlu0 %1476
  %v1479 = vmul.f32 %v1474, %v1477
  %v1480 = vmul.f32 %v1453, 0.0
  %v1481 = vadd.f32 %v1479, %v1480
  %1483 = vrot.lane.b32.xlu0 %v1444, 96
  %v1484 = vpop.permute.xlu0 %1483
  %v1486 = vadd.f32 %v1230, %v1484
  %v1487 = vxor.u32 %v1486, 2147483648
  %v1488 = vmul.f32 %v1487, 1.442695
  %v1489 = vpow.pop %v1488
  %v1490 = vadd.f32 %v1489, 1.0
  %v1491 = vrcp.pop %v1490
  %v1492 = vmul.f32 1.0, %v1491
  %v1493 = vadd.f32 %v1231, %v1484
  %v1494 = vxor.u32 %v1493, 2147483648
  %v1495 = vmul.f32 %v1494, 1.442695
  %v1496 = vpow.pop %v1495
  %v1497 = vadd.f32 %v1496, 1.0
  %v1498 = vrcp.pop %v1497
  %v1499 = vmul.f32 1.0, %v1498
  %v1501 = vlaneseq
  %v1502 = vshrl.u32 %v1501, 7
  %v1503 = vsub.s32 0, %v1502
  %v1504 = vrot.slane %v1222, %v1503
  %1505 = vrot.lane.b32.xlu0 %v1504, 64
  %v1506 = vpop.permute.xlu0 %1505
  %v1508 = vadd.f32 %v1444, %v1506
  %1510 = vrot.lane.b32.xlu0 %v1508, 32
  %v1511 = vpop.permute.xlu0 %1510
  %v1513 = vmul.f32 %v1492, %v1511
  %1515 = vrot.lane.b32.xlu0 %v1513, 64
  %v1516 = vpop.permute.xlu0 %1515
  %v1518 = vadd.f32 %v1231, %v1516
  %v1519 = vtanh.pop %v1518
  %v1520 = vsub.f32 1.0, %v1499
  %1522 = vrot.lane.b32.xlu0 %v1519, 96
  %v1523 = vpop.permute.xlu0 %1522
  %v1525 = vmul.f32 %v1520, %v1523
  %v1526 = vmul.f32 %v1499, 0.0
  %v1527 = vadd.f32 %v1525, %v1526
  %1529 = vrot.lane.b32.xlu0 %v1481, 96
  %v1530 = vpop.permute.xlu0 %1529
  %1532 = vst.msk [vmem:[%s9] sm:$0xff] %vm993, %v1530
  %s1533 = scalar_lea.vmem [#allocation3], 40
  %1534 = vst.msk [vmem:[%s1533] sm:$0xff] %vm993, %v1527
  %s1535 = smul.u32 1, 2
  %s1536 = smul.addr %s1535, 8
  %s1537 = scalar_lea.vmem [#allocation2], %s1536
  %v1538 = vld [vmem:[%s1537] sm:$0xff]
  %s1539 = smul.u32 4, 2
  %s1540 = smul.addr %s1539, 8
  %s1541 = scalar_lea.vmem [#allocation2], %s1540
  %v1542 = vld [vmem:[%s1541] sm:$0xff]
  %v1543 = vld [vmem:[%s1541 + $0x8] sm:$0xff]
  %v1544 = vsel %vm993, %v1530, 0
  %1546 = vmatprep.subr.mxu0 0.0
  %1547 = vmatpush1.xpose.msra.mxu0 %v1236
  %1548 = vmatprep.subr.mxu0 0.0
  %1549 = vmatpush1.xpose.msra.mxu0 %v1239
  %1550 = vmatprep.subr.mxu0 0.0
  %1551 = vmatpush1.xpose.msra.mxu0 %v1242
  %1552 = vmatprep.subr.mxu0 0.0
  %1553 = vmatpush1.xpose.msra.mxu0 %v1245
  %1554 = vmatprep.subr.mxu0 0.0
  %1555 = vmatpush1.xpose.msra.mxu0 %v1248
  %1556 = vmatprep.subr.mxu0 0.0
  %1557 = vmatpush1.xpose.msra.mxu0 %v1251
  %1558 = vmatprep.subr.mxu0 0.0
  %1559 = vmatpush1.xpose.msra.mxu0 %v1254
  %1560 = vmatprep.subr.mxu0 0.0
  %1561 = vmatpush1.xpose.msra.mxu0 %v1257
  %1562 = vmatprep.subr.mxu0 0.0
  %1563 = vmatpush1.xpose.msra.mxu0 %v1260
  %1564 = vmatprep.subr.mxu0 0.0
  %1565 = vmatpush1.xpose.msra.mxu0 %v1263
  %1566 = vmatprep.subr.mxu0 0.0
  %1567 = vmatpush1.xpose.msra.mxu0 %v1266
  %1568 = vmatprep.subr.mxu0 0.0
  %1569 = vmatpush1.xpose.msra.mxu0 %v1269
  %1570 = vmatprep.subr.mxu0 0.0
  %1571 = vmatpush1.xpose.msra.mxu0 0.0
  %1572 = vmatprep.subr.mxu0 0.0
  %1573 = vmatpush1.xpose.msra.mxu0 0.0
  %1574 = vmatprep.subr.mxu0 0.0
  %1575 = vmatpush1.xpose.msra.mxu0 0.0
  %1576 = vmatprep.subr.mxu0 0.0
  %1577 = vmatpush1.xpose.msra.mxu0 0.0
  %1578 = vmatprep.subr.mxu0 0.0
  %1579 = vmatpush1.xpose.msra.mxu0 0.0
  %1580 = vmatprep.subr.mxu0 0.0
  %1581 = vmatpush1.xpose.msra.mxu0 0.0
  %1582 = vmatprep.subr.mxu0 0.0
  %1583 = vmatpush1.xpose.msra.mxu0 0.0
  %1584 = vmatprep.subr.mxu0 0.0
  %1585 = vmatpush1.xpose.msra.mxu0 0.0
  %1586 = vmatprep.subr.mxu0 0.0
  %1587 = vmatpush1.xpose.msra.mxu0 0.0
  %1588 = vmatprep.subr.mxu0 0.0
  %1589 = vmatpush1.xpose.msra.mxu0 0.0
  %1590 = vmatprep.subr.mxu0 0.0
  %1591 = vmatpush1.xpose.msra.mxu0 0.0
  %1592 = vmatprep.subr.mxu0 0.0
  %1593 = vmatpush1.xpose.msra.mxu0 0.0
  %1594 = vmatprep.subr.mxu0 0.0
  %1595 = vmatpush1.xpose.msra.mxu0 0.0
  %1596 = vmatprep.subr.mxu0 0.0
  %1597 = vmatpush1.xpose.msra.mxu0 0.0
  %1598 = vmatprep.subr.mxu0 0.0
  %1599 = vmatpush1.xpose.msra.mxu0 0.0
  %1600 = vmatprep.subr.mxu0 0.0
  %1601 = vmatpush1.xpose.msra.mxu0 0.0
  %1602 = vmatprep.subr.mxu0 0.0
  %1603 = vmatpush1.xpose.msra.mxu0 0.0
  %1604 = vmatprep.subr.mxu0 0.0
  %1605 = vmatpush1.xpose.msra.mxu0 0.0
  %1606 = vmatprep.subr.mxu0 0.0
  %1607 = vmatpush1.xpose.msra.mxu0 0.0
  %1608 = vmatprep.subr.mxu0 0.0
  %1609 = vmatpush1.xpose.msra.mxu0 0.0
  %1610 = vmatprep.mubr.f32.mxu0 0.0
  %1611 = vmatmul.mubr.f32.gmra.mrb[0].mxu0 %v1544
  %v1612 = vpop.f32.mrb[0].mxu0
  %v1613 = vadd.f32 0.0, %v1612
  %v1614 = vpop.f32.mrb[0].mxu0
  %1615 = vdwg.mxu0
  %v1617 = vsel %vm993, %v1527, 0
  %1619 = vmatprep.subr.mxu0 0.0
  %1620 = vmatpush1.xpose.msra.mxu0 %v1342
  %1621 = vmatprep.subr.mxu0 0.0
  %1622 = vmatpush1.xpose.msra.mxu0 %v1345
  %1623 = vmatprep.subr.mxu0 0.0
  %1624 = vmatpush1.xpose.msra.mxu0 %v1348
  %1625 = vmatprep.subr.mxu0 0.0
  %1626 = vmatpush1.xpose.msra.mxu0 %v1351
  %1627 = vmatprep.subr.mxu0 0.0
  %1628 = vmatpush1.xpose.msra.mxu0 %v1354
  %1629 = vmatprep.subr.mxu0 0.0
  %1630 = vmatpush1.xpose.msra.mxu0 %v1357
  %1631 = vmatprep.subr.mxu0 0.0
  %1632 = vmatpush1.xpose.msra.mxu0 %v1360
  %1633 = vmatprep.subr.mxu0 0.0
  %1634 = vmatpush1.xpose.msra.mxu0 %v1363
  %1635 = vmatprep.subr.mxu0 0.0
  %1636 = vmatpush1.xpose.msra.mxu0 %v1366
  %1637 = vmatprep.subr.mxu0 0.0
  %1638 = vmatpush1.xpose.msra.mxu0 %v1369
  %1639 = vmatprep.subr.mxu0 0.0
  %1640 = vmatpush1.xpose.msra.mxu0 %v1372
  %1641 = vmatprep.subr.mxu0 0.0
  %1642 = vmatpush1.xpose.msra.mxu0 %v1375
  %1643 = vmatprep.subr.mxu0 0.0
  %1644 = vmatpush1.xpose.msra.mxu0 0.0
  %1645 = vmatprep.subr.mxu0 0.0
  %1646 = vmatpush1.xpose.msra.mxu0 0.0
  %1647 = vmatprep.subr.mxu0 0.0
  %1648 = vmatpush1.xpose.msra.mxu0 0.0
  %1649 = vmatprep.subr.mxu0 0.0
  %1650 = vmatpush1.xpose.msra.mxu0 0.0
  %1651 = vmatprep.subr.mxu0 0.0
  %1652 = vmatpush1.xpose.msra.mxu0 0.0
  %1653 = vmatprep.subr.mxu0 0.0
  %1654 = vmatpush1.xpose.msra.mxu0 0.0
  %1655 = vmatprep.subr.mxu0 0.0
  %1656 = vmatpush1.xpose.msra.mxu0 0.0
  %1657 = vmatprep.subr.mxu0 0.0
  %1658 = vmatpush1.xpose.msra.mxu0 0.0
  %1659 = vmatprep.subr.mxu0 0.0
  %1660 = vmatpush1.xpose.msra.mxu0 0.0
  %1661 = vmatprep.subr.mxu0 0.0
  %1662 = vmatpush1.xpose.msra.mxu0 0.0
  %1663 = vmatprep.subr.mxu0 0.0
  %1664 = vmatpush1.xpose.msra.mxu0 0.0
  %1665 = vmatprep.subr.mxu0 0.0
  %1666 = vmatpush1.xpose.msra.mxu0 0.0
  %1667 = vmatprep.subr.mxu0 0.0
  %1668 = vmatpush1.xpose.msra.mxu0 0.0
  %1669 = vmatprep.subr.mxu0 0.0
  %1670 = vmatpush1.xpose.msra.mxu0 0.0
  %1671 = vmatprep.subr.mxu0 0.0
  %1672 = vmatpush1.xpose.msra.mxu0 0.0
  %1673 = vmatprep.subr.mxu0 0.0
  %1674 = vmatpush1.xpose.msra.mxu0 0.0
  %1675 = vmatprep.subr.mxu0 0.0
  %1676 = vmatpush1.xpose.msra.mxu0 0.0
  %1677 = vmatprep.subr.mxu0 0.0
  %1678 = vmatpush1.xpose.msra.mxu0 0.0
  %1679 = vmatprep.subr.mxu0 0.0
  %1680 = vmatpush1.xpose.msra.mxu0 0.0
  %1681 = vmatprep.subr.mxu0 0.0
  %1682 = vmatpush1.xpose.msra.mxu0 0.0
  %1683 = vmatprep.mubr.f32.mxu0 0.0
  %1684 = vmatmul.mubr.f32.gmra.mrb[0].mxu0 %v1617
  %v1685 = vpop.f32.mrb[0].mxu0
  %v1686 = vadd.f32 0.0, %v1685
  %v1687 = vpop.f32.mrb[0].mxu0
  %1688 = vdwg.mxu0
  %v1689 = vadd.f32 %v1538, %v1613
  %v1690 = vxor.u32 %v1689, 2147483648
  %v1691 = vmul.f32 %v1690, 1.442695
  %v1692 = vpow.pop %v1691
  %v1693 = vadd.f32 %v1692, 1.0
  %v1694 = vrcp.pop %v1693
  %v1695 = vmul.f32 1.0, %v1694
  %v1696 = vadd.f32 %v1613, %v1460
  %1698 = vrot.lane.b32.xlu0 %v1696, 64
  %v1699 = vpop.permute.xlu0 %1698
  %v1701 = vmul.f32 %v1695, %v1699
  %1703 = vrot.lane.b32.xlu0 %v1701, 64
  %v1704 = vpop.permute.xlu0 %1703
  %v1706 = vadd.f32 %v1538, %v1704
  %v1707 = vtanh.pop %v1706
  %v1708 = vsub.f32 1.0, %v1695
  %1710 = vrot.lane.b32.xlu0 %v1707, 96
  %v1711 = vpop.permute.xlu0 %1710
  %v1713 = vmul.f32 %v1708, %v1711
  %v1714 = vmul.f32 %v1695, %v1481
  %v1715 = vadd.f32 %v1713, %v1714
  %1717 = vrot.lane.b32.xlu0 %v1686, 96
  %v1718 = vpop.permute.xlu0 %1717
  %v1720 = vadd.f32 %v1542, %v1718
  %v1721 = vxor.u32 %v1720, 2147483648
  %v1722 = vmul.f32 %v1721, 1.442695
  %v1723 = vpow.pop %v1722
  %v1724 = vadd.f32 %v1723, 1.0
  %v1725 = vrcp.pop %v1724
  %v1726 = vmul.f32 1.0, %v1725
  %v1727 = vadd.f32 %v1543, %v1718
  %v1728 = vxor.u32 %v1727, 2147483648
  %v1729 = vmul.f32 %v1728, 1.442695
  %v1730 = vpow.pop %v1729
  %v1731 = vadd.f32 %v1730, 1.0
  %v1732 = vrcp.pop %v1731
  %v1733 = vmul.f32 1.0, %v1732
  %v1734 = vadd.f32 %v1686, %v1506
  %1736 = vrot.lane.b32.xlu0 %v1734, 32
  %v1737 = vpop.permute.xlu0 %1736
  %v1739 = vmul.f32 %v1726, %v1737
  %1741 = vrot.lane.b32.xlu0 %v1739, 64
  %v1742 = vpop.permute.xlu0 %1741
  %v1744 = vadd.f32 %v1543, %v1742
  %v1745 = vtanh.pop %v1744
  %v1746 = vsub.f32 1.0, %v1733
  %1748 = vrot.lane.b32.xlu0 %v1745, 96
  %v1749 = vpop.permute.xlu0 %1748
  %v1751 = vmul.f32 %v1746, %v1749
  %v1752 = vmul.f32 %v1733, %v1527
  %v1753 = vadd.f32 %v1751, %v1752
  %1755 = vrot.lane.b32.xlu0 %v1715, 96
  %v1756 = vpop.permute.xlu0 %1755
  %s1758 = scalar_lea.vmem %s9, 8
  %1759 = vst.msk [vmem:[%s1758] sm:$0xff] %vm993, %v1756
  %s1760 = scalar_lea.vmem [#allocation3], 32
  %1761 = vst.msk [vmem:[%s1760] sm:$0xff] %vm993, %v1753
  %s1762 = smul.u32 2, 2
  %s1763 = smul.addr %s1762, 8
  %s1764 = scalar_lea.vmem [#allocation2], %s1763
  %v1765 = vld [vmem:[%s1764] sm:$0xff]
  %s1766 = smul.u32 3, 2
  %s1767 = smul.addr %s1766, 8
  %s1768 = scalar_lea.vmem [#allocation2], %s1767
  %v1769 = vld [vmem:[%s1768] sm:$0xff]
  %v1770 = vld [vmem:[%s1768 + $0x8] sm:$0xff]
  %v1771 = vsel %vm993, %v1756, 0
  %1773 = vmatprep.subr.mxu0 0.0
  %1774 = vmatpush1.xpose.msra.mxu0 %v1236
  %1775 = vmatprep.subr.mxu0 0.0
  %1776 = vmatpush1.xpose.msra.mxu0 %v1239
  %1777 = vmatprep.subr.mxu0 0.0
  %1778 = vmatpush1.xpose.msra.mxu0 %v1242
  %1779 = vmatprep.subr.mxu0 0.0
  %1780 = vmatpush1.xpose.msra.mxu0 %v1245
  %1781 = vmatprep.subr.mxu0 0.0
  %1782 = vmatpush1.xpose.msra.mxu0 %v1248
  %1783 = vmatprep.subr.mxu0 0.0
  %1784 = vmatpush1.xpose.msra.mxu0 %v1251
  %1785 = vmatprep.subr.mxu0 0.0
  %1786 = vmatpush1.xpose.msra.mxu0 %v1254
  %1787 = vmatprep.subr.mxu0 0.0
  %1788 = vmatpush1.xpose.msra.mxu0 %v1257
  %1789 = vmatprep.subr.mxu0 0.0
  %1790 = vmatpush1.xpose.msra.mxu0 %v1260
  %1791 = vmatprep.subr.mxu0 0.0
  %1792 = vmatpush1.xpose.msra.mxu0 %v1263
  %1793 = vmatprep.subr.mxu0 0.0
  %1794 = vmatpush1.xpose.msra.mxu0 %v1266
  %1795 = vmatprep.subr.mxu0 0.0
  %1796 = vmatpush1.xpose.msra.mxu0 %v1269
  %1797 = vmatprep.subr.mxu0 0.0
  %1798 = vmatpush1.xpose.msra.mxu0 0.0
  %1799 = vmatprep.subr.mxu0 0.0
  %1800 = vmatpush1.xpose.msra.mxu0 0.0
  %1801 = vmatprep.subr.mxu0 0.0
  %1802 = vmatpush1.xpose.msra.mxu0 0.0
  %1803 = vmatprep.subr.mxu0 0.0
  %1804 = vmatpush1.xpose.msra.mxu0 0.0
  %1805 = vmatprep.subr.mxu0 0.0
  %1806 = vmatpush1.xpose.msra.mxu0 0.0
  %1807 = vmatprep.subr.mxu0 0.0
  %1808 = vmatpush1.xpose.msra.mxu0 0.0
  %1809 = vmatprep.subr.mxu0 0.0
  %1810 = vmatpush1.xpose.msra.mxu0 0.0
  %1811 = vmatprep.subr.mxu0 0.0
  %1812 = vmatpush1.xpose.msra.mxu0 0.0
  %1813 = vmatprep.subr.mxu0 0.0
  %1814 = vmatpush1.xpose.msra.mxu0 0.0
  %1815 = vmatprep.subr.mxu0 0.0
  %1816 = vmatpush1.xpose.msra.mxu0 0.0
  %1817 = vmatprep.subr.mxu0 0.0
  %1818 = vmatpush1.xpose.msra.mxu0 0.0
  %1819 = vmatprep.subr.mxu0 0.0
  %1820 = vmatpush1.xpose.msra.mxu0 0.0
  %1821 = vmatprep.subr.mxu0 0.0
  %1822 = vmatpush1.xpose.msra.mxu0 0.0
  %1823 = vmatprep.subr.mxu0 0.0
  %1824 = vmatpush1.xpose.msra.mxu0 0.0
  %1825 = vmatprep.subr.mxu0 0.0
  %1826 = vmatpush1.xpose.msra.mxu0 0.0
  %1827 = vmatprep.subr.mxu0 0.0
  %1828 = vmatpush1.xpose.msra.mxu0 0.0
  %1829 = vmatprep.subr.mxu0 0.0
  %1830 = vmatpush1.xpose.msra.mxu0 0.0
  %1831 = vmatprep.subr.mxu0 0.0
  %1832 = vmatpush1.xpose.msra.mxu0 0.0
  %1833 = vmatprep.subr.mxu0 0.0
  %1834 = vmatpush1.xpose.msra.mxu0 0.0
  %1835 = vmatprep.subr.mxu0 0.0
  %1836 = vmatpush1.xpose.msra.mxu0 0.0
  %1837 = vmatprep.mubr.f32.mxu0 0.0
  %1838 = vmatmul.mubr.f32.gmra.mrb[0].mxu0 %v1771
  %v1839 = vpop.f32.mrb[0].mxu0
  %v1840 = vadd.f32 0.0, %v1839
  %v1841 = vpop.f32.mrb[0].mxu0
  %1842 = vdwg.mxu0
  %v1844 = vsel %vm993, %v1753, 0
  %1846 = vmatprep.subr.mxu0 0.0
  %1847 = vmatpush1.xpose.msra.mxu0 %v1342
  %1848 = vmatprep.subr.mxu0 0.0
  %1849 = vmatpush1.xpose.msra.mxu0 %v1345
  %1850 = vmatprep.subr.mxu0 0.0
  %1851 = vmatpush1.xpose.msra.mxu0 %v1348
  %1852 = vmatprep.subr.mxu0 0.0
  %1853 = vmatpush1.xpose.msra.mxu0 %v1351
  %1854 = vmatprep.subr.mxu0 0.0
  %1855 = vmatpush1.xpose.msra.mxu0 %v1354
  %1856 = vmatprep.subr.mxu0 0.0
  %1857 = vmatpush1.xpose.msra.mxu0 %v1357
  %1858 = vmatprep.subr.mxu0 0.0
  %1859 = vmatpush1.xpose.msra.mxu0 %v1360
  %1860 = vmatprep.subr.mxu0 0.0
  %1861 = vmatpush1.xpose.msra.mxu0 %v1363
  %1862 = vmatprep.subr.mxu0 0.0
  %1863 = vmatpush1.xpose.msra.mxu0 %v1366
  %1864 = vmatprep.subr.mxu0 0.0
  %1865 = vmatpush1.xpose.msra.mxu0 %v1369
  %1866 = vmatprep.subr.mxu0 0.0
  %1867 = vmatpush1.xpose.msra.mxu0 %v1372
  %1868 = vmatprep.subr.mxu0 0.0
  %1869 = vmatpush1.xpose.msra.mxu0 %v1375
  %1870 = vmatprep.subr.mxu0 0.0
  %1871 = vmatpush1.xpose.msra.mxu0 0.0
  %1872 = vmatprep.subr.mxu0 0.0
  %1873 = vmatpush1.xpose.msra.mxu0 0.0
  %1874 = vmatprep.subr.mxu0 0.0
  %1875 = vmatpush1.xpose.msra.mxu0 0.0
  %1876 = vmatprep.subr.mxu0 0.0
  %1877 = vmatpush1.xpose.msra.mxu0 0.0
  %1878 = vmatprep.subr.mxu0 0.0
  %1879 = vmatpush1.xpose.msra.mxu0 0.0
  %1880 = vmatprep.subr.mxu0 0.0
  %1881 = vmatpush1.xpose.msra.mxu0 0.0
  %1882 = vmatprep.subr.mxu0 0.0
  %1883 = vmatpush1.xpose.msra.mxu0 0.0
  %1884 = vmatprep.subr.mxu0 0.0
  %1885 = vmatpush1.xpose.msra.mxu0 0.0
  %1886 = vmatprep.subr.mxu0 0.0
  %1887 = vmatpush1.xpose.msra.mxu0 0.0
  %1888 = vmatprep.subr.mxu0 0.0
  %1889 = vmatpush1.xpose.msra.mxu0 0.0
  %1890 = vmatprep.subr.mxu0 0.0
  %1891 = vmatpush1.xpose.msra.mxu0 0.0
  %1892 = vmatprep.subr.mxu0 0.0
  %1893 = vmatpush1.xpose.msra.mxu0 0.0
  %1894 = vmatprep.subr.mxu0 0.0
  %1895 = vmatpush1.xpose.msra.mxu0 0.0
  %1896 = vmatprep.subr.mxu0 0.0
  %1897 = vmatpush1.xpose.msra.mxu0 0.0
  %1898 = vmatprep.subr.mxu0 0.0
  %1899 = vmatpush1.xpose.msra.mxu0 0.0
  %1900 = vmatprep.subr.mxu0 0.0
  %1901 = vmatpush1.xpose.msra.mxu0 0.0
  %1902 = vmatprep.subr.mxu0 0.0
  %1903 = vmatpush1.xpose.msra.mxu0 0.0
  %1904 = vmatprep.subr.mxu0 0.0
  %1905 = vmatpush1.xpose.msra.mxu0 0.0
  %1906 = vmatprep.subr.mxu0 0.0
  %1907 = vmatpush1.xpose.msra.mxu0 0.0
  %1908 = vmatprep.subr.mxu0 0.0
  %1909 = vmatpush1.xpose.msra.mxu0 0.0
  %1910 = vmatprep.mubr.f32.mxu0 0.0
  %1911 = vmatmul.mubr.f32.gmra.mrb[0].mxu0 %v1844
  %v1912 = vpop.f32.mrb[0].mxu0
  %v1913 = vadd.f32 0.0, %v1912
  %v1914 = vpop.f32.mrb[0].mxu0
  %1915 = vdwg.mxu0
  %v1916 = vadd.f32 %v1765, %v1840
  %v1917 = vxor.u32 %v1916, 2147483648
  %v1918 = vmul.f32 %v1917, 1.442695
  %v1919 = vpow.pop %v1918
  %v1920 = vadd.f32 %v1919, 1.0
  %v1921 = vrcp.pop %v1920
  %v1922 = vmul.f32 1.0, %v1921
  %v1923 = vadd.f32 %v1840, %v1460
  %1925 = vrot.lane.b32.xlu0 %v1923, 64
  %v1926 = vpop.permute.xlu0 %1925
  %v1928 = vmul.f32 %v1922, %v1926
  %1930 = vrot.lane.b32.xlu0 %v1928, 64
  %v1931 = vpop.permute.xlu0 %1930
  %v1933 = vadd.f32 %v1765, %v1931
  %v1934 = vtanh.pop %v1933
  %v1935 = vsub.f32 1.0, %v1922
  %1937 = vrot.lane.b32.xlu0 %v1934, 96
  %v1938 = vpop.permute.xlu0 %1937
  %v1940 = vmul.f32 %v1935, %v1938
  %v1941 = vmul.f32 %v1922, %v1715
  %v1942 = vadd.f32 %v1940, %v1941
  %1944 = vrot.lane.b32.xlu0 %v1913, 96
  %v1945 = vpop.permute.xlu0 %1944
  %v1947 = vadd.f32 %v1769, %v1945
  %v1948 = vxor.u32 %v1947, 2147483648
  %v1949 = vmul.f32 %v1948, 1.442695
  %v1950 = vpow.pop %v1949
  %v1951 = vadd.f32 %v1950, 1.0
  %v1952 = vrcp.pop %v1951
  %v1953 = vmul.f32 1.0, %v1952
  %v1954 = vadd.f32 %v1770, %v1945
  %v1955 = vxor.u32 %v1954, 2147483648
  %v1956 = vmul.f32 %v1955, 1.442695
  %v1957 = vpow.pop %v1956
  %v1958 = vadd.f32 %v1957, 1.0
  %v1959 = vrcp.pop %v1958
  %v1960 = vmul.f32 1.0, %v1959
  %v1961 = vadd.f32 %v1913, %v1506
  %1963 = vrot.lane.b32.xlu0 %v1961, 32
  %v1964 = vpop.permute.xlu0 %1963
  %v1966 = vmul.f32 %v1953, %v1964
  %1968 = vrot.lane.b32.xlu0 %v1966, 64
  %v1969 = vpop.permute.xlu0 %1968
  %v1971 = vadd.f32 %v1770, %v1969
  %v1972 = vtanh.pop %v1971
  %v1973 = vsub.f32 1.0, %v1960
  %1975 = vrot.lane.b32.xlu0 %v1972, 96
  %v1976 = vpop.permute.xlu0 %1975
  %v1978 = vmul.f32 %v1973, %v1976
  %v1979 = vmul.f32 %v1960, %v1753
  %v1980 = vadd.f32 %v1978, %v1979
  %1982 = vrot.lane.b32.xlu0 %v1942, 96
  %v1983 = vpop.permute.xlu0 %1982
  %s1985 = scalar_lea.vmem %s9, 16
  %1986 = vst.msk [vmem:[%s1985] sm:$0xff] %vm993, %v1983
  %s1987 = scalar_lea.vmem [#allocation3], 24
  %1988 = vst.msk [vmem:[%s1987] sm:$0xff] %vm993, %v1980
  %v1989 = vld [vmem:[%s1768] sm:$0xff]
  %v1990 = vld [vmem:[%s1764] sm:$0xff]
  %v1991 = vld [vmem:[%s1764 + $0x8] sm:$0xff]
  %v1992 = vsel %vm993, %v1983, 0
  %1994 = vmatprep.subr.mxu0 0.0
  %1995 = vmatpush1.xpose.msra.mxu0 %v1236
  %1996 = vmatprep.subr.mxu0 0.0
  %1997 = vmatpush1.xpose.msra.mxu0 %v1239
  %1998 = vmatprep.subr.mxu0 0.0
  %1999 = vmatpush1.xpose.msra.mxu0 %v1242
  %2000 = vmatprep.subr.mxu0 0.0
  %2001 = vmatpush1.xpose.msra.mxu0 %v1245
  %2002 = vmatprep.subr.mxu0 0.0
  %2003 = vmatpush1.xpose.msra.mxu0 %v1248
  %2004 = vmatprep.subr.mxu0 0.0
  %2005 = vmatpush1.xpose.msra.mxu0 %v1251
  %2006 = vmatprep.subr.mxu0 0.0
  %2007 = vmatpush1.xpose.msra.mxu0 %v1254
  %2008 = vmatprep.subr.mxu0 0.0
  %2009 = vmatpush1.xpose.msra.mxu0 %v1257
  %2010 = vmatprep.subr.mxu0 0.0
  %2011 = vmatpush1.xpose.msra.mxu0 %v1260
  %2012 = vmatprep.subr.mxu0 0.0
  %2013 = vmatpush1.xpose.msra.mxu0 %v1263
  %2014 = vmatprep.subr.mxu0 0.0
  %2015 = vmatpush1.xpose.msra.mxu0 %v1266
  %2016 = vmatprep.subr.mxu0 0.0
  %2017 = vmatpush1.xpose.msra.mxu0 %v1269
  %2018 = vmatprep.subr.mxu0 0.0
  %2019 = vmatpush1.xpose.msra.mxu0 0.0
  %2020 = vmatprep.subr.mxu0 0.0
  %2021 = vmatpush1.xpose.msra.mxu0 0.0
  %2022 = vmatprep.subr.mxu0 0.0
  %2023 = vmatpush1.xpose.msra.mxu0 0.0
  %2024 = vmatprep.subr.mxu0 0.0
  %2025 = vmatpush1.xpose.msra.mxu0 0.0
  %2026 = vmatprep.subr.mxu0 0.0
  %2027 = vmatpush1.xpose.msra.mxu0 0.0
  %2028 = vmatprep.subr.mxu0 0.0
  %2029 = vmatpush1.xpose.msra.mxu0 0.0
  %2030 = vmatprep.subr.mxu0 0.0
  %2031 = vmatpush1.xpose.msra.mxu0 0.0
  %2032 = vmatprep.subr.mxu0 0.0
  %2033 = vmatpush1.xpose.msra.mxu0 0.0
  %2034 = vmatprep.subr.mxu0 0.0
  %2035 = vmatpush1.xpose.msra.mxu0 0.0
  %2036 = vmatprep.subr.mxu0 0.0
  %2037 = vmatpush1.xpose.msra.mxu0 0.0
  %2038 = vmatprep.subr.mxu0 0.0
  %2039 = vmatpush1.xpose.msra.mxu0 0.0
  %2040 = vmatprep.subr.mxu0 0.0
  %2041 = vmatpush1.xpose.msra.mxu0 0.0
  %2042 = vmatprep.subr.mxu0 0.0
  %2043 = vmatpush1.xpose.msra.mxu0 0.0
  %2044 = vmatprep.subr.mxu0 0.0
  %2045 = vmatpush1.xpose.msra.mxu0 0.0
  %2046 = vmatprep.subr.mxu0 0.0
  %2047 = vmatpush1.xpose.msra.mxu0 0.0
  %2048 = vmatprep.subr.mxu0 0.0
  %2049 = vmatpush1.xpose.msra.mxu0 0.0
  %2050 = vmatprep.subr.mxu0 0.0
  %2051 = vmatpush1.xpose.msra.mxu0 0.0
  %2052 = vmatprep.subr.mxu0 0.0
  %2053 = vmatpush1.xpose.msra.mxu0 0.0
  %2054 = vmatprep.subr.mxu0 0.0
  %2055 = vmatpush1.xpose.msra.mxu0 0.0
  %2056 = vmatprep.subr.mxu0 0.0
  %2057 = vmatpush1.xpose.msra.mxu0 0.0
  %2058 = vmatprep.mubr.f32.mxu0 0.0
  %2059 = vmatmul.mubr.f32.gmra.mrb[0].mxu0 %v1992
  %v2060 = vpop.f32.mrb[0].mxu0
  %v2061 = vadd.f32 0.0, %v2060
  %v2062 = vpop.f32.mrb[0].mxu0
  %2063 = vdwg.mxu0
  %v2065 = vsel %vm993, %v1980, 0
  %2067 = vmatprep.subr.mxu0 0.0
  %2068 = vmatpush1.xpose.msra.mxu0 %v1342
  %2069 = vmatprep.subr.mxu0 0.0
  %2070 = vmatpush1.xpose.msra.mxu0 %v1345
  %2071 = vmatprep.subr.mxu0 0.0
  %2072 = vmatpush1.xpose.msra.mxu0 %v1348
  %2073 = vmatprep.subr.mxu0 0.0
  %2074 = vmatpush1.xpose.msra.mxu0 %v1351
  %2075 = vmatprep.subr.mxu0 0.0
  %2076 = vmatpush1.xpose.msra.mxu0 %v1354
  %2077 = vmatprep.subr.mxu0 0.0
  %2078 = vmatpush1.xpose.msra.mxu0 %v1357
  %2079 = vmatprep.subr.mxu0 0.0
  %2080 = vmatpush1.xpose.msra.mxu0 %v1360
  %2081 = vmatprep.subr.mxu0 0.0
  %2082 = vmatpush1.xpose.msra.mxu0 %v1363
  %2083 = vmatprep.subr.mxu0 0.0
  %2084 = vmatpush1.xpose.msra.mxu0 %v1366
  %2085 = vmatprep.subr.mxu0 0.0
  %2086 = vmatpush1.xpose.msra.mxu0 %v1369
  %2087 = vmatprep.subr.mxu0 0.0
  %2088 = vmatpush1.xpose.msra.mxu0 %v1372
  %2089 = vmatprep.subr.mxu0 0.0
  %2090 = vmatpush1.xpose.msra.mxu0 %v1375
  %2091 = vmatprep.subr.mxu0 0.0
  %2092 = vmatpush1.xpose.msra.mxu0 0.0
  %2093 = vmatprep.subr.mxu0 0.0
  %2094 = vmatpush1.xpose.msra.mxu0 0.0
  %2095 = vmatprep.subr.mxu0 0.0
  %2096 = vmatpush1.xpose.msra.mxu0 0.0
  %2097 = vmatprep.subr.mxu0 0.0
  %2098 = vmatpush1.xpose.msra.mxu0 0.0
  %2099 = vmatprep.subr.mxu0 0.0
  %2100 = vmatpush1.xpose.msra.mxu0 0.0
  %2101 = vmatprep.subr.mxu0 0.0
  %2102 = vmatpush1.xpose.msra.mxu0 0.0
  %2103 = vmatprep.subr.mxu0 0.0
  %2104 = vmatpush1.xpose.msra.mxu0 0.0
  %2105 = vmatprep.subr.mxu0 0.0
  %2106 = vmatpush1.xpose.msra.mxu0 0.0
  %2107 = vmatprep.subr.mxu0 0.0
  %2108 = vmatpush1.xpose.msra.mxu0 0.0
  %2109 = vmatprep.subr.mxu0 0.0
  %2110 = vmatpush1.xpose.msra.mxu0 0.0
  %2111 = vmatprep.subr.mxu0 0.0
  %2112 = vmatpush1.xpose.msra.mxu0 0.0
  %2113 = vmatprep.subr.mxu0 0.0
  %2114 = vmatpush1.xpose.msra.mxu0 0.0
  %2115 = vmatprep.subr.mxu0 0.0
  %2116 = vmatpush1.xpose.msra.mxu0 0.0
  %2117 = vmatprep.subr.mxu0 0.0
  %2118 = vmatpush1.xpose.msra.mxu0 0.0
  %2119 = vmatprep.subr.mxu0 0.0
  %2120 = vmatpush1.xpose.msra.mxu0 0.0
  %2121 = vmatprep.subr.mxu0 0.0
  %2122 = vmatpush1.xpose.msra.mxu0 0.0
  %2123 = vmatprep.subr.mxu0 0.0
  %2124 = vmatpush1.xpose.msra.mxu0 0.0
  %2125 = vmatprep.subr.mxu0 0.0
  %2126 = vmatpush1.xpose.msra.mxu0 0.0
  %2127 = vmatprep.subr.mxu0 0.0
  %2128 = vmatpush1.xpose.msra.mxu0 0.0
  %2129 = vmatprep.subr.mxu0 0.0
  %2130 = vmatpush1.xpose.msra.mxu0 0.0
  %2131 = vmatprep.mubr.f32.mxu0 0.0
  %2132 = vmatmul.mubr.f32.gmra.mrb[0].mxu0 %v2065
  %v2133 = vpop.f32.mrb[0].mxu0
  %v2134 = vadd.f32 0.0, %v2133
  %v2135 = vpop.f32.mrb[0].mxu0
  %2136 = vdwg.mxu0
  %v2137 = vadd.f32 %v1989, %v2061
  %v2138 = vxor.u32 %v2137, 2147483648
  %v2139 = vmul.f32 %v2138, 1.442695
  %v2140 = vpow.pop %v2139
  %v2141 = vadd.f32 %v2140, 1.0
  %v2142 = vrcp.pop %v2141
  %v2143 = vmul.f32 1.0, %v2142
  %v2144 = vadd.f32 %v2061, %v1460
  %2146 = vrot.lane.b32.xlu0 %v2144, 64
  %v2147 = vpop.permute.xlu0 %2146
  %v2149 = vmul.f32 %v2143, %v2147
  %2151 = vrot.lane.b32.xlu0 %v2149, 64
  %v2152 = vpop.permute.xlu0 %2151
  %v2154 = vadd.f32 %v1989, %v2152
  %v2155 = vtanh.pop %v2154
  %v2156 = vsub.f32 1.0, %v2143
  %2158 = vrot.lane.b32.xlu0 %v2155, 96
  %v2159 = vpop.permute.xlu0 %2158
  %v2161 = vmul.f32 %v2156, %v2159
  %v2162 = vmul.f32 %v2143, %v1942
  %v2163 = vadd.f32 %v2161, %v2162
  %2165 = vrot.lane.b32.xlu0 %v2134, 96
  %v2166 = vpop.permute.xlu0 %2165
  %v2168 = vadd.f32 %v1990, %v2166
  %v2169 = vxor.u32 %v2168, 2147483648
  %v2170 = vmul.f32 %v2169, 1.442695
  %v2171 = vpow.pop %v2170
  %v2172 = vadd.f32 %v2171, 1.0
  %v2173 = vrcp.pop %v2172
  %v2174 = vmul.f32 1.0, %v2173
  %v2175 = vadd.f32 %v1991, %v2166
  %v2176 = vxor.u32 %v2175, 2147483648
  %v2177 = vmul.f32 %v2176, 1.442695
  %v2178 = vpow.pop %v2177
  %v2179 = vadd.f32 %v2178, 1.0
  %v2180 = vrcp.pop %v2179
  %v2181 = vmul.f32 1.0, %v2180
  %v2182 = vadd.f32 %v2134, %v1506
  %2184 = vrot.lane.b32.xlu0 %v2182, 32
  %v2185 = vpop.permute.xlu0 %2184
  %v2187 = vmul.f32 %v2174, %v2185
  %2189 = vrot.lane.b32.xlu0 %v2187, 64
  %v2190 = vpop.permute.xlu0 %2189
  %v2192 = vadd.f32 %v1991, %v2190
  %v2193 = vtanh.pop %v2192
  %v2194 = vsub.f32 1.0, %v2181
  %2196 = vrot.lane.b32.xlu0 %v2193, 96
  %v2197 = vpop.permute.xlu0 %2196
  %v2199 = vmul.f32 %v2194, %v2197
  %v2200 = vmul.f32 %v2181, %v1980
  %v2201 = vadd.f32 %v2199, %v2200
  %2203 = vrot.lane.b32.xlu0 %v2163, 96
  %v2204 = vpop.permute.xlu0 %2203
  %s2206 = scalar_lea.vmem %s9, 24
  %2207 = vst.msk [vmem:[%s2206] sm:$0xff] %vm993, %v2204
  %s2208 = scalar_lea.vmem [#allocation3], 16
  %2209 = vst.msk [vmem:[%s2208] sm:$0xff] %vm993, %v2201
  %v2210 = vld [vmem:[%s1541] sm:$0xff]
  %v2211 = vld [vmem:[%s1537] sm:$0xff]
  %v2212 = vld [vmem:[%s1537 + $0x8] sm:$0xff]
  %v2213 = vsel %vm993, %v2204, 0
  %2215 = vmatprep.subr.mxu0 0.0
  %2216 = vmatpush1.xpose.msra.mxu0 %v1236
  %2217 = vmatprep.subr.mxu0 0.0
  %2218 = vmatpush1.xpose.msra.mxu0 %v1239
  %2219 = vmatprep.subr.mxu0 0.0
  %2220 = vmatpush1.xpose.msra.mxu0 %v1242
  %2221 = vmatprep.subr.mxu0 0.0
  %2222 = vmatpush1.xpose.msra.mxu0 %v1245
  %2223 = vmatprep.subr.mxu0 0.0
  %2224 = vmatpush1.xpose.msra.mxu0 %v1248
  %2225 = vmatprep.subr.mxu0 0.0
  %2226 = vmatpush1.xpose.msra.mxu0 %v1251
  %2227 = vmatprep.subr.mxu0 0.0
  %2228 = vmatpush1.xpose.msra.mxu0 %v1254
  %2229 = vmatprep.subr.mxu0 0.0
  %2230 = vmatpush1.xpose.msra.mxu0 %v1257
  %2231 = vmatprep.subr.mxu0 0.0
  %2232 = vmatpush1.xpose.msra.mxu0 %v1260
  %2233 = vmatprep.subr.mxu0 0.0
  %2234 = vmatpush1.xpose.msra.mxu0 %v1263
  %2235 = vmatprep.subr.mxu0 0.0
  %2236 = vmatpush1.xpose.msra.mxu0 %v1266
  %2237 = vmatprep.subr.mxu0 0.0
  %2238 = vmatpush1.xpose.msra.mxu0 %v1269
  %2239 = vmatprep.subr.mxu0 0.0
  %2240 = vmatpush1.xpose.msra.mxu0 0.0
  %2241 = vmatprep.subr.mxu0 0.0
  %2242 = vmatpush1.xpose.msra.mxu0 0.0
  %2243 = vmatprep.subr.mxu0 0.0
  %2244 = vmatpush1.xpose.msra.mxu0 0.0
  %2245 = vmatprep.subr.mxu0 0.0
  %2246 = vmatpush1.xpose.msra.mxu0 0.0
  %2247 = vmatprep.subr.mxu0 0.0
  %2248 = vmatpush1.xpose.msra.mxu0 0.0
  %2249 = vmatprep.subr.mxu0 0.0
  %2250 = vmatpush1.xpose.msra.mxu0 0.0
  %2251 = vmatprep.subr.mxu0 0.0
  %2252 = vmatpush1.xpose.msra.mxu0 0.0
  %2253 = vmatprep.subr.mxu0 0.0
  %2254 = vmatpush1.xpose.msra.mxu0 0.0
  %2255 = vmatprep.subr.mxu0 0.0
  %2256 = vmatpush1.xpose.msra.mxu0 0.0
  %2257 = vmatprep.subr.mxu0 0.0
  %2258 = vmatpush1.xpose.msra.mxu0 0.0
  %2259 = vmatprep.subr.mxu0 0.0
  %2260 = vmatpush1.xpose.msra.mxu0 0.0
  %2261 = vmatprep.subr.mxu0 0.0
  %2262 = vmatpush1.xpose.msra.mxu0 0.0
  %2263 = vmatprep.subr.mxu0 0.0
  %2264 = vmatpush1.xpose.msra.mxu0 0.0
  %2265 = vmatprep.subr.mxu0 0.0
  %2266 = vmatpush1.xpose.msra.mxu0 0.0
  %2267 = vmatprep.subr.mxu0 0.0
  %2268 = vmatpush1.xpose.msra.mxu0 0.0
  %2269 = vmatprep.subr.mxu0 0.0
  %2270 = vmatpush1.xpose.msra.mxu0 0.0
  %2271 = vmatprep.subr.mxu0 0.0
  %2272 = vmatpush1.xpose.msra.mxu0 0.0
  %2273 = vmatprep.subr.mxu0 0.0
  %2274 = vmatpush1.xpose.msra.mxu0 0.0
  %2275 = vmatprep.subr.mxu0 0.0
  %2276 = vmatpush1.xpose.msra.mxu0 0.0
  %2277 = vmatprep.subr.mxu0 0.0
  %2278 = vmatpush1.xpose.msra.mxu0 0.0
  %2279 = vmatprep.mubr.f32.mxu0 0.0
  %2280 = vmatmul.mubr.f32.gmra.mrb[0].mxu0 %v2213
  %v2281 = vpop.f32.mrb[0].mxu0
  %v2282 = vadd.f32 0.0, %v2281
  %v2283 = vpop.f32.mrb[0].mxu0
  %2284 = vdwg.mxu0
  %v2286 = vsel %vm993, %v2201, 0
  %2288 = vmatprep.subr.mxu0 0.0
  %2289 = vmatpush1.xpose.msra.mxu0 %v1342
  %2290 = vmatprep.subr.mxu0 0.0
  %2291 = vmatpush1.xpose.msra.mxu0 %v1345
  %2292 = vmatprep.subr.mxu0 0.0
  %2293 = vmatpush1.xpose.msra.mxu0 %v1348
  %2294 = vmatprep.subr.mxu0 0.0
  %2295 = vmatpush1.xpose.msra.mxu0 %v1351
  %2296 = vmatprep.subr.mxu0 0.0
  %2297 = vmatpush1.xpose.msra.mxu0 %v1354
  %2298 = vmatprep.subr.mxu0 0.0
  %2299 = vmatpush1.xpose.msra.mxu0 %v1357
  %2300 = vmatprep.subr.mxu0 0.0
  %2301 = vmatpush1.xpose.msra.mxu0 %v1360
  %2302 = vmatprep.subr.mxu0 0.0
  %2303 = vmatpush1.xpose.msra.mxu0 %v1363
  %2304 = vmatprep.subr.mxu0 0.0
  %2305 = vmatpush1.xpose.msra.mxu0 %v1366
  %2306 = vmatprep.subr.mxu0 0.0
  %2307 = vmatpush1.xpose.msra.mxu0 %v1369
  %2308 = vmatprep.subr.mxu0 0.0
  %2309 = vmatpush1.xpose.msra.mxu0 %v1372
  %2310 = vmatprep.subr.mxu0 0.0
  %2311 = vmatpush1.xpose.msra.mxu0 %v1375
  %2312 = vmatprep.subr.mxu0 0.0
  %2313 = vmatpush1.xpose.msra.mxu0 0.0
  %2314 = vmatprep.subr.mxu0 0.0
  %2315 = vmatpush1.xpose.msra.mxu0 0.0
  %2316 = vmatprep.subr.mxu0 0.0
  %2317 = vmatpush1.xpose.msra.mxu0 0.0
  %2318 = vmatprep.subr.mxu0 0.0
  %2319 = vmatpush1.xpose.msra.mxu0 0.0
  %2320 = vmatprep.subr.mxu0 0.0
  %2321 = vmatpush1.xpose.msra.mxu0 0.0
  %2322 = vmatprep.subr.mxu0 0.0
  %2323 = vmatpush1.xpose.msra.mxu0 0.0
  %2324 = vmatprep.subr.mxu0 0.0
  %2325 = vmatpush1.xpose.msra.mxu0 0.0
  %2326 = vmatprep.subr.mxu0 0.0
  %2327 = vmatpush1.xpose.msra.mxu0 0.0
  %2328 = vmatprep.subr.mxu0 0.0
  %2329 = vmatpush1.xpose.msra.mxu0 0.0
  %2330 = vmatprep.subr.mxu0 0.0
  %2331 = vmatpush1.xpose.msra.mxu0 0.0
  %2332 = vmatprep.subr.mxu0 0.0
  %2333 = vmatpush1.xpose.msra.mxu0 0.0
  %2334 = vmatprep.subr.mxu0 0.0
  %2335 = vmatpush1.xpose.msra.mxu0 0.0
  %2336 = vmatprep.subr.mxu0 0.0
  %2337 = vmatpush1.xpose.msra.mxu0 0.0
  %2338 = vmatprep.subr.mxu0 0.0
  %2339 = vmatpush1.xpose.msra.mxu0 0.0
  %2340 = vmatprep.subr.mxu0 0.0
  %2341 = vmatpush1.xpose.msra.mxu0 0.0
  %2342 = vmatprep.subr.mxu0 0.0
  %2343 = vmatpush1.xpose.msra.mxu0 0.0
  %2344 = vmatprep.subr.mxu0 0.0
  %2345 = vmatpush1.xpose.msra.mxu0 0.0
  %2346 = vmatprep.subr.mxu0 0.0
  %2347 = vmatpush1.xpose.msra.mxu0 0.0
  %2348 = vmatprep.subr.mxu0 0.0
  %2349 = vmatpush1.xpose.msra.mxu0 0.0
  %2350 = vmatprep.subr.mxu0 0.0
  %2351 = vmatpush1.xpose.msra.mxu0 0.0
  %2352 = vmatprep.mubr.f32.mxu0 0.0
  %2353 = vmatmul.mubr.f32.gmra.mrb[0].mxu0 %v2286
  %v2354 = vpop.f32.mrb[0].mxu0
  %v2355 = vadd.f32 0.0, %v2354
  %v2356 = vpop.f32.mrb[0].mxu0
  %2357 = vdwg.mxu0
  %v2358 = vadd.f32 %v2210, %v2282
  %v2359 = vxor.u32 %v2358, 2147483648
  %v2360 = vmul.f32 %v2359, 1.442695
  %v2361 = vpow.pop %v2360
  %v2362 = vadd.f32 %v2361, 1.0
  %v2363 = vrcp.pop %v2362
  %v2364 = vmul.f32 1.0, %v2363
  %v2365 = vadd.f32 %v2282, %v1460
  %2367 = vrot.lane.b32.xlu0 %v2365, 64
  %v2368 = vpop.permute.xlu0 %2367
  %v2370 = vmul.f32 %v2364, %v2368
  %2372 = vrot.lane.b32.xlu0 %v2370, 64
  %v2373 = vpop.permute.xlu0 %2372
  %v2375 = vadd.f32 %v2210, %v2373
  %v2376 = vtanh.pop %v2375
  %v2377 = vsub.f32 1.0, %v2364
  %2379 = vrot.lane.b32.xlu0 %v2376, 96
  %v2380 = vpop.permute.xlu0 %2379
  %v2382 = vmul.f32 %v2377, %v2380
  %v2383 = vmul.f32 %v2364, %v2163
  %v2384 = vadd.f32 %v2382, %v2383
  %2386 = vrot.lane.b32.xlu0 %v2355, 96
  %v2387 = vpop.permute.xlu0 %2386
  %v2389 = vadd.f32 %v2211, %v2387
  %v2390 = vxor.u32 %v2389, 2147483648
  %v2391 = vmul.f32 %v2390, 1.442695
  %v2392 = vpow.pop %v2391
  %v2393 = vadd.f32 %v2392, 1.0
  %v2394 = vrcp.pop %v2393
  %v2395 = vmul.f32 1.0, %v2394
  %v2396 = vadd.f32 %v2212, %v2387
  %v2397 = vxor.u32 %v2396, 2147483648
  %v2398 = vmul.f32 %v2397, 1.442695
  %v2399 = vpow.pop %v2398
  %v2400 = vadd.f32 %v2399, 1.0
  %v2401 = vrcp.pop %v2400
  %v2402 = vmul.f32 1.0, %v2401
  %v2403 = vadd.f32 %v2355, %v1506
  %2405 = vrot.lane.b32.xlu0 %v2403, 32
  %v2406 = vpop.permute.xlu0 %2405
  %v2408 = vmul.f32 %v2395, %v2406
  %2410 = vrot.lane.b32.xlu0 %v2408, 64
  %v2411 = vpop.permute.xlu0 %2410
  %v2413 = vadd.f32 %v2212, %v2411
  %v2414 = vtanh.pop %v2413
  %v2415 = vsub.f32 1.0, %v2402
  %2417 = vrot.lane.b32.xlu0 %v2414, 96
  %v2418 = vpop.permute.xlu0 %2417
  %v2420 = vmul.f32 %v2415, %v2418
  %v2421 = vmul.f32 %v2402, %v2201
  %v2422 = vadd.f32 %v2420, %v2421
  %2424 = vrot.lane.b32.xlu0 %v2384, 96
  %v2425 = vpop.permute.xlu0 %2424
  %s2427 = scalar_lea.vmem %s9, 32
  %2428 = vst.msk [vmem:[%s2427] sm:$0xff] %vm993, %v2425
  %s2429 = scalar_lea.vmem [#allocation3], 8
  %2430 = vst.msk [vmem:[%s2429] sm:$0xff] %vm993, %v2422
  %v2431 = vld [vmem:[%s1229] sm:$0xff]
  %v2432 = vld [vmem:[%s1225] sm:$0xff]
  %v2433 = vld [vmem:[%s1225 + $0x8] sm:$0xff]
  %v2434 = vsel %vm993, %v2425, 0
  %2436 = vmatprep.subr.mxu0 0.0
  %2437 = vmatpush1.xpose.msra.mxu0 %v1236
  %2438 = vmatprep.subr.mxu0 0.0
  %2439 = vmatpush1.xpose.msra.mxu0 %v1239
  %2440 = vmatprep.subr.mxu0 0.0
  %2441 = vmatpush1.xpose.msra.mxu0 %v1242
  %2442 = vmatprep.subr.mxu0 0.0
  %2443 = vmatpush1.xpose.msra.mxu0 %v1245
  %2444 = vmatprep.subr.mxu0 0.0
  %2445 = vmatpush1.xpose.msra.mxu0 %v1248
  %2446 = vmatprep.subr.mxu0 0.0
  %2447 = vmatpush1.xpose.msra.mxu0 %v1251
  %2448 = vmatprep.subr.mxu0 0.0
  %2449 = vmatpush1.xpose.msra.mxu0 %v1254
  %2450 = vmatprep.subr.mxu0 0.0
  %2451 = vmatpush1.xpose.msra.mxu0 %v1257
  %2452 = vmatprep.subr.mxu0 0.0
  %2453 = vmatpush1.xpose.msra.mxu0 %v1260
  %2454 = vmatprep.subr.mxu0 0.0
  %2455 = vmatpush1.xpose.msra.mxu0 %v1263
  %2456 = vmatprep.subr.mxu0 0.0
  %2457 = vmatpush1.xpose.msra.mxu0 %v1266
  %2458 = vmatprep.subr.mxu0 0.0
  %2459 = vmatpush1.xpose.msra.mxu0 %v1269
  %2460 = vmatprep.subr.mxu0 0.0
  %2461 = vmatpush1.xpose.msra.mxu0 0.0
  %2462 = vmatprep.subr.mxu0 0.0
  %2463 = vmatpush1.xpose.msra.mxu0 0.0
  %2464 = vmatprep.subr.mxu0 0.0
  %2465 = vmatpush1.xpose.msra.mxu0 0.0
  %2466 = vmatprep.subr.mxu0 0.0
  %2467 = vmatpush1.xpose.msra.mxu0 0.0
  %2468 = vmatprep.subr.mxu0 0.0
  %2469 = vmatpush1.xpose.msra.mxu0 0.0
  %2470 = vmatprep.subr.mxu0 0.0
  %2471 = vmatpush1.xpose.msra.mxu0 0.0
  %2472 = vmatprep.subr.mxu0 0.0
  %2473 = vmatpush1.xpose.msra.mxu0 0.0
  %2474 = vmatprep.subr.mxu0 0.0
  %2475 = vmatpush1.xpose.msra.mxu0 0.0
  %2476 = vmatprep.subr.mxu0 0.0
  %2477 = vmatpush1.xpose.msra.mxu0 0.0
  %2478 = vmatprep.subr.mxu0 0.0
  %2479 = vmatpush1.xpose.msra.mxu0 0.0
  %2480 = vmatprep.subr.mxu0 0.0
  %2481 = vmatpush1.xpose.msra.mxu0 0.0
  %2482 = vmatprep.subr.mxu0 0.0
  %2483 = vmatpush1.xpose.msra.mxu0 0.0
  %2484 = vmatprep.subr.mxu0 0.0
  %2485 = vmatpush1.xpose.msra.mxu0 0.0
  %2486 = vmatprep.subr.mxu0 0.0
  %2487 = vmatpush1.xpose.msra.mxu0 0.0
  %2488 = vmatprep.subr.mxu0 0.0
  %2489 = vmatpush1.xpose.msra.mxu0 0.0
  %2490 = vmatprep.subr.mxu0 0.0
  %2491 = vmatpush1.xpose.msra.mxu0 0.0
  %2492 = vmatprep.subr.mxu0 0.0
  %2493 = vmatpush1.xpose.msra.mxu0 0.0
  %2494 = vmatprep.subr.mxu0 0.0
  %2495 = vmatpush1.xpose.msra.mxu0 0.0
  %2496 = vmatprep.subr.mxu0 0.0
  %2497 = vmatpush1.xpose.msra.mxu0 0.0
  %2498 = vmatprep.subr.mxu0 0.0
  %2499 = vmatpush1.xpose.msra.mxu0 0.0
  %2500 = vmatprep.mubr.f32.mxu0 0.0
  %2501 = vmatmul.mubr.f32.gmra.mrb[0].mxu0 %v2434
  %v2502 = vpop.f32.mrb[0].mxu0
  %v2503 = vadd.f32 0.0, %v2502
  %v2504 = vpop.f32.mrb[0].mxu0
  %2505 = vdwg.mxu0
  %v2507 = vsel %vm993, %v2422, 0
  %2509 = vmatprep.subr.mxu0 0.0
  %2510 = vmatpush1.xpose.msra.mxu0 %v1342
  %2511 = vmatprep.subr.mxu0 0.0
  %2512 = vmatpush1.xpose.msra.mxu0 %v1345
  %2513 = vmatprep.subr.mxu0 0.0
  %2514 = vmatpush1.xpose.msra.mxu0 %v1348
  %2515 = vmatprep.subr.mxu0 0.0
  %2516 = vmatpush1.xpose.msra.mxu0 %v1351
  %2517 = vmatprep.subr.mxu0 0.0
  %2518 = vmatpush1.xpose.msra.mxu0 %v1354
  %2519 = vmatprep.subr.mxu0 0.0
  %2520 = vmatpush1.xpose.msra.mxu0 %v1357
  %2521 = vmatprep.subr.mxu0 0.0
  %2522 = vmatpush1.xpose.msra.mxu0 %v1360
  %2523 = vmatprep.subr.mxu0 0.0
  %2524 = vmatpush1.xpose.msra.mxu0 %v1363
  %2525 = vmatprep.subr.mxu0 0.0
  %2526 = vmatpush1.xpose.msra.mxu0 %v1366
  %2527 = vmatprep.subr.mxu0 0.0
  %2528 = vmatpush1.xpose.msra.mxu0 %v1369
  %2529 = vmatprep.subr.mxu0 0.0
  %2530 = vmatpush1.xpose.msra.mxu0 %v1372
  %2531 = vmatprep.subr.mxu0 0.0
  %2532 = vmatpush1.xpose.msra.mxu0 %v1375
  %2533 = vmatprep.subr.mxu0 0.0
  %2534 = vmatpush1.xpose.msra.mxu0 0.0
  %2535 = vmatprep.subr.mxu0 0.0
  %2536 = vmatpush1.xpose.msra.mxu0 0.0
  %2537 = vmatprep.subr.mxu0 0.0
  %2538 = vmatpush1.xpose.msra.mxu0 0.0
  %2539 = vmatprep.subr.mxu0 0.0
  %2540 = vmatpush1.xpose.msra.mxu0 0.0
  %2541 = vmatprep.subr.mxu0 0.0
  %2542 = vmatpush1.xpose.msra.mxu0 0.0
  %2543 = vmatprep.subr.mxu0 0.0
  %2544 = vmatpush1.xpose.msra.mxu0 0.0
  %2545 = vmatprep.subr.mxu0 0.0
  %2546 = vmatpush1.xpose.msra.mxu0 0.0
  %2547 = vmatprep.subr.mxu0 0.0
  %2548 = vmatpush1.xpose.msra.mxu0 0.0
  %2549 = vmatprep.subr.mxu0 0.0
  %2550 = vmatpush1.xpose.msra.mxu0 0.0
  %2551 = vmatprep.subr.mxu0 0.0
  %2552 = vmatpush1.xpose.msra.mxu0 0.0
  %2553 = vmatprep.subr.mxu0 0.0
  %2554 = vmatpush1.xpose.msra.mxu0 0.0
  %2555 = vmatprep.subr.mxu0 0.0
  %2556 = vmatpush1.xpose.msra.mxu0 0.0
  %2557 = vmatprep.subr.mxu0 0.0
  %2558 = vmatpush1.xpose.msra.mxu0 0.0
  %2559 = vmatprep.subr.mxu0 0.0
  %2560 = vmatpush1.xpose.msra.mxu0 0.0
  %2561 = vmatprep.subr.mxu0 0.0
  %2562 = vmatpush1.xpose.msra.mxu0 0.0
  %2563 = vmatprep.subr.mxu0 0.0
  %2564 = vmatpush1.xpose.msra.mxu0 0.0
  %2565 = vmatprep.subr.mxu0 0.0
  %2566 = vmatpush1.xpose.msra.mxu0 0.0
  %2567 = vmatprep.subr.mxu0 0.0
  %2568 = vmatpush1.xpose.msra.mxu0 0.0
  %2569 = vmatprep.subr.mxu0 0.0
  %2570 = vmatpush1.xpose.msra.mxu0 0.0
  %2571 = vmatprep.subr.mxu0 0.0
  %2572 = vmatpush1.xpose.msra.mxu0 0.0
  %2573 = vmatprep.mubr.f32.mxu0 0.0
  %2574 = vmatmul.mubr.f32.gmra.mrb[0].mxu0 %v2507
  %v2575 = vpop.f32.mrb[0].mxu0
  %v2576 = vadd.f32 0.0, %v2575
  %v2577 = vpop.f32.mrb[0].mxu0
  %2578 = vdwg.mxu0
  %v2579 = vadd.f32 %v2431, %v2503
  %v2580 = vxor.u32 %v2579, 2147483648
  %v2581 = vmul.f32 %v2580, 1.442695
  %v2582 = vpow.pop %v2581
  %v2583 = vadd.f32 %v2582, 1.0
  %v2584 = vrcp.pop %v2583
  %v2585 = vmul.f32 1.0, %v2584
  %v2586 = vadd.f32 %v2503, %v1460
  %2588 = vrot.lane.b32.xlu0 %v2586, 64
  %v2589 = vpop.permute.xlu0 %2588
  %v2591 = vmul.f32 %v2585, %v2589
  %2593 = vrot.lane.b32.xlu0 %v2591, 64
  %v2594 = vpop.permute.xlu0 %2593
  %v2596 = vadd.f32 %v2431, %v2594
  %v2597 = vtanh.pop %v2596
  %v2598 = vsub.f32 1.0, %v2585
  %2600 = vrot.lane.b32.xlu0 %v2597, 96
  %v2601 = vpop.permute.xlu0 %2600
  %v2603 = vmul.f32 %v2598, %v2601
  %v2604 = vmul.f32 %v2585, %v2384
  %v2605 = vadd.f32 %v2603, %v2604
  %2607 = vrot.lane.b32.xlu0 %v2576, 96
  %v2608 = vpop.permute.xlu0 %2607
  %v2610 = vadd.f32 %v2432, %v2608
  %v2611 = vxor.u32 %v2610, 2147483648
  %v2612 = vmul.f32 %v2611, 1.442695
  %v2613 = vpow.pop %v2612
  %v2614 = vadd.f32 %v2613, 1.0
  %v2615 = vrcp.pop %v2614
  %v2616 = vmul.f32 1.0, %v2615
  %v2617 = vadd.f32 %v2433, %v2608
  %v2618 = vxor.u32 %v2617, 2147483648
  %v2619 = vmul.f32 %v2618, 1.442695
  %v2620 = vpow.pop %v2619
  %v2621 = vadd.f32 %v2620, 1.0
  %v2622 = vrcp.pop %v2621
  %v2623 = vmul.f32 1.0, %v2622
  %v2624 = vadd.f32 %v2576, %v1506
  %2626 = vrot.lane.b32.xlu0 %v2624, 32
  %v2627 = vpop.permute.xlu0 %2626
  %v2629 = vmul.f32 %v2616, %v2627
  %2631 = vrot.lane.b32.xlu0 %v2629, 64
  %v2632 = vpop.permute.xlu0 %2631
  %v2634 = vadd.f32 %v2433, %v2632
  %v2635 = vtanh.pop %v2634
  %v2636 = vsub.f32 1.0, %v2623
  %2638 = vrot.lane.b32.xlu0 %v2635, 96
  %v2639 = vpop.permute.xlu0 %2638
  %v2641 = vmul.f32 %v2636, %v2639
  %v2642 = vmul.f32 %v2623, %v2422
  %v2643 = vadd.f32 %v2641, %v2642
  %2645 = vrot.lane.b32.xlu0 %v2605, 96
  %v2646 = vpop.permute.xlu0 %2645
  %s2648 = scalar_lea.vmem %s9, 40
  %2649 = vst.msk [vmem:[%s2648] sm:$0xff] %vm993, %v2646
  %2650 = vst.msk [vmem:[#allocation3] sm:$0xff] %vm993, %v2643
  %v2651 = vld [vmem:[%s9] sm:$0xff]
  %v2652 = vld [vmem:[%s9 + $0x8] sm:$0xff]
  %v2653 = vld [vmem:[%s9 + $0x10] sm:$0xff]
  %v2654 = vld [vmem:[%s9 + $0x18] sm:$0xff]
  %v2655 = vld [vmem:[%s9 + $0x20] sm:$0xff]
  %v2656 = vld [vmem:[%s9 + $0x28] sm:$0xff]
  %v2657 = vld [vmem:[#allocation3] sm:$0xff]
  %v2658 = vld [vmem:[#allocation3 + $0x8] sm:$0xff]
  %v2659 = vld [vmem:[#allocation3 + $0x10] sm:$0xff]
  %v2660 = vld [vmem:[#allocation3 + $0x18] sm:$0xff]
  %v2661 = vld [vmem:[#allocation3 + $0x20] sm:$0xff]
  %v2662 = vld [vmem:[#allocation3 + $0x28] sm:$0xff]
  %v2663 = vadd.f32 %v2651, %v2657
  %v2664 = vadd.f32 %v2652, %v2658
  %v2665 = vadd.f32 %v2653, %v2659
  %v2666 = vadd.f32 %v2654, %v2660
  %v2667 = vadd.f32 %v2655, %v2661
  %v2668 = vadd.f32 %v2656, %v2662
  %2669 = vst.msk [vmem:[%s9] sm:$0xff] %vm993, %v2663
  %2670 = vst.msk [vmem:[%s9 + $0x8] sm:$0xff] %vm993, %v2664
  %2671 = vst.msk [vmem:[%s9 + $0x10] sm:$0xff] %vm993, %v2665
  %2672 = vst.msk [vmem:[%s9 + $0x18] sm:$0xff] %vm993, %v2666
  %2673 = vst.msk [vmem:[%s9 + $0x20] sm:$0xff] %vm993, %v2667
  %2674 = vst.msk [vmem:[%s9 + $0x28] sm:$0xff] %vm993, %v2668
  // Predicated region
  $region38: #{tpu_custom_call.1} parent=0 // pred_check
    _
  $region39: #{tpu_custom_call.1} parent=0 // pred_check_branch
    %2676 = sbr.rel (0) target = $region41
  $region40: #{tpu_custom_call.1} parent=0 // pred_region
    _
  $region41: #{tpu_custom_call.1} parent=0 // pred_fallthru
    _
  // Predicated region
  $region42: #{tpu_custom_call.1} parent=0 // pred_check
    _
  $region43: #{tpu_custom_call.1} parent=0 // pred_check_branch
    %2678 = sbr.rel (0) target = $region45
  $region44: #{tpu_custom_call.1} parent=0 // pred_region
    _
  $region45: #{tpu_custom_call.1} parent=0 // pred_fallthru
    _

</llo_original>
